<compile_context>
chip_gen: v7x
topology: tpu7x:2x2x1
jax: 0.10.0
libtpu: 0.0.40
codegen_flags: <defaults>
</compile_context>

<pallas_src>
import jax
import jax.numpy as jnp
from jax.experimental import pallas as pl
from jax.experimental.pallas import tpu as pltpu


# Set to jnp.bfloat16 on v6e/v7x to feed the MXU in bf16 (f32 accumulation via
# preferred_element_type). Kept at float32 by default so gate math and results
# match the PyTorch reference closely and stay portable to v5e (no bf16 VPU/EUP).
_MXU_IN_DTYPE = jnp.float32


def _vmem_specs(n):
    return [pl.BlockSpec(memory_space=pltpu.MemorySpace.VMEM) for _ in range(n)]


# ----------------------------- Fused Pallas kernel --------------------------

def _make_fused_kernel(num_rnn_layers):
    """LSTM(1 layer) -> RNN(tanh, num_rnn_layers) -> Linear, all in one kernel."""

    def kernel(*refs):
        x_ref, lwih_ref, lwhh_ref, lb_ref = refs[:4]
        rnn_refs = [refs[4 + 3 * l: 4 + 3 * (l + 1)] for l in range(num_rnn_layers)]
        linw_ref, linb_ref = refs[4 + 3 * num_rnn_layers: 6 + 3 * num_rnn_layers]
        out_ref = refs[6 + 3 * num_rnn_layers]

        B, T, D = x_ref.shape
        Hl = lwhh_ref.shape[0]

        # -------------------- LSTM layer (1 layer, batch_first) --------------
        # Hoist weight / bias loads out of the recurrent loop.
        w_ih = lwih_ref[...].astype(_MXU_IN_DTYPE)          # (D, 4H)
        w_hh = lwhh_ref[...].astype(_MXU_IN_DTYPE)          # (H, 4H)
        bias = lb_ref[...]                                   # (1, 4H)

        # Hoisted input projection: one (B*T, D) @ (D, 4H) matmul instead of
        # T tiny matmuls on the latency-critical recurrent chain.
        x = x_ref[...].astype(_MXU_IN_DTYPE).reshape(B * T, D)
        xp = (jnp.dot(x, w_ih, preferred_element_type=jnp.float32)
              + bias).reshape(B, T, 4 * Hl)

        h = jnp.zeros((B, Hl), jnp.float32)
        c = jnp.zeros((B, Hl), jnp.float32)
        hs = []
        for t in range(T):  # static unroll: T is small and fixed
            gates = xp[:, t, :] + jnp.dot(h.astype(_MXU_IN_DTYPE), w_hh,
                                          preferred_element_type=jnp.float32)
            # PyTorch gate order: i, f, g, o  (static lane slices of one vreg row)
            i = jax.nn.sigmoid(gates[:, 0 * Hl:1 * Hl])
            f = jax.nn.sigmoid(gates[:, 1 * Hl:2 * Hl])
            g = jnp.tanh(gates[:, 2 * Hl:3 * Hl])
            o = jax.nn.sigmoid(gates[:, 3 * Hl:4 * Hl])
            c = f * c + i * g
            h = o * jnp.tanh(c)
            hs.append(h)
        seq = jnp.stack(hs, axis=0)          # (T, B, Hl): stays on-chip (no HBM)

        # mid_dropout is never applied in the reference forward; RNN inter-layer
        # dropout with p=0.0 is the identity.

        # -------------------- Multi-layer Elman RNN (tanh) --------------------
        for l, (wih_ref, whh_ref, b_ref) in enumerate(rnn_refs):
            Hr = whh_ref.shape[0]
            w_ih = wih_ref[...].astype(_MXU_IN_DTYPE)        # (Hin, Hr)
            w_hh = whh_ref[...].astype(_MXU_IN_DTYPE)        # (Hr, Hr)
            bias = b_ref[...]                                # (1, Hr)
            Hin = seq.shape[-1]

            # Hoisted input projection for this layer (one batched matmul).
            sp = (jnp.dot(seq.reshape(T * B, Hin).astype(_MXU_IN_DTYPE), w_ih,
                          preferred_element_type=jnp.float32)
                  + bias).reshape(T, B, Hr)

            h = jnp.zeros((B, Hr), jnp.float32)
            last = (l == num_rnn_layers - 1)
            hs = []
            for t in range(T):
                h = jnp.tanh(sp[t] + jnp.dot(h.astype(_MXU_IN_DTYPE), w_hh,
                                             preferred_element_type=jnp.float32))
                if not last:
                    hs.append(h)
            if not last:
                # Only needed as the next layer's input; the last layer's
                # per-step outputs are dead in the reference forward.
                seq = jnp.stack(hs, axis=0)

        # -------------------- Linear epilogue ---------------------------------
        # linear(rnn_hidden_state_f[-1]):  (B, Hr) @ (Hr, 1) + (1, 1)
        out_ref[...] = (jnp.dot(h, linw_ref[...],
                                preferred_element_type=jnp.float32)
                        + linb_ref[...])

    return kernel


# ------------------------------ Parameters ----------------------------------

def init_params(key, input_size, num_rnn_layers, lstm_hidden, rnn_hidden):
    """Deterministic init matching PyTorch U(-1/sqrt(H), 1/sqrt(H)) shapes."""

    def uni(k, shape, bound):
        return jax.random.uniform(k, shape, jnp.float32, -bound, bound)

    keys = iter(jax.random.split(key, 4 + 4 * num_rnn_layers + 2))

    # LSTM (num_layers=1): W_ih (4H, D), W_hh (4H, H), b_ih (4H,), b_hh (4H,)
    kl = 1.0 / (lstm_hidden ** 0.5)
    wih = uni(next(keys), (4 * lstm_hidden, input_size), kl)
    whh = uni(next(keys), (4 * lstm_hidden, lstm_hidden), kl)
    bih = uni(next(keys), (4 * lstm_hidden,), kl)
    bhh = uni(next(keys), (4 * lstm_hidden,), kl)
    lstm = {"wih": wih.T, "whh": whh.T,
            "b": (bih + bhh).reshape(1, 4 * lstm_hidden)}

    # Multi-layer Elman RNN (tanh)
    rnn = []
    kr = 1.0 / (rnn_hidden ** 0.5)
    in_size = lstm_hidden
    for _ in range(num_rnn_layers):
        wih_l = uni(next(keys), (rnn_hidden, in_size), kr)
        whh_l = uni(next(keys), (rnn_hidden, rnn_hidden), kr)
        bih_l = uni(next(keys), (rnn_hidden,), kr)
        bhh_l = uni(next(keys), (rnn_hidden,), kr)
        rnn.append({"wih": wih_l.T, "whh": whh_l.T,
                    "b": (bih_l + bhh_l).reshape(1, rnn_hidden)})
        in_size = rnn_hidden

    # Linear(rnn_hidden, 1)
    klin = 1.0 / (rnn_hidden ** 0.5)
    w = uni(next(keys), (1, rnn_hidden), klin)
    b = uni(next(keys), (1,), klin)
    linear = {"w": w.T, "b": b.reshape(1, 1)}

    return {"lstm": lstm, "rnn": rnn, "linear": linear}


# ------------------------------- Forward -------------------------------------

@jax.jit
def lstm_multirnn_forward(params, X):
    """X: (B, T, input_size) float32  ->  (B, 1) float32."""
    B, T, _ = X.shape
    n_rnn = len(params["rnn"])
    if n_rnn < 1:
        # torch.nn.RNN requires num_layers >= 1; rnn_hidden_state_f[-1] would crash too.
        raise ValueError("num_rnn_layers must be >= 1")

    inputs = [X.astype(jnp.float32),
              params["lstm"]["wih"], params["lstm"]["whh"], params["lstm"]["b"]]
    for layer in params["rnn"]:
        inputs += [layer["wih"], layer["whh"], layer["b"]]
    inputs += [params["linear"]["w"], params["linear"]["b"]]

    return pl.pallas_call(
        _make_fused_kernel(n_rnn),
        out_shape=jax.ShapeDtypeStruct((B, 1), jnp.float32),
        in_specs=_vmem_specs(len(inputs)),
        out_specs=pl.BlockSpec(memory_space=pltpu.MemorySpace.VMEM),
    )(*inputs)


# --------------------------------- Main ---------------------------------------

if __name__ == "__main__":
    # Small shapes consistent with the module's forward.
    B, T = 2, 8
    input_size = 16
    lstm_hidden_size = 32     # 4*H = 128 -> gate matmul output is lane-aligned
    rnn_hidden_size = 32
    num_rnn_layers = 2

    key = jax.random.PRNGKey(0)
    k_params, k_x = jax.random.split(key)

    params = init_params(k_params, input_size, num_rnn_layers,
                         lstm_hidden_size, rnn_hidden_size)
    X = jax.random.normal(k_x, (B, T, input_size), jnp.float32)

    y = lstm_multirnn_forward(params, X)
    jax.block_until_ready(y)
    assert y.shape == (B, 1) and y.dtype == jnp.float32
    assert bool(jnp.all(jnp.isfinite(y)))
    print("KERNEL_OK")
</pallas_src>

<mosaic_0001>
module attributes {stable_mosaic.version = 11 : i64} {
  func.func @kernel(%arg0: memref<2x8x16xf32, #tpu.memory_space<vmem>>, %arg1: memref<16x128xf32, #tpu.memory_space<vmem>>, %arg2: memref<32x128xf32, #tpu.memory_space<vmem>>, %arg3: memref<1x128xf32, #tpu.memory_space<vmem>>, %arg4: memref<32x32xf32, #tpu.memory_space<vmem>>, %arg5: memref<32x32xf32, #tpu.memory_space<vmem>>, %arg6: memref<1x32xf32, #tpu.memory_space<vmem>>, %arg7: memref<32x32xf32, #tpu.memory_space<vmem>>, %arg8: memref<32x32xf32, #tpu.memory_space<vmem>>, %arg9: memref<1x32xf32, #tpu.memory_space<vmem>>, %arg10: memref<32x1xf32, #tpu.memory_space<vmem>>, %arg11: memref<1x1xf32, #tpu.memory_space<vmem>>, %arg12: memref<2x1xf32, #tpu.memory_space<vmem>>) attributes {dimension_semantics = [], scalar_prefetch = 0 : i64, scratch_operands = 0 : i64, tpu.core_type = #tpu.core_type<tc>} {
    %c0 = arith.constant 0 : index
    %c0_0 = arith.constant 0 : index
    %0 = vector.load %arg1[%c0, %c0_0] : memref<16x128xf32, #tpu.memory_space<vmem>>, vector<16x128xf32>
    %c0_1 = arith.constant 0 : index
    %c0_2 = arith.constant 0 : index
    %1 = vector.load %arg2[%c0_1, %c0_2] : memref<32x128xf32, #tpu.memory_space<vmem>>, vector<32x128xf32>
    %c0_3 = arith.constant 0 : index
    %c0_4 = arith.constant 0 : index
    %2 = vector.load %arg3[%c0_3, %c0_4] : memref<1x128xf32, #tpu.memory_space<vmem>>, vector<1x128xf32>
    %c0_5 = arith.constant 0 : index
    %c0_6 = arith.constant 0 : index
    %c0_7 = arith.constant 0 : index
    %3 = vector.load %arg0[%c0_5, %c0_6, %c0_7] : memref<2x8x16xf32, #tpu.memory_space<vmem>>, vector<2x8x16xf32>
    %4 = vector.shape_cast %3 : vector<2x8x16xf32> to vector<16x16xf32>
    %cst = arith.constant dense<0.000000e+00> : vector<16x128xf32>
    %5 = tpu.matmul %4, %0, %cst {dimension_numbers = #tpu.dot_dimension_numbers<[1], [0], [0], [1], [0, 0, 1, 1], [], []>} : vector<16x16xf32>, vector<16x128xf32>, vector<16x128xf32> -> vector<16x128xf32>
    %6 = vector.broadcast %2 : vector<1x128xf32> to vector<16x128xf32>
    %7 = arith.addf %5, %6 : vector<16x128xf32>
    %8 = vector.shape_cast %7 : vector<16x128xf32> to vector<2x8x128xf32>
    %cst_8 = arith.constant 0.000000e+00 : f32
    %9 = vector.broadcast %cst_8 : f32 to vector<2x32xf32>
    %cst_9 = arith.constant 0.000000e+00 : f32
    %10 = vector.broadcast %cst_9 : f32 to vector<2x32xf32>
    %11 = vector.extract_strided_slice %8 {offsets = [0, 0, 0], sizes = [2, 1, 128], strides = [1, 1, 1]} : vector<2x8x128xf32> to vector<2x1x128xf32>
    %12 = vector.shape_cast %11 : vector<2x1x128xf32> to vector<2x128xf32>
    %cst_10 = arith.constant dense<0.000000e+00> : vector<2x128xf32>
    %13 = tpu.matmul %9, %1, %cst_10 {dimension_numbers = #tpu.dot_dimension_numbers<[1], [0], [0], [1], [0, 0, 1, 1], [], []>} : vector<2x32xf32>, vector<32x128xf32>, vector<2x128xf32> -> vector<2x128xf32>
    %14 = arith.addf %12, %13 : vector<2x128xf32>
    %15 = vector.extract_strided_slice %14 {offsets = [0, 0], sizes = [2, 32], strides = [1, 1]} : vector<2x128xf32> to vector<2x32xf32>
    %16 = arith.negf %15 : vector<2x32xf32>
    %17 = math.exp %16 : vector<2x32xf32>
    %cst_11 = arith.constant 1.000000e+00 : f32
    %18 = vector.broadcast %cst_11 : f32 to vector<2x32xf32>
    %19 = arith.addf %18, %17 : vector<2x32xf32>
    %20 = arith.divf %18, %19 : vector<2x32xf32>
    %21 = vector.extract_strided_slice %14 {offsets = [0, 32], sizes = [2, 32], strides = [1, 1]} : vector<2x128xf32> to vector<2x32xf32>
    %22 = arith.negf %21 : vector<2x32xf32>
    %23 = math.exp %22 : vector<2x32xf32>
    %cst_12 = arith.constant 1.000000e+00 : f32
    %24 = vector.broadcast %cst_12 : f32 to vector<2x32xf32>
    %25 = arith.addf %24, %23 : vector<2x32xf32>
    %26 = arith.divf %24, %25 : vector<2x32xf32>
    %27 = vector.extract_strided_slice %14 {offsets = [0, 64], sizes = [2, 32], strides = [1, 1]} : vector<2x128xf32> to vector<2x32xf32>
    %28 = math.tanh %27 : vector<2x32xf32>
    %29 = vector.extract_strided_slice %14 {offsets = [0, 96], sizes = [2, 32], strides = [1, 1]} : vector<2x128xf32> to vector<2x32xf32>
    %30 = arith.negf %29 : vector<2x32xf32>
    %31 = math.exp %30 : vector<2x32xf32>
    %cst_13 = arith.constant 1.000000e+00 : f32
    %32 = vector.broadcast %cst_13 : f32 to vector<2x32xf32>
    %33 = arith.addf %32, %31 : vector<2x32xf32>
    %34 = arith.divf %32, %33 : vector<2x32xf32>
    %35 = arith.mulf %26, %10 : vector<2x32xf32>
    %36 = arith.mulf %20, %28 : vector<2x32xf32>
    %37 = arith.addf %35, %36 : vector<2x32xf32>
    %38 = math.tanh %37 : vector<2x32xf32>
    %39 = arith.mulf %34, %38 : vector<2x32xf32>
    %40 = vector.extract_strided_slice %8 {offsets = [0, 1, 0], sizes = [2, 1, 128], strides = [1, 1, 1]} : vector<2x8x128xf32> to vector<2x1x128xf32>
    %41 = vector.shape_cast %40 : vector<2x1x128xf32> to vector<2x128xf32>
    %cst_14 = arith.constant dense<0.000000e+00> : vector<2x128xf32>
    %42 = tpu.matmul %39, %1, %cst_14 {dimension_numbers = #tpu.dot_dimension_numbers<[1], [0], [0], [1], [0, 0, 1, 1], [], []>} : vector<2x32xf32>, vector<32x128xf32>, vector<2x128xf32> -> vector<2x128xf32>
    %43 = arith.addf %41, %42 : vector<2x128xf32>
    %44 = vector.extract_strided_slice %43 {offsets = [0, 0], sizes = [2, 32], strides = [1, 1]} : vector<2x128xf32> to vector<2x32xf32>
    %45 = arith.negf %44 : vector<2x32xf32>
    %46 = math.exp %45 : vector<2x32xf32>
    %cst_15 = arith.constant 1.000000e+00 : f32
    %47 = vector.broadcast %cst_15 : f32 to vector<2x32xf32>
    %48 = arith.addf %47, %46 : vector<2x32xf32>
    %49 = arith.divf %47, %48 : vector<2x32xf32>
    %50 = vector.extract_strided_slice %43 {offsets = [0, 32], sizes = [2, 32], strides = [1, 1]} : vector<2x128xf32> to vector<2x32xf32>
    %51 = arith.negf %50 : vector<2x32xf32>
    %52 = math.exp %51 : vector<2x32xf32>
    %cst_16 = arith.constant 1.000000e+00 : f32
    %53 = vector.broadcast %cst_16 : f32 to vector<2x32xf32>
    %54 = arith.addf %53, %52 : vector<2x32xf32>
    %55 = arith.divf %53, %54 : vector<2x32xf32>
    %56 = vector.extract_strided_slice %43 {offsets = [0, 64], sizes = [2, 32], strides = [1, 1]} : vector<2x128xf32> to vector<2x32xf32>
    %57 = math.tanh %56 : vector<2x32xf32>
    %58 = vector.extract_strided_slice %43 {offsets = [0, 96], sizes = [2, 32], strides = [1, 1]} : vector<2x128xf32> to vector<2x32xf32>
    %59 = arith.negf %58 : vector<2x32xf32>
    %60 = math.exp %59 : vector<2x32xf32>
    %cst_17 = arith.constant 1.000000e+00 : f32
    %61 = vector.broadcast %cst_17 : f32 to vector<2x32xf32>
    %62 = arith.addf %61, %60 : vector<2x32xf32>
    %63 = arith.divf %61, %62 : vector<2x32xf32>
    %64 = arith.mulf %55, %37 : vector<2x32xf32>
    %65 = arith.mulf %49, %57 : vector<2x32xf32>
    %66 = arith.addf %64, %65 : vector<2x32xf32>
    %67 = math.tanh %66 : vector<2x32xf32>
    %68 = arith.mulf %63, %67 : vector<2x32xf32>
    %69 = vector.extract_strided_slice %8 {offsets = [0, 2, 0], sizes = [2, 1, 128], strides = [1, 1, 1]} : vector<2x8x128xf32> to vector<2x1x128xf32>
    %70 = vector.shape_cast %69 : vector<2x1x128xf32> to vector<2x128xf32>
    %cst_18 = arith.constant dense<0.000000e+00> : vector<2x128xf32>
    %71 = tpu.matmul %68, %1, %cst_18 {dimension_numbers = #tpu.dot_dimension_numbers<[1], [0], [0], [1], [0, 0, 1, 1], [], []>} : vector<2x32xf32>, vector<32x128xf32>, vector<2x128xf32> -> vector<2x128xf32>
    %72 = arith.addf %70, %71 : vector<2x128xf32>
    %73 = vector.extract_strided_slice %72 {offsets = [0, 0], sizes = [2, 32], strides = [1, 1]} : vector<2x128xf32> to vector<2x32xf32>
    %74 = arith.negf %73 : vector<2x32xf32>
    %75 = math.exp %74 : vector<2x32xf32>
    %cst_19 = arith.constant 1.000000e+00 : f32
    %76 = vector.broadcast %cst_19 : f32 to vector<2x32xf32>
    %77 = arith.addf %76, %75 : vector<2x32xf32>
    %78 = arith.divf %76, %77 : vector<2x32xf32>
    %79 = vector.extract_strided_slice %72 {offsets = [0, 32], sizes = [2, 32], strides = [1, 1]} : vector<2x128xf32> to vector<2x32xf32>
    %80 = arith.negf %79 : vector<2x32xf32>
    %81 = math.exp %80 : vector<2x32xf32>
    %cst_20 = arith.constant 1.000000e+00 : f32
    %82 = vector.broadcast %cst_20 : f32 to vector<2x32xf32>
    %83 = arith.addf %82, %81 : vector<2x32xf32>
    %84 = arith.divf %82, %83 : vector<2x32xf32>
    %85 = vector.extract_strided_slice %72 {offsets = [0, 64], sizes = [2, 32], strides = [1, 1]} : vector<2x128xf32> to vector<2x32xf32>
    %86 = math.tanh %85 : vector<2x32xf32>
    %87 = vector.extract_strided_slice %72 {offsets = [0, 96], sizes = [2, 32], strides = [1, 1]} : vector<2x128xf32> to vector<2x32xf32>
    %88 = arith.negf %87 : vector<2x32xf32>
    %89 = math.exp %88 : vector<2x32xf32>
    %cst_21 = arith.constant 1.000000e+00 : f32
    %90 = vector.broadcast %cst_21 : f32 to vector<2x32xf32>
    %91 = arith.addf %90, %89 : vector<2x32xf32>
    %92 = arith.divf %90, %91 : vector<2x32xf32>
    %93 = arith.mulf %84, %66 : vector<2x32xf32>
    %94 = arith.mulf %78, %86 : vector<2x32xf32>
    %95 = arith.addf %93, %94 : vector<2x32xf32>
    %96 = math.tanh %95 : vector<2x32xf32>
    %97 = arith.mulf %92, %96 : vector<2x32xf32>
    %98 = vector.extract_strided_slice %8 {offsets = [0, 3, 0], sizes = [2, 1, 128], strides = [1, 1, 1]} : vector<2x8x128xf32> to vector<2x1x128xf32>
    %99 = vector.shape_cast %98 : vector<2x1x128xf32> to vector<2x128xf32>
    %cst_22 = arith.constant dense<0.000000e+00> : vector<2x128xf32>
    %100 = tpu.matmul %97, %1, %cst_22 {dimension_numbers = #tpu.dot_dimension_numbers<[1], [0], [0], [1], [0, 0, 1, 1], [], []>} : vector<2x32xf32>, vector<32x128xf32>, vector<2x128xf32> -> vector<2x128xf32>
    %101 = arith.addf %99, %100 : vector<2x128xf32>
    %102 = vector.extract_strided_slice %101 {offsets = [0, 0], sizes = [2, 32], strides = [1, 1]} : vector<2x128xf32> to vector<2x32xf32>
    %103 = arith.negf %102 : vector<2x32xf32>
    %104 = math.exp %103 : vector<2x32xf32>
    %cst_23 = arith.constant 1.000000e+00 : f32
    %105 = vector.broadcast %cst_23 : f32 to vector<2x32xf32>
    %106 = arith.addf %105, %104 : vector<2x32xf32>
    %107 = arith.divf %105, %106 : vector<2x32xf32>
    %108 = vector.extract_strided_slice %101 {offsets = [0, 32], sizes = [2, 32], strides = [1, 1]} : vector<2x128xf32> to vector<2x32xf32>
    %109 = arith.negf %108 : vector<2x32xf32>
    %110 = math.exp %109 : vector<2x32xf32>
    %cst_24 = arith.constant 1.000000e+00 : f32
    %111 = vector.broadcast %cst_24 : f32 to vector<2x32xf32>
    %112 = arith.addf %111, %110 : vector<2x32xf32>
    %113 = arith.divf %111, %112 : vector<2x32xf32>
    %114 = vector.extract_strided_slice %101 {offsets = [0, 64], sizes = [2, 32], strides = [1, 1]} : vector<2x128xf32> to vector<2x32xf32>
    %115 = math.tanh %114 : vector<2x32xf32>
    %116 = vector.extract_strided_slice %101 {offsets = [0, 96], sizes = [2, 32], strides = [1, 1]} : vector<2x128xf32> to vector<2x32xf32>
    %117 = arith.negf %116 : vector<2x32xf32>
    %118 = math.exp %117 : vector<2x32xf32>
    %cst_25 = arith.constant 1.000000e+00 : f32
    %119 = vector.broadcast %cst_25 : f32 to vector<2x32xf32>
    %120 = arith.addf %119, %118 : vector<2x32xf32>
    %121 = arith.divf %119, %120 : vector<2x32xf32>
    %122 = arith.mulf %113, %95 : vector<2x32xf32>
    %123 = arith.mulf %107, %115 : vector<2x32xf32>
    %124 = arith.addf %122, %123 : vector<2x32xf32>
    %125 = math.tanh %124 : vector<2x32xf32>
    %126 = arith.mulf %121, %125 : vector<2x32xf32>
    %127 = vector.extract_strided_slice %8 {offsets = [0, 4, 0], sizes = [2, 1, 128], strides = [1, 1, 1]} : vector<2x8x128xf32> to vector<2x1x128xf32>
    %128 = vector.shape_cast %127 : vector<2x1x128xf32> to vector<2x128xf32>
    %cst_26 = arith.constant dense<0.000000e+00> : vector<2x128xf32>
    %129 = tpu.matmul %126, %1, %cst_26 {dimension_numbers = #tpu.dot_dimension_numbers<[1], [0], [0], [1], [0, 0, 1, 1], [], []>} : vector<2x32xf32>, vector<32x128xf32>, vector<2x128xf32> -> vector<2x128xf32>
    %130 = arith.addf %128, %129 : vector<2x128xf32>
    %131 = vector.extract_strided_slice %130 {offsets = [0, 0], sizes = [2, 32], strides = [1, 1]} : vector<2x128xf32> to vector<2x32xf32>
    %132 = arith.negf %131 : vector<2x32xf32>
    %133 = math.exp %132 : vector<2x32xf32>
    %cst_27 = arith.constant 1.000000e+00 : f32
    %134 = vector.broadcast %cst_27 : f32 to vector<2x32xf32>
    %135 = arith.addf %134, %133 : vector<2x32xf32>
    %136 = arith.divf %134, %135 : vector<2x32xf32>
    %137 = vector.extract_strided_slice %130 {offsets = [0, 32], sizes = [2, 32], strides = [1, 1]} : vector<2x128xf32> to vector<2x32xf32>
    %138 = arith.negf %137 : vector<2x32xf32>
    %139 = math.exp %138 : vector<2x32xf32>
    %cst_28 = arith.constant 1.000000e+00 : f32
    %140 = vector.broadcast %cst_28 : f32 to vector<2x32xf32>
    %141 = arith.addf %140, %139 : vector<2x32xf32>
    %142 = arith.divf %140, %141 : vector<2x32xf32>
    %143 = vector.extract_strided_slice %130 {offsets = [0, 64], sizes = [2, 32], strides = [1, 1]} : vector<2x128xf32> to vector<2x32xf32>
    %144 = math.tanh %143 : vector<2x32xf32>
    %145 = vector.extract_strided_slice %130 {offsets = [0, 96], sizes = [2, 32], strides = [1, 1]} : vector<2x128xf32> to vector<2x32xf32>
    %146 = arith.negf %145 : vector<2x32xf32>
    %147 = math.exp %146 : vector<2x32xf32>
    %cst_29 = arith.constant 1.000000e+00 : f32
    %148 = vector.broadcast %cst_29 : f32 to vector<2x32xf32>
    %149 = arith.addf %148, %147 : vector<2x32xf32>
    %150 = arith.divf %148, %149 : vector<2x32xf32>
    %151 = arith.mulf %142, %124 : vector<2x32xf32>
    %152 = arith.mulf %136, %144 : vector<2x32xf32>
    %153 = arith.addf %151, %152 : vector<2x32xf32>
    %154 = math.tanh %153 : vector<2x32xf32>
    %155 = arith.mulf %150, %154 : vector<2x32xf32>
    %156 = vector.extract_strided_slice %8 {offsets = [0, 5, 0], sizes = [2, 1, 128], strides = [1, 1, 1]} : vector<2x8x128xf32> to vector<2x1x128xf32>
    %157 = vector.shape_cast %156 : vector<2x1x128xf32> to vector<2x128xf32>
    %cst_30 = arith.constant dense<0.000000e+00> : vector<2x128xf32>
    %158 = tpu.matmul %155, %1, %cst_30 {dimension_numbers = #tpu.dot_dimension_numbers<[1], [0], [0], [1], [0, 0, 1, 1], [], []>} : vector<2x32xf32>, vector<32x128xf32>, vector<2x128xf32> -> vector<2x128xf32>
    %159 = arith.addf %157, %158 : vector<2x128xf32>
    %160 = vector.extract_strided_slice %159 {offsets = [0, 0], sizes = [2, 32], strides = [1, 1]} : vector<2x128xf32> to vector<2x32xf32>
    %161 = arith.negf %160 : vector<2x32xf32>
    %162 = math.exp %161 : vector<2x32xf32>
    %cst_31 = arith.constant 1.000000e+00 : f32
    %163 = vector.broadcast %cst_31 : f32 to vector<2x32xf32>
    %164 = arith.addf %163, %162 : vector<2x32xf32>
    %165 = arith.divf %163, %164 : vector<2x32xf32>
    %166 = vector.extract_strided_slice %159 {offsets = [0, 32], sizes = [2, 32], strides = [1, 1]} : vector<2x128xf32> to vector<2x32xf32>
    %167 = arith.negf %166 : vector<2x32xf32>
    %168 = math.exp %167 : vector<2x32xf32>
    %cst_32 = arith.constant 1.000000e+00 : f32
    %169 = vector.broadcast %cst_32 : f32 to vector<2x32xf32>
    %170 = arith.addf %169, %168 : vector<2x32xf32>
    %171 = arith.divf %169, %170 : vector<2x32xf32>
    %172 = vector.extract_strided_slice %159 {offsets = [0, 64], sizes = [2, 32], strides = [1, 1]} : vector<2x128xf32> to vector<2x32xf32>
    %173 = math.tanh %172 : vector<2x32xf32>
    %174 = vector.extract_strided_slice %159 {offsets = [0, 96], sizes = [2, 32], strides = [1, 1]} : vector<2x128xf32> to vector<2x32xf32>
    %175 = arith.negf %174 : vector<2x32xf32>
    %176 = math.exp %175 : vector<2x32xf32>
    %cst_33 = arith.constant 1.000000e+00 : f32
    %177 = vector.broadcast %cst_33 : f32 to vector<2x32xf32>
    %178 = arith.addf %177, %176 : vector<2x32xf32>
    %179 = arith.divf %177, %178 : vector<2x32xf32>
    %180 = arith.mulf %171, %153 : vector<2x32xf32>
    %181 = arith.mulf %165, %173 : vector<2x32xf32>
    %182 = arith.addf %180, %181 : vector<2x32xf32>
    %183 = math.tanh %182 : vector<2x32xf32>
    %184 = arith.mulf %179, %183 : vector<2x32xf32>
    %185 = vector.extract_strided_slice %8 {offsets = [0, 6, 0], sizes = [2, 1, 128], strides = [1, 1, 1]} : vector<2x8x128xf32> to vector<2x1x128xf32>
    %186 = vector.shape_cast %185 : vector<2x1x128xf32> to vector<2x128xf32>
    %cst_34 = arith.constant dense<0.000000e+00> : vector<2x128xf32>
    %187 = tpu.matmul %184, %1, %cst_34 {dimension_numbers = #tpu.dot_dimension_numbers<[1], [0], [0], [1], [0, 0, 1, 1], [], []>} : vector<2x32xf32>, vector<32x128xf32>, vector<2x128xf32> -> vector<2x128xf32>
    %188 = arith.addf %186, %187 : vector<2x128xf32>
    %189 = vector.extract_strided_slice %188 {offsets = [0, 0], sizes = [2, 32], strides = [1, 1]} : vector<2x128xf32> to vector<2x32xf32>
    %190 = arith.negf %189 : vector<2x32xf32>
    %191 = math.exp %190 : vector<2x32xf32>
    %cst_35 = arith.constant 1.000000e+00 : f32
    %192 = vector.broadcast %cst_35 : f32 to vector<2x32xf32>
    %193 = arith.addf %192, %191 : vector<2x32xf32>
    %194 = arith.divf %192, %193 : vector<2x32xf32>
    %195 = vector.extract_strided_slice %188 {offsets = [0, 32], sizes = [2, 32], strides = [1, 1]} : vector<2x128xf32> to vector<2x32xf32>
    %196 = arith.negf %195 : vector<2x32xf32>
    %197 = math.exp %196 : vector<2x32xf32>
    %cst_36 = arith.constant 1.000000e+00 : f32
    %198 = vector.broadcast %cst_36 : f32 to vector<2x32xf32>
    %199 = arith.addf %198, %197 : vector<2x32xf32>
    %200 = arith.divf %198, %199 : vector<2x32xf32>
    %201 = vector.extract_strided_slice %188 {offsets = [0, 64], sizes = [2, 32], strides = [1, 1]} : vector<2x128xf32> to vector<2x32xf32>
    %202 = math.tanh %201 : vector<2x32xf32>
    %203 = vector.extract_strided_slice %188 {offsets = [0, 96], sizes = [2, 32], strides = [1, 1]} : vector<2x128xf32> to vector<2x32xf32>
    %204 = arith.negf %203 : vector<2x32xf32>
    %205 = math.exp %204 : vector<2x32xf32>
    %cst_37 = arith.constant 1.000000e+00 : f32
    %206 = vector.broadcast %cst_37 : f32 to vector<2x32xf32>
    %207 = arith.addf %206, %205 : vector<2x32xf32>
    %208 = arith.divf %206, %207 : vector<2x32xf32>
    %209 = arith.mulf %200, %182 : vector<2x32xf32>
    %210 = arith.mulf %194, %202 : vector<2x32xf32>
    %211 = arith.addf %209, %210 : vector<2x32xf32>
    %212 = math.tanh %211 : vector<2x32xf32>
    %213 = arith.mulf %208, %212 : vector<2x32xf32>
    %214 = vector.extract_strided_slice %8 {offsets = [0, 7, 0], sizes = [2, 1, 128], strides = [1, 1, 1]} : vector<2x8x128xf32> to vector<2x1x128xf32>
    %215 = vector.shape_cast %214 : vector<2x1x128xf32> to vector<2x128xf32>
    %cst_38 = arith.constant dense<0.000000e+00> : vector<2x128xf32>
    %216 = tpu.matmul %213, %1, %cst_38 {dimension_numbers = #tpu.dot_dimension_numbers<[1], [0], [0], [1], [0, 0, 1, 1], [], []>} : vector<2x32xf32>, vector<32x128xf32>, vector<2x128xf32> -> vector<2x128xf32>
    %217 = arith.addf %215, %216 : vector<2x128xf32>
    %218 = vector.extract_strided_slice %217 {offsets = [0, 0], sizes = [2, 32], strides = [1, 1]} : vector<2x128xf32> to vector<2x32xf32>
    %219 = arith.negf %218 : vector<2x32xf32>
    %220 = math.exp %219 : vector<2x32xf32>
    %cst_39 = arith.constant 1.000000e+00 : f32
    %221 = vector.broadcast %cst_39 : f32 to vector<2x32xf32>
    %222 = arith.addf %221, %220 : vector<2x32xf32>
    %223 = arith.divf %221, %222 : vector<2x32xf32>
    %224 = vector.extract_strided_slice %217 {offsets = [0, 32], sizes = [2, 32], strides = [1, 1]} : vector<2x128xf32> to vector<2x32xf32>
    %225 = arith.negf %224 : vector<2x32xf32>
    %226 = math.exp %225 : vector<2x32xf32>
    %cst_40 = arith.constant 1.000000e+00 : f32
    %227 = vector.broadcast %cst_40 : f32 to vector<2x32xf32>
    %228 = arith.addf %227, %226 : vector<2x32xf32>
    %229 = arith.divf %227, %228 : vector<2x32xf32>
    %230 = vector.extract_strided_slice %217 {offsets = [0, 64], sizes = [2, 32], strides = [1, 1]} : vector<2x128xf32> to vector<2x32xf32>
    %231 = math.tanh %230 : vector<2x32xf32>
    %232 = vector.extract_strided_slice %217 {offsets = [0, 96], sizes = [2, 32], strides = [1, 1]} : vector<2x128xf32> to vector<2x32xf32>
    %233 = arith.negf %232 : vector<2x32xf32>
    %234 = math.exp %233 : vector<2x32xf32>
    %cst_41 = arith.constant 1.000000e+00 : f32
    %235 = vector.broadcast %cst_41 : f32 to vector<2x32xf32>
    %236 = arith.addf %235, %234 : vector<2x32xf32>
    %237 = arith.divf %235, %236 : vector<2x32xf32>
    %238 = arith.mulf %229, %211 : vector<2x32xf32>
    %239 = arith.mulf %223, %231 : vector<2x32xf32>
    %240 = arith.addf %238, %239 : vector<2x32xf32>
    %241 = math.tanh %240 : vector<2x32xf32>
    %242 = arith.mulf %237, %241 : vector<2x32xf32>
    %243 = vector.shape_cast %39 : vector<2x32xf32> to vector<1x2x32xf32>
    %244 = vector.shape_cast %68 : vector<2x32xf32> to vector<1x2x32xf32>
    %245 = vector.shape_cast %97 : vector<2x32xf32> to vector<1x2x32xf32>
    %246 = vector.shape_cast %126 : vector<2x32xf32> to vector<1x2x32xf32>
    %247 = vector.shape_cast %155 : vector<2x32xf32> to vector<1x2x32xf32>
    %248 = vector.shape_cast %184 : vector<2x32xf32> to vector<1x2x32xf32>
    %249 = vector.shape_cast %213 : vector<2x32xf32> to vector<1x2x32xf32>
    %250 = vector.shape_cast %242 : vector<2x32xf32> to vector<1x2x32xf32>
    %251 = tpu.concatenate %243, %244, %245, %246, %247, %248, %249, %250 in 0 : vector<1x2x32xf32>, vector<1x2x32xf32>, vector<1x2x32xf32>, vector<1x2x32xf32>, vector<1x2x32xf32>, vector<1x2x32xf32>, vector<1x2x32xf32>, vector<1x2x32xf32> -> vector<8x2x32xf32>
    %c0_42 = arith.constant 0 : index
    %c0_43 = arith.constant 0 : index
    %252 = vector.load %arg4[%c0_42, %c0_43] : memref<32x32xf32, #tpu.memory_space<vmem>>, vector<32x32xf32>
    %c0_44 = arith.constant 0 : index
    %c0_45 = arith.constant 0 : index
    %253 = vector.load %arg5[%c0_44, %c0_45] : memref<32x32xf32, #tpu.memory_space<vmem>>, vector<32x32xf32>
    %c0_46 = arith.constant 0 : index
    %c0_47 = arith.constant 0 : index
    %254 = vector.load %arg6[%c0_46, %c0_47] : memref<1x32xf32, #tpu.memory_space<vmem>>, vector<1x32xf32>
    %255 = vector.shape_cast %251 : vector<8x2x32xf32> to vector<16x32xf32>
    %cst_48 = arith.constant dense<0.000000e+00> : vector<16x32xf32>
    %256 = tpu.matmul %255, %252, %cst_48 {dimension_numbers = #tpu.dot_dimension_numbers<[1], [0], [0], [1], [0, 0, 1, 1], [], []>} : vector<16x32xf32>, vector<32x32xf32>, vector<16x32xf32> -> vector<16x32xf32>
    %257 = vector.broadcast %254 : vector<1x32xf32> to vector<16x32xf32>
    %258 = arith.addf %256, %257 : vector<16x32xf32>
    %259 = vector.shape_cast %258 : vector<16x32xf32> to vector<8x2x32xf32>
    %cst_49 = arith.constant 0.000000e+00 : f32
    %260 = vector.broadcast %cst_49 : f32 to vector<2x32xf32>
    %261 = vector.extract_strided_slice %259 {offsets = [0, 0, 0], sizes = [1, 2, 32], strides = [1, 1, 1]} : vector<8x2x32xf32> to vector<1x2x32xf32>
    %262 = vector.shape_cast %261 : vector<1x2x32xf32> to vector<2x32xf32>
    %cst_50 = arith.constant dense<0.000000e+00> : vector<2x32xf32>
    %263 = tpu.matmul %260, %253, %cst_50 {dimension_numbers = #tpu.dot_dimension_numbers<[1], [0], [0], [1], [0, 0, 1, 1], [], []>} : vector<2x32xf32>, vector<32x32xf32>, vector<2x32xf32> -> vector<2x32xf32>
    %264 = arith.addf %262, %263 : vector<2x32xf32>
    %265 = math.tanh %264 : vector<2x32xf32>
    %266 = vector.extract_strided_slice %259 {offsets = [1, 0, 0], sizes = [1, 2, 32], strides = [1, 1, 1]} : vector<8x2x32xf32> to vector<1x2x32xf32>
    %267 = vector.shape_cast %266 : vector<1x2x32xf32> to vector<2x32xf32>
    %cst_51 = arith.constant dense<0.000000e+00> : vector<2x32xf32>
    %268 = tpu.matmul %265, %253, %cst_51 {dimension_numbers = #tpu.dot_dimension_numbers<[1], [0], [0], [1], [0, 0, 1, 1], [], []>} : vector<2x32xf32>, vector<32x32xf32>, vector<2x32xf32> -> vector<2x32xf32>
    %269 = arith.addf %267, %268 : vector<2x32xf32>
    %270 = math.tanh %269 : vector<2x32xf32>
    %271 = vector.extract_strided_slice %259 {offsets = [2, 0, 0], sizes = [1, 2, 32], strides = [1, 1, 1]} : vector<8x2x32xf32> to vector<1x2x32xf32>
    %272 = vector.shape_cast %271 : vector<1x2x32xf32> to vector<2x32xf32>
    %cst_52 = arith.constant dense<0.000000e+00> : vector<2x32xf32>
    %273 = tpu.matmul %270, %253, %cst_52 {dimension_numbers = #tpu.dot_dimension_numbers<[1], [0], [0], [1], [0, 0, 1, 1], [], []>} : vector<2x32xf32>, vector<32x32xf32>, vector<2x32xf32> -> vector<2x32xf32>
    %274 = arith.addf %272, %273 : vector<2x32xf32>
    %275 = math.tanh %274 : vector<2x32xf32>
    %276 = vector.extract_strided_slice %259 {offsets = [3, 0, 0], sizes = [1, 2, 32], strides = [1, 1, 1]} : vector<8x2x32xf32> to vector<1x2x32xf32>
    %277 = vector.shape_cast %276 : vector<1x2x32xf32> to vector<2x32xf32>
    %cst_53 = arith.constant dense<0.000000e+00> : vector<2x32xf32>
    %278 = tpu.matmul %275, %253, %cst_53 {dimension_numbers = #tpu.dot_dimension_numbers<[1], [0], [0], [1], [0, 0, 1, 1], [], []>} : vector<2x32xf32>, vector<32x32xf32>, vector<2x32xf32> -> vector<2x32xf32>
    %279 = arith.addf %277, %278 : vector<2x32xf32>
    %280 = math.tanh %279 : vector<2x32xf32>
    %281 = vector.extract_strided_slice %259 {offsets = [4, 0, 0], sizes = [1, 2, 32], strides = [1, 1, 1]} : vector<8x2x32xf32> to vector<1x2x32xf32>
    %282 = vector.shape_cast %281 : vector<1x2x32xf32> to vector<2x32xf32>
    %cst_54 = arith.constant dense<0.000000e+00> : vector<2x32xf32>
    %283 = tpu.matmul %280, %253, %cst_54 {dimension_numbers = #tpu.dot_dimension_numbers<[1], [0], [0], [1], [0, 0, 1, 1], [], []>} : vector<2x32xf32>, vector<32x32xf32>, vector<2x32xf32> -> vector<2x32xf32>
    %284 = arith.addf %282, %283 : vector<2x32xf32>
    %285 = math.tanh %284 : vector<2x32xf32>
    %286 = vector.extract_strided_slice %259 {offsets = [5, 0, 0], sizes = [1, 2, 32], strides = [1, 1, 1]} : vector<8x2x32xf32> to vector<1x2x32xf32>
    %287 = vector.shape_cast %286 : vector<1x2x32xf32> to vector<2x32xf32>
    %cst_55 = arith.constant dense<0.000000e+00> : vector<2x32xf32>
    %288 = tpu.matmul %285, %253, %cst_55 {dimension_numbers = #tpu.dot_dimension_numbers<[1], [0], [0], [1], [0, 0, 1, 1], [], []>} : vector<2x32xf32>, vector<32x32xf32>, vector<2x32xf32> -> vector<2x32xf32>
    %289 = arith.addf %287, %288 : vector<2x32xf32>
    %290 = math.tanh %289 : vector<2x32xf32>
    %291 = vector.extract_strided_slice %259 {offsets = [6, 0, 0], sizes = [1, 2, 32], strides = [1, 1, 1]} : vector<8x2x32xf32> to vector<1x2x32xf32>
    %292 = vector.shape_cast %291 : vector<1x2x32xf32> to vector<2x32xf32>
    %cst_56 = arith.constant dense<0.000000e+00> : vector<2x32xf32>
    %293 = tpu.matmul %290, %253, %cst_56 {dimension_numbers = #tpu.dot_dimension_numbers<[1], [0], [0], [1], [0, 0, 1, 1], [], []>} : vector<2x32xf32>, vector<32x32xf32>, vector<2x32xf32> -> vector<2x32xf32>
    %294 = arith.addf %292, %293 : vector<2x32xf32>
    %295 = math.tanh %294 : vector<2x32xf32>
    %296 = vector.extract_strided_slice %259 {offsets = [7, 0, 0], sizes = [1, 2, 32], strides = [1, 1, 1]} : vector<8x2x32xf32> to vector<1x2x32xf32>
    %297 = vector.shape_cast %296 : vector<1x2x32xf32> to vector<2x32xf32>
    %cst_57 = arith.constant dense<0.000000e+00> : vector<2x32xf32>
    %298 = tpu.matmul %295, %253, %cst_57 {dimension_numbers = #tpu.dot_dimension_numbers<[1], [0], [0], [1], [0, 0, 1, 1], [], []>} : vector<2x32xf32>, vector<32x32xf32>, vector<2x32xf32> -> vector<2x32xf32>
    %299 = arith.addf %297, %298 : vector<2x32xf32>
    %300 = math.tanh %299 : vector<2x32xf32>
    %301 = vector.shape_cast %265 : vector<2x32xf32> to vector<1x2x32xf32>
    %302 = vector.shape_cast %270 : vector<2x32xf32> to vector<1x2x32xf32>
    %303 = vector.shape_cast %275 : vector<2x32xf32> to vector<1x2x32xf32>
    %304 = vector.shape_cast %280 : vector<2x32xf32> to vector<1x2x32xf32>
    %305 = vector.shape_cast %285 : vector<2x32xf32> to vector<1x2x32xf32>
    %306 = vector.shape_cast %290 : vector<2x32xf32> to vector<1x2x32xf32>
    %307 = vector.shape_cast %295 : vector<2x32xf32> to vector<1x2x32xf32>
    %308 = vector.shape_cast %300 : vector<2x32xf32> to vector<1x2x32xf32>
    %309 = tpu.concatenate %301, %302, %303, %304, %305, %306, %307, %308 in 0 : vector<1x2x32xf32>, vector<1x2x32xf32>, vector<1x2x32xf32>, vector<1x2x32xf32>, vector<1x2x32xf32>, vector<1x2x32xf32>, vector<1x2x32xf32>, vector<1x2x32xf32> -> vector<8x2x32xf32>
    %c0_58 = arith.constant 0 : index
    %c0_59 = arith.constant 0 : index
    %310 = vector.load %arg7[%c0_58, %c0_59] : memref<32x32xf32, #tpu.memory_space<vmem>>, vector<32x32xf32>
    %c0_60 = arith.constant 0 : index
    %c0_61 = arith.constant 0 : index
    %311 = vector.load %arg8[%c0_60, %c0_61] : memref<32x32xf32, #tpu.memory_space<vmem>>, vector<32x32xf32>
    %c0_62 = arith.constant 0 : index
    %c0_63 = arith.constant 0 : index
    %312 = vector.load %arg9[%c0_62, %c0_63] : memref<1x32xf32, #tpu.memory_space<vmem>>, vector<1x32xf32>
    %313 = vector.shape_cast %309 : vector<8x2x32xf32> to vector<16x32xf32>
    %cst_64 = arith.constant dense<0.000000e+00> : vector<16x32xf32>
    %314 = tpu.matmul %313, %310, %cst_64 {dimension_numbers = #tpu.dot_dimension_numbers<[1], [0], [0], [1], [0, 0, 1, 1], [], []>} : vector<16x32xf32>, vector<32x32xf32>, vector<16x32xf32> -> vector<16x32xf32>
    %315 = vector.broadcast %312 : vector<1x32xf32> to vector<16x32xf32>
    %316 = arith.addf %314, %315 : vector<16x32xf32>
    %317 = vector.shape_cast %316 : vector<16x32xf32> to vector<8x2x32xf32>
    %cst_65 = arith.constant 0.000000e+00 : f32
    %318 = vector.broadcast %cst_65 : f32 to vector<2x32xf32>
    %319 = vector.extract_strided_slice %317 {offsets = [0, 0, 0], sizes = [1, 2, 32], strides = [1, 1, 1]} : vector<8x2x32xf32> to vector<1x2x32xf32>
    %320 = vector.shape_cast %319 : vector<1x2x32xf32> to vector<2x32xf32>
    %cst_66 = arith.constant dense<0.000000e+00> : vector<2x32xf32>
    %321 = tpu.matmul %318, %311, %cst_66 {dimension_numbers = #tpu.dot_dimension_numbers<[1], [0], [0], [1], [0, 0, 1, 1], [], []>} : vector<2x32xf32>, vector<32x32xf32>, vector<2x32xf32> -> vector<2x32xf32>
    %322 = arith.addf %320, %321 : vector<2x32xf32>
    %323 = math.tanh %322 : vector<2x32xf32>
    %324 = vector.extract_strided_slice %317 {offsets = [1, 0, 0], sizes = [1, 2, 32], strides = [1, 1, 1]} : vector<8x2x32xf32> to vector<1x2x32xf32>
    %325 = vector.shape_cast %324 : vector<1x2x32xf32> to vector<2x32xf32>
    %cst_67 = arith.constant dense<0.000000e+00> : vector<2x32xf32>
    %326 = tpu.matmul %323, %311, %cst_67 {dimension_numbers = #tpu.dot_dimension_numbers<[1], [0], [0], [1], [0, 0, 1, 1], [], []>} : vector<2x32xf32>, vector<32x32xf32>, vector<2x32xf32> -> vector<2x32xf32>
    %327 = arith.addf %325, %326 : vector<2x32xf32>
    %328 = math.tanh %327 : vector<2x32xf32>
    %329 = vector.extract_strided_slice %317 {offsets = [2, 0, 0], sizes = [1, 2, 32], strides = [1, 1, 1]} : vector<8x2x32xf32> to vector<1x2x32xf32>
    %330 = vector.shape_cast %329 : vector<1x2x32xf32> to vector<2x32xf32>
    %cst_68 = arith.constant dense<0.000000e+00> : vector<2x32xf32>
    %331 = tpu.matmul %328, %311, %cst_68 {dimension_numbers = #tpu.dot_dimension_numbers<[1], [0], [0], [1], [0, 0, 1, 1], [], []>} : vector<2x32xf32>, vector<32x32xf32>, vector<2x32xf32> -> vector<2x32xf32>
    %332 = arith.addf %330, %331 : vector<2x32xf32>
    %333 = math.tanh %332 : vector<2x32xf32>
    %334 = vector.extract_strided_slice %317 {offsets = [3, 0, 0], sizes = [1, 2, 32], strides = [1, 1, 1]} : vector<8x2x32xf32> to vector<1x2x32xf32>
    %335 = vector.shape_cast %334 : vector<1x2x32xf32> to vector<2x32xf32>
    %cst_69 = arith.constant dense<0.000000e+00> : vector<2x32xf32>
    %336 = tpu.matmul %333, %311, %cst_69 {dimension_numbers = #tpu.dot_dimension_numbers<[1], [0], [0], [1], [0, 0, 1, 1], [], []>} : vector<2x32xf32>, vector<32x32xf32>, vector<2x32xf32> -> vector<2x32xf32>
    %337 = arith.addf %335, %336 : vector<2x32xf32>
    %338 = math.tanh %337 : vector<2x32xf32>
    %339 = vector.extract_strided_slice %317 {offsets = [4, 0, 0], sizes = [1, 2, 32], strides = [1, 1, 1]} : vector<8x2x32xf32> to vector<1x2x32xf32>
    %340 = vector.shape_cast %339 : vector<1x2x32xf32> to vector<2x32xf32>
    %cst_70 = arith.constant dense<0.000000e+00> : vector<2x32xf32>
    %341 = tpu.matmul %338, %311, %cst_70 {dimension_numbers = #tpu.dot_dimension_numbers<[1], [0], [0], [1], [0, 0, 1, 1], [], []>} : vector<2x32xf32>, vector<32x32xf32>, vector<2x32xf32> -> vector<2x32xf32>
    %342 = arith.addf %340, %341 : vector<2x32xf32>
    %343 = math.tanh %342 : vector<2x32xf32>
    %344 = vector.extract_strided_slice %317 {offsets = [5, 0, 0], sizes = [1, 2, 32], strides = [1, 1, 1]} : vector<8x2x32xf32> to vector<1x2x32xf32>
    %345 = vector.shape_cast %344 : vector<1x2x32xf32> to vector<2x32xf32>
    %cst_71 = arith.constant dense<0.000000e+00> : vector<2x32xf32>
    %346 = tpu.matmul %343, %311, %cst_71 {dimension_numbers = #tpu.dot_dimension_numbers<[1], [0], [0], [1], [0, 0, 1, 1], [], []>} : vector<2x32xf32>, vector<32x32xf32>, vector<2x32xf32> -> vector<2x32xf32>
    %347 = arith.addf %345, %346 : vector<2x32xf32>
    %348 = math.tanh %347 : vector<2x32xf32>
    %349 = vector.extract_strided_slice %317 {offsets = [6, 0, 0], sizes = [1, 2, 32], strides = [1, 1, 1]} : vector<8x2x32xf32> to vector<1x2x32xf32>
    %350 = vector.shape_cast %349 : vector<1x2x32xf32> to vector<2x32xf32>
    %cst_72 = arith.constant dense<0.000000e+00> : vector<2x32xf32>
    %351 = tpu.matmul %348, %311, %cst_72 {dimension_numbers = #tpu.dot_dimension_numbers<[1], [0], [0], [1], [0, 0, 1, 1], [], []>} : vector<2x32xf32>, vector<32x32xf32>, vector<2x32xf32> -> vector<2x32xf32>
    %352 = arith.addf %350, %351 : vector<2x32xf32>
    %353 = math.tanh %352 : vector<2x32xf32>
    %354 = vector.extract_strided_slice %317 {offsets = [7, 0, 0], sizes = [1, 2, 32], strides = [1, 1, 1]} : vector<8x2x32xf32> to vector<1x2x32xf32>
    %355 = vector.shape_cast %354 : vector<1x2x32xf32> to vector<2x32xf32>
    %cst_73 = arith.constant dense<0.000000e+00> : vector<2x32xf32>
    %356 = tpu.matmul %353, %311, %cst_73 {dimension_numbers = #tpu.dot_dimension_numbers<[1], [0], [0], [1], [0, 0, 1, 1], [], []>} : vector<2x32xf32>, vector<32x32xf32>, vector<2x32xf32> -> vector<2x32xf32>
    %357 = arith.addf %355, %356 : vector<2x32xf32>
    %358 = math.tanh %357 : vector<2x32xf32>
    %c0_74 = arith.constant 0 : index
    %c0_75 = arith.constant 0 : index
    %359 = vector.load %arg10[%c0_74, %c0_75] : memref<32x1xf32, #tpu.memory_space<vmem>>, vector<32x1xf32>
    %cst_76 = arith.constant dense<0.000000e+00> : vector<2x1xf32>
    %360 = tpu.matmul %358, %359, %cst_76 {dimension_numbers = #tpu.dot_dimension_numbers<[1], [0], [0], [1], [0, 0, 1, 1], [], []>} : vector<2x32xf32>, vector<32x1xf32>, vector<2x1xf32> -> vector<2x1xf32>
    %c0_77 = arith.constant 0 : index
    %c0_78 = arith.constant 0 : index
    %361 = vector.load %arg11[%c0_77, %c0_78] : memref<1x1xf32, #tpu.memory_space<vmem>>, vector<1x1xf32>
    %362 = vector.broadcast %361 : vector<1x1xf32> to vector<2x1xf32>
    %363 = arith.addf %360, %362 : vector<2x1xf32>
    %c0_79 = arith.constant 0 : index
    %c0_80 = arith.constant 0 : index
    %364 = vector.load %arg12[%c0_79, %c0_80] : memref<2x1xf32, #tpu.memory_space<vmem>>, vector<2x1xf32>
    tpu.vector_store %arg12[%c0_79, %c0_80], %363 {strides = array<i32>} : memref<2x1xf32, #tpu.memory_space<vmem>>, vector<2x1xf32>,
    return
  }
}

</mosaic_0001>

<llo_original>
// kernel: lstm_multirnn_forward.1
$region0: #{lstm_multirnn_forward.1}
  #allocation0 [shape = 'u32[]', space=smem, size = 0x4, offset = 0x4, fixed_abs, tag = 'smem constant byte address 0x4 - core index']
  #allocation1 [shape = 'u32[144,128]{1,0:T(1,128)}', space=vmem, size = 0x12000, scoped, tag = 'internal scratch']
  #allocation2 [shape = 'f32[1,1]{1,0:T(1,128)S(1)}', space=vmem, size = 0x200, scoped, tag = 'scoped memory for lstm_multirnn_forward.1']
  %s0 = inlined_call_operand.hbm [shape: f32[2,8,16], index: 0, kind: input, shape index: {}]
  %s1 = inlined_call_operand.hbm [shape: f32[16,128], index: 1, kind: input, shape index: {}]
  %s2 = inlined_call_operand.vmem [shape: f32[32,128], index: 2, kind: input, shape index: {}]
  %s3 = inlined_call_operand.vmem [shape: f32[1,128], index: 3, kind: input, shape index: {}]
  %s4 = inlined_call_operand.hbm [shape: f32[32,32], index: 4, kind: input, shape index: {}]
  %s5 = inlined_call_operand.hbm [shape: f32[32,32], index: 5, kind: input, shape index: {}]
  %s6 = inlined_call_operand.vmem [shape: f32[1,32], index: 6, kind: input, shape index: {}]
  %s7 = inlined_call_operand.vmem [shape: f32[32,32], index: 7, kind: input, shape index: {}]
  %s8 = inlined_call_operand.hbm [shape: f32[32,32], index: 8, kind: input, shape index: {}]
  %s9 = inlined_call_operand.vmem [shape: f32[1,32], index: 9, kind: input, shape index: {}]
  %s10 = inlined_call_operand.vmem [shape: f32[32,1], index: 10, kind: input, shape index: {}]
  %s11 = inlined_call_operand.<no memory space> [shape: f32[1,1], index: 11, kind: input, shape index: {}]
  %s12 = inlined_call_operand.vmem [shape: f32[2,1], index: 12, kind: output, shape index: {}]
  %s13 = sld [smem:[#allocation0]]
  $region78: #{lstm_multirnn_forward.1} parent=0
    _
  %s15 = ssub.s32 1, %s13
  %s16 = scalar_select 0, %s15, %s13
  %v17 = vstv %s11
  %18 = vst [vmem:[#allocation2] sm:$0x1] %v17
  $region1: #{lstm_multirnn_forward.1} parent=0
    #allocation3 [shape = 'u8[8192]{0}', space=vmem, size = 0x2000, scoped, tag = 'input window, operand 0, single buffered']
    #allocation4 [shape = 's32[1]{0}', space=sflag, size = 0x4, scoped, tag = 'scoped memory for lstm_multirnn_forward.1']
    #allocation5 [shape = 'u8[8192]{0}', space=vmem, size = 0x2000, scoped, tag = 'input window, operand 1, single buffered']
    #allocation6 [shape = 's32[1]{0}', space=sflag, size = 0x4, scoped, tag = 'scoped memory for lstm_multirnn_forward.1']
    #allocation7 [shape = 'u8[16384]{0}', space=vmem, size = 0x4000, scoped, tag = 'input window, operand 4, single buffered']
    #allocation8 [shape = 'u8[16384]{0}', space=vmem, size = 0x4000, scoped, tag = 'input window, operand 5, single buffered']
    #allocation9 [shape = 's32[1]{0}', space=sflag, size = 0x4, scoped, tag = 'scoped memory for lstm_multirnn_forward.1']
    #allocation10 [shape = 'u8[16384]{0}', space=vmem, size = 0x4000, scoped, tag = 'input window, operand 8, single buffered']
    %19 = vsyncpa [#allocation4], 0
    %20 = vsyncpa [#allocation6], 0
    %21 = vsyncpa [#allocation9], 0
    // Predicated region
    $region2: #{lstm_multirnn_forward.1} parent=1 // pred_check
      _
    $region3: #{lstm_multirnn_forward.1} parent=1 // pred_check_branch
      %23 = sbr.rel (0) target = $region5
    $region4: #{lstm_multirnn_forward.1} parent=1 // pred_region
      %s25 = ssub.s32 256, 256
      %26 = vsyncadd [#allocation4], %s25
      %s27 = sshll.u32 [#allocation3], 4
      %s28 = int_to_ptr.vmem [resolvable:$true] %s27
      %33 = dma.hbm_to_vmem [thread:$0]  %s0, 256, %s28, [#allocation4], 128, 128, 8
    $region5: #{lstm_multirnn_forward.1} parent=1 // pred_fallthru
      _
    // Predicated region
    $region6: #{lstm_multirnn_forward.1} parent=1 // pred_check
      _
    $region7: #{lstm_multirnn_forward.1} parent=1 // pred_check_branch
      %35 = sbr.rel (0) target = $region9
    $region8: #{lstm_multirnn_forward.1} parent=1 // pred_region
      %s37 = ssub.s32 256, 256
      %38 = vsyncadd [#allocation6], %s37
      %s39 = sshll.u32 [#allocation5], 4
      %s40 = int_to_ptr.vmem [resolvable:$true] %s39
      %45 = dma.hbm_to_vmem [thread:$0]  %s1, 256, %s40, [#allocation6], 128, 128, 8
    $region9: #{lstm_multirnn_forward.1} parent=1 // pred_fallthru
      _
    // Predicated region
    $region10: #{lstm_multirnn_forward.1} parent=1 // pred_check
      _
    $region11: #{lstm_multirnn_forward.1} parent=1 // pred_check_branch
      %47 = sbr.rel (0) target = $region13
    $region12: #{lstm_multirnn_forward.1} parent=1 // pred_region
      _
    $region13: #{lstm_multirnn_forward.1} parent=1 // pred_fallthru
      _
    // Predicated region
    $region14: #{lstm_multirnn_forward.1} parent=1 // pred_check
      _
    $region15: #{lstm_multirnn_forward.1} parent=1 // pred_check_branch
      %49 = sbr.rel (0) target = $region17
    $region16: #{lstm_multirnn_forward.1} parent=1 // pred_region
      _
    $region17: #{lstm_multirnn_forward.1} parent=1 // pred_fallthru
      _
    // Predicated region
    $region18: #{lstm_multirnn_forward.1} parent=1 // pred_check
      _
    $region19: #{lstm_multirnn_forward.1} parent=1 // pred_check_branch
      %51 = sbr.rel (0) target = $region21
    $region20: #{lstm_multirnn_forward.1} parent=1 // pred_region
      %s53 = ssub.s32 512, 512
      %54 = vsyncadd [#allocation6], %s53
      %s55 = sshll.u32 [#allocation7], 4
      %s56 = int_to_ptr.vmem [resolvable:$true] %s55
      %61 = dma.hbm_to_vmem [thread:$0]  %s4, 512, %s56, [#allocation6], 128, 128, 8
    $region21: #{lstm_multirnn_forward.1} parent=1 // pred_fallthru
      _
    // Predicated region
    $region22: #{lstm_multirnn_forward.1} parent=1 // pred_check
      _
    $region23: #{lstm_multirnn_forward.1} parent=1 // pred_check_branch
      %63 = sbr.rel (0) target = $region25
    $region24: #{lstm_multirnn_forward.1} parent=1 // pred_region
      %s65 = ssub.s32 512, 512
      %66 = vsyncadd [#allocation9], %s65
      %s67 = sshll.u32 [#allocation8], 4
      %s68 = int_to_ptr.vmem [resolvable:$true] %s67
      %73 = dma.hbm_to_vmem [thread:$0]  %s5, 512, %s68, [#allocation9], 128, 128, 8
    $region25: #{lstm_multirnn_forward.1} parent=1 // pred_fallthru
      _
    // Predicated region
    $region26: #{lstm_multirnn_forward.1} parent=1 // pred_check
      _
    $region27: #{lstm_multirnn_forward.1} parent=1 // pred_check_branch
      %75 = sbr.rel (0) target = $region29
    $region28: #{lstm_multirnn_forward.1} parent=1 // pred_region
      _
    $region29: #{lstm_multirnn_forward.1} parent=1 // pred_fallthru
      _
    // Predicated region
    $region30: #{lstm_multirnn_forward.1} parent=1 // pred_check
      _
    $region31: #{lstm_multirnn_forward.1} parent=1 // pred_check_branch
      %77 = sbr.rel (0) target = $region33
    $region32: #{lstm_multirnn_forward.1} parent=1 // pred_region
      _
    $region33: #{lstm_multirnn_forward.1} parent=1 // pred_fallthru
      _
    // Predicated region
    $region34: #{lstm_multirnn_forward.1} parent=1 // pred_check
      _
    $region35: #{lstm_multirnn_forward.1} parent=1 // pred_check_branch
      %79 = sbr.rel (0) target = $region37
    $region36: #{lstm_multirnn_forward.1} parent=1 // pred_region
      %s81 = ssub.s32 512, 512
      %82 = vsyncadd [#allocation9], %s81
      %s83 = sshll.u32 [#allocation10], 4
      %s84 = int_to_ptr.vmem [resolvable:$true] %s83
      %89 = dma.hbm_to_vmem [thread:$0]  %s8, 512, %s84, [#allocation9], 128, 128, 8
    $region37: #{lstm_multirnn_forward.1} parent=1 // pred_fallthru
      _
    // Predicated region
    $region38: #{lstm_multirnn_forward.1} parent=1 // pred_check
      _
    $region39: #{lstm_multirnn_forward.1} parent=1 // pred_check_branch
      %91 = sbr.rel (0) target = $region41
    $region40: #{lstm_multirnn_forward.1} parent=1 // pred_region
      _
    $region41: #{lstm_multirnn_forward.1} parent=1 // pred_fallthru
      _
    // Predicated region
    $region42: #{lstm_multirnn_forward.1} parent=1 // pred_check
      _
    $region43: #{lstm_multirnn_forward.1} parent=1 // pred_check_branch
      %93 = sbr.rel (0) target = $region45
    $region44: #{lstm_multirnn_forward.1} parent=1 // pred_region
      _
    $region45: #{lstm_multirnn_forward.1} parent=1 // pred_fallthru
      _
    // Predicated region
    $region46: #{lstm_multirnn_forward.1} parent=1 // pred_check
      _
    $region47: #{lstm_multirnn_forward.1} parent=1 // pred_check_branch
      %95 = sbr.rel (0) target = $region49
    $region48: #{lstm_multirnn_forward.1} parent=1 // pred_region
      _
    $region49: #{lstm_multirnn_forward.1} parent=1 // pred_fallthru
      _
    // Predicated region
    $region50: #{lstm_multirnn_forward.1} parent=1 // pred_check
      _
    $region51: #{lstm_multirnn_forward.1} parent=1 // pred_check_branch
      %97 = sbr.rel (0) target = $region53
    $region52: #{lstm_multirnn_forward.1} parent=1 // pred_region
      %98 = dma.done [#allocation4], 256
    $region53: #{lstm_multirnn_forward.1} parent=1 // pred_fallthru
      _
    // Predicated region
    $region54: #{lstm_multirnn_forward.1} parent=1 // pred_check
      _
    $region55: #{lstm_multirnn_forward.1} parent=1 // pred_check_branch
      %100 = sbr.rel (0) target = $region57
    $region56: #{lstm_multirnn_forward.1} parent=1 // pred_region
      %101 = dma.done [#allocation6], 256
    $region57: #{lstm_multirnn_forward.1} parent=1 // pred_fallthru
      _
    // Predicated region
    $region58: #{lstm_multirnn_forward.1} parent=1 // pred_check
      _
    $region59: #{lstm_multirnn_forward.1} parent=1 // pred_check_branch
      %103 = sbr.rel (0) target = $region61
    $region60: #{lstm_multirnn_forward.1} parent=1 // pred_region
      %104 = dma.done [#allocation6], 512
    $region61: #{lstm_multirnn_forward.1} parent=1 // pred_fallthru
      _
    // Predicated region
    $region62: #{lstm_multirnn_forward.1} parent=1 // pred_check
      _
    $region63: #{lstm_multirnn_forward.1} parent=1 // pred_check_branch
      %106 = sbr.rel (0) target = $region65
    $region64: #{lstm_multirnn_forward.1} parent=1 // pred_region
      %107 = dma.done [#allocation9], 512
    $region65: #{lstm_multirnn_forward.1} parent=1 // pred_fallthru
      _
    // Predicated region
    $region66: #{lstm_multirnn_forward.1} parent=1 // pred_check
      _
    $region67: #{lstm_multirnn_forward.1} parent=1 // pred_check_branch
      %109 = sbr.rel (0) target = $region69
    $region68: #{lstm_multirnn_forward.1} parent=1 // pred_region
      %110 = dma.done [#allocation9], 512
    $region69: #{lstm_multirnn_forward.1} parent=1 // pred_fallthru
      _
    %v111 = vld [vmem:[#allocation5] sm:$0xff]
    %v112 = vld [vmem:[#allocation5 + $0x8] sm:$0xff]
    %v113 = vld [vmem:[%s2] sm:$0xff]
    %v114 = vld [vmem:[%s2 + $0x8] sm:$0xff]
    %v115 = vld [vmem:[%s2 + $0x10] sm:$0xff]
    %v116 = vld [vmem:[%s2 + $0x18] sm:$0xff]
    %v117 = vld [vmem:[%s3] sm:$0x1]
    %v118 = vld [vmem:[#allocation3] sm:$0xff]
    %v119 = vld [vmem:[#allocation3 + $0x8] sm:$0xff]
    %v121 = vlaneseq
    %v122 = vshrl.u32 %v121, 7
    %v123 = vsub.s32 0, %v122
    %v124 = vrot.slane %v117, %v123
    %vm126 = vcmask 130048
    %v128 = vsel %vm126, %v118, 0
    %v131 = vsel %vm126, %v119, 0
    %133 = vmatprep.subr.mxu0 0.0
    %134 = vmatpush1.msra.mxu0 %v111
    %135 = vmatprep.subr.mxu0 0.0
    %136 = vmatpush1.msra.mxu0 %v112
    %137 = vmatprep.subr.mxu0 0.0
    %138 = vmatpush1.msra.mxu0 0.0
    %139 = vmatprep.subr.mxu0 0.0
    %140 = vmatpush1.msra.mxu0 0.0
    %141 = vmatprep.subr.mxu0 0.0
    %142 = vmatpush1.msra.mxu0 0.0
    %143 = vmatprep.subr.mxu0 0.0
    %144 = vmatpush1.msra.mxu0 0.0
    %145 = vmatprep.subr.mxu0 0.0
    %146 = vmatpush1.msra.mxu0 0.0
    %147 = vmatprep.subr.mxu0 0.0
    %148 = vmatpush1.msra.mxu0 0.0
    %149 = vmatprep.subr.mxu0 0.0
    %150 = vmatpush1.msra.mxu0 0.0
    %151 = vmatprep.subr.mxu0 0.0
    %152 = vmatpush1.msra.mxu0 0.0
    %153 = vmatprep.subr.mxu0 0.0
    %154 = vmatpush1.msra.mxu0 0.0
    %155 = vmatprep.subr.mxu0 0.0
    %156 = vmatpush1.msra.mxu0 0.0
    %157 = vmatprep.subr.mxu0 0.0
    %158 = vmatpush1.msra.mxu0 0.0
    %159 = vmatprep.subr.mxu0 0.0
    %160 = vmatpush1.msra.mxu0 0.0
    %161 = vmatprep.subr.mxu0 0.0
    %162 = vmatpush1.msra.mxu0 0.0
    %163 = vmatprep.subr.mxu0 0.0
    %164 = vmatpush1.msra.mxu0 0.0
    %165 = vmatprep.subr.mxu0 0.0
    %166 = vmatpush1.msra.mxu0 0.0
    %167 = vmatprep.subr.mxu0 0.0
    %168 = vmatpush1.msra.mxu0 0.0
    %169 = vmatprep.subr.mxu0 0.0
    %170 = vmatpush1.msra.mxu0 0.0
    %171 = vmatprep.subr.mxu0 0.0
    %172 = vmatpush1.msra.mxu0 0.0
    %173 = vmatprep.subr.mxu0 0.0
    %174 = vmatpush1.msra.mxu0 0.0
    %175 = vmatprep.subr.mxu0 0.0
    %176 = vmatpush1.msra.mxu0 0.0
    %177 = vmatprep.subr.mxu0 0.0
    %178 = vmatpush1.msra.mxu0 0.0
    %179 = vmatprep.subr.mxu0 0.0
    %180 = vmatpush1.msra.mxu0 0.0
    %181 = vmatprep.subr.mxu0 0.0
    %182 = vmatpush1.msra.mxu0 0.0
    %183 = vmatprep.subr.mxu0 0.0
    %184 = vmatpush1.msra.mxu0 0.0
    %185 = vmatprep.subr.mxu0 0.0
    %186 = vmatpush1.msra.mxu0 0.0
    %187 = vmatprep.subr.mxu0 0.0
    %188 = vmatpush1.msra.mxu0 0.0
    %189 = vmatprep.subr.mxu0 0.0
    %190 = vmatpush1.msra.mxu0 0.0
    %191 = vmatprep.subr.mxu0 0.0
    %192 = vmatpush1.msra.mxu0 0.0
    %193 = vmatprep.subr.mxu0 0.0
    %194 = vmatpush1.msra.mxu0 0.0
    %195 = vmatprep.subr.mxu0 0.0
    %196 = vmatpush1.msra.mxu0 0.0
    %197 = vmatprep.mubr.f32.mxu0 0.0
    %198 = vmatmul.mubr.f32.gmra.mrb[0].mxu0 %v128
    %v199 = vpop.f32.mrb[0].mxu0
    %v200 = vadd.f32 %v124, %v199
    %v201 = vpop.f32.mrb[0].mxu0
    %202 = vmatprep.mubr.f32.mxu0 0.0
    %203 = vmatmul.mubr.f32.gmra.mrb[0].mxu0 %v131
    %v204 = vpop.f32.mrb[0].mxu0
    %v205 = vadd.f32 %v124, %v204
    %v206 = vpop.f32.mrb[0].mxu0
    %207 = vdwg.mxu0
    %vm208 = vcmask 261120
    %v210 = vsel %vm208, 0.0, 0
    %212 = vmatprep.subr.mxu0 0.0
    %213 = vmatpush1.msra.mxu0 %v113
    %214 = vmatprep.subr.mxu0 0.0
    %215 = vmatpush1.msra.mxu0 %v114
    %216 = vmatprep.subr.mxu0 0.0
    %217 = vmatpush1.msra.mxu0 %v115
    %218 = vmatprep.subr.mxu0 0.0
    %219 = vmatpush1.msra.mxu0 %v116
    %220 = vmatprep.subr.mxu0 0.0
    %221 = vmatpush1.msra.mxu0 0.0
    %222 = vmatprep.subr.mxu0 0.0
    %223 = vmatpush1.msra.mxu0 0.0
    %224 = vmatprep.subr.mxu0 0.0
    %225 = vmatpush1.msra.mxu0 0.0
    %226 = vmatprep.subr.mxu0 0.0
    %227 = vmatpush1.msra.mxu0 0.0
    %228 = vmatprep.subr.mxu0 0.0
    %229 = vmatpush1.msra.mxu0 0.0
    %230 = vmatprep.subr.mxu0 0.0
    %231 = vmatpush1.msra.mxu0 0.0
    %232 = vmatprep.subr.mxu0 0.0
    %233 = vmatpush1.msra.mxu0 0.0
    %234 = vmatprep.subr.mxu0 0.0
    %235 = vmatpush1.msra.mxu0 0.0
    %236 = vmatprep.subr.mxu0 0.0
    %237 = vmatpush1.msra.mxu0 0.0
    %238 = vmatprep.subr.mxu0 0.0
    %239 = vmatpush1.msra.mxu0 0.0
    %240 = vmatprep.subr.mxu0 0.0
    %241 = vmatpush1.msra.mxu0 0.0
    %242 = vmatprep.subr.mxu0 0.0
    %243 = vmatpush1.msra.mxu0 0.0
    %244 = vmatprep.subr.mxu0 0.0
    %245 = vmatpush1.msra.mxu0 0.0
    %246 = vmatprep.subr.mxu0 0.0
    %247 = vmatpush1.msra.mxu0 0.0
    %248 = vmatprep.subr.mxu0 0.0
    %249 = vmatpush1.msra.mxu0 0.0
    %250 = vmatprep.subr.mxu0 0.0
    %251 = vmatpush1.msra.mxu0 0.0
    %252 = vmatprep.subr.mxu0 0.0
    %253 = vmatpush1.msra.mxu0 0.0
    %254 = vmatprep.subr.mxu0 0.0
    %255 = vmatpush1.msra.mxu0 0.0
    %256 = vmatprep.subr.mxu0 0.0
    %257 = vmatpush1.msra.mxu0 0.0
    %258 = vmatprep.subr.mxu0 0.0
    %259 = vmatpush1.msra.mxu0 0.0
    %260 = vmatprep.subr.mxu0 0.0
    %261 = vmatpush1.msra.mxu0 0.0
    %262 = vmatprep.subr.mxu0 0.0
    %263 = vmatpush1.msra.mxu0 0.0
    %264 = vmatprep.subr.mxu0 0.0
    %265 = vmatpush1.msra.mxu0 0.0
    %266 = vmatprep.subr.mxu0 0.0
    %267 = vmatpush1.msra.mxu0 0.0
    %268 = vmatprep.subr.mxu0 0.0
    %269 = vmatpush1.msra.mxu0 0.0
    %270 = vmatprep.subr.mxu0 0.0
    %271 = vmatpush1.msra.mxu0 0.0
    %272 = vmatprep.subr.mxu0 0.0
    %273 = vmatpush1.msra.mxu0 0.0
    %274 = vmatprep.subr.mxu0 0.0
    %275 = vmatpush1.msra.mxu0 0.0
    %276 = vmatprep.mubr.f32.mxu0 0.0
    %277 = vmatmul.mubr.f32.gmra.mrb[0].mxu0 %v210
    %v278 = vpop.f32.mrb[0].mxu0
    %v279 = vadd.f32 0.0, %v278
    %v280 = vpop.f32.mrb[0].mxu0
    %281 = vdwg.mxu0
    %v283 = vrot.slane %v279, 1
    %v286 = vadd.f32 %v200, %v279
    %v287 = vadd.f32 %v205, %v283
    %v288 = vxor.u32 %v286, 2147483648
    %v289 = vxor.u32 %v287, 2147483648
    %v290 = vmul.f32 %v288, 1.442695
    %v291 = vpow.pop %v290
    %v292 = vmul.f32 %v289, 1.442695
    %v293 = vpow.pop %v292
    %v294 = vadd.f32 %v291, 1.0
    %v295 = vadd.f32 %v293, 1.0
    %v296 = vrcp.pop %v294
    %v297 = vmul.f32 1.0, %v296
    %v298 = vrcp.pop %v295
    %v299 = vmul.f32 1.0, %v298
    %v300 = vtanh.pop %v286
    %v301 = vtanh.pop %v287
    %v302 = vmul.f32 %v297, 0.0
    %v303 = vmul.f32 %v299, 0.0
    %306 = vrot.lane.b32.xlu0 %v300, 64
    %v307 = vpop.permute.xlu0 %306
    %308 = vrot.lane.b32.xlu0 %v301, 64
    %v309 = vpop.permute.xlu0 %308
    %v312 = vmul.f32 %v297, %v307
    %v313 = vmul.f32 %v299, %v309
    %316 = vrot.lane.b32.xlu0 %v312, 32
    %v317 = vpop.permute.xlu0 %316
    %318 = vrot.lane.b32.xlu0 %v313, 32
    %v319 = vpop.permute.xlu0 %318
    %v322 = vadd.f32 %v302, %v317
    %v323 = vadd.f32 %v303, %v319
    %v324 = vtanh.pop %v322
    %v325 = vtanh.pop %v323
    %328 = vrot.lane.b32.xlu0 %v324, 64
    %v329 = vpop.permute.xlu0 %328
    %330 = vrot.lane.b32.xlu0 %v325, 64
    %v331 = vpop.permute.xlu0 %330
    %v334 = vmul.f32 %v297, %v329
    %v335 = vmul.f32 %v299, %v331
    %v338 = vrot.slane %v335, 7
    %vm339 = vcmask 1041409
    %v340 = vsel %vm339, %v338, %v334
    %341 = vrot.lane.b32.xlu0 %v340, 32
    %v342 = vpop.permute.xlu0 %341
    %v343 = vsel %vm208, %v342, 0
    %345 = vmatprep.subr.mxu0 0.0
    %346 = vmatpush1.msra.mxu0 %v113
    %347 = vmatprep.subr.mxu0 0.0
    %348 = vmatpush1.msra.mxu0 %v114
    %349 = vmatprep.subr.mxu0 0.0
    %350 = vmatpush1.msra.mxu0 %v115
    %351 = vmatprep.subr.mxu0 0.0
    %352 = vmatpush1.msra.mxu0 %v116
    %353 = vmatprep.subr.mxu0 0.0
    %354 = vmatpush1.msra.mxu0 0.0
    %355 = vmatprep.subr.mxu0 0.0
    %356 = vmatpush1.msra.mxu0 0.0
    %357 = vmatprep.subr.mxu0 0.0
    %358 = vmatpush1.msra.mxu0 0.0
    %359 = vmatprep.subr.mxu0 0.0
    %360 = vmatpush1.msra.mxu0 0.0
    %361 = vmatprep.subr.mxu0 0.0
    %362 = vmatpush1.msra.mxu0 0.0
    %363 = vmatprep.subr.mxu0 0.0
    %364 = vmatpush1.msra.mxu0 0.0
    %365 = vmatprep.subr.mxu0 0.0
    %366 = vmatpush1.msra.mxu0 0.0
    %367 = vmatprep.subr.mxu0 0.0
    %368 = vmatpush1.msra.mxu0 0.0
    %369 = vmatprep.subr.mxu0 0.0
    %370 = vmatpush1.msra.mxu0 0.0
    %371 = vmatprep.subr.mxu0 0.0
    %372 = vmatpush1.msra.mxu0 0.0
    %373 = vmatprep.subr.mxu0 0.0
    %374 = vmatpush1.msra.mxu0 0.0
    %375 = vmatprep.subr.mxu0 0.0
    %376 = vmatpush1.msra.mxu0 0.0
    %377 = vmatprep.subr.mxu0 0.0
    %378 = vmatpush1.msra.mxu0 0.0
    %379 = vmatprep.subr.mxu0 0.0
    %380 = vmatpush1.msra.mxu0 0.0
    %381 = vmatprep.subr.mxu0 0.0
    %382 = vmatpush1.msra.mxu0 0.0
    %383 = vmatprep.subr.mxu0 0.0
    %384 = vmatpush1.msra.mxu0 0.0
    %385 = vmatprep.subr.mxu0 0.0
    %386 = vmatpush1.msra.mxu0 0.0
    %387 = vmatprep.subr.mxu0 0.0
    %388 = vmatpush1.msra.mxu0 0.0
    %389 = vmatprep.subr.mxu0 0.0
    %390 = vmatpush1.msra.mxu0 0.0
    %391 = vmatprep.subr.mxu0 0.0
    %392 = vmatpush1.msra.mxu0 0.0
    %393 = vmatprep.subr.mxu0 0.0
    %394 = vmatpush1.msra.mxu0 0.0
    %395 = vmatprep.subr.mxu0 0.0
    %396 = vmatpush1.msra.mxu0 0.0
    %397 = vmatprep.subr.mxu0 0.0
    %398 = vmatpush1.msra.mxu0 0.0
    %399 = vmatprep.subr.mxu0 0.0
    %400 = vmatpush1.msra.mxu0 0.0
    %401 = vmatprep.subr.mxu0 0.0
    %402 = vmatpush1.msra.mxu0 0.0
    %403 = vmatprep.subr.mxu0 0.0
    %404 = vmatpush1.msra.mxu0 0.0
    %405 = vmatprep.subr.mxu0 0.0
    %406 = vmatpush1.msra.mxu0 0.0
    %407 = vmatprep.subr.mxu0 0.0
    %408 = vmatpush1.msra.mxu0 0.0
    %409 = vmatprep.mubr.f32.mxu0 0.0
    %410 = vmatmul.mubr.f32.gmra.mrb[0].mxu0 %v343
    %v411 = vpop.f32.mrb[0].mxu0
    %v412 = vadd.f32 0.0, %v411
    %v413 = vpop.f32.mrb[0].mxu0
    %414 = vdwg.mxu0
    %v416 = vrot.slane %v412, 7
    %v419 = vadd.f32 %v200, %v416
    %v420 = vadd.f32 %v205, %v412
    %v421 = vxor.u32 %v419, 2147483648
    %v422 = vxor.u32 %v420, 2147483648
    %v423 = vmul.f32 %v421, 1.442695
    %v424 = vpow.pop %v423
    %v425 = vmul.f32 %v422, 1.442695
    %v426 = vpow.pop %v425
    %v427 = vadd.f32 %v424, 1.0
    %v428 = vadd.f32 %v426, 1.0
    %v429 = vrcp.pop %v427
    %v430 = vmul.f32 1.0, %v429
    %v431 = vrcp.pop %v428
    %v432 = vmul.f32 1.0, %v431
    %v433 = vtanh.pop %v419
    %v434 = vtanh.pop %v420
    %v437 = vrot.slane %v322, 7
    %v438 = vrot.slane %v323, 7
    %v441 = vmul.f32 %v430, %v437
    %v442 = vmul.f32 %v432, %v438
    %445 = vrot.lane.b32.xlu0 %v433, 64
    %v446 = vpop.permute.xlu0 %445
    %447 = vrot.lane.b32.xlu0 %v434, 64
    %v448 = vpop.permute.xlu0 %447
    %v451 = vmul.f32 %v430, %v446
    %v452 = vmul.f32 %v432, %v448
    %455 = vrot.lane.b32.xlu0 %v451, 32
    %v456 = vpop.permute.xlu0 %455
    %457 = vrot.lane.b32.xlu0 %v452, 32
    %v458 = vpop.permute.xlu0 %457
    %v461 = vadd.f32 %v441, %v456
    %v462 = vadd.f32 %v442, %v458
    %v463 = vtanh.pop %v461
    %v464 = vtanh.pop %v462
    %467 = vrot.lane.b32.xlu0 %v463, 64
    %v468 = vpop.permute.xlu0 %467
    %469 = vrot.lane.b32.xlu0 %v464, 64
    %v470 = vpop.permute.xlu0 %469
    %v473 = vmul.f32 %v430, %v468
    %v474 = vmul.f32 %v432, %v470
    %v477 = vrot.slane %v473, 1
    %v478 = vsel %vm339, %v474, %v477
    %479 = vrot.lane.b32.xlu0 %v478, 32
    %v480 = vpop.permute.xlu0 %479
    %v481 = vsel %vm208, %v480, 0
    %483 = vmatprep.subr.mxu0 0.0
    %484 = vmatpush1.msra.mxu0 %v113
    %485 = vmatprep.subr.mxu0 0.0
    %486 = vmatpush1.msra.mxu0 %v114
    %487 = vmatprep.subr.mxu0 0.0
    %488 = vmatpush1.msra.mxu0 %v115
    %489 = vmatprep.subr.mxu0 0.0
    %490 = vmatpush1.msra.mxu0 %v116
    %491 = vmatprep.subr.mxu0 0.0
    %492 = vmatpush1.msra.mxu0 0.0
    %493 = vmatprep.subr.mxu0 0.0
    %494 = vmatpush1.msra.mxu0 0.0
    %495 = vmatprep.subr.mxu0 0.0
    %496 = vmatpush1.msra.mxu0 0.0
    %497 = vmatprep.subr.mxu0 0.0
    %498 = vmatpush1.msra.mxu0 0.0
    %499 = vmatprep.subr.mxu0 0.0
    %500 = vmatpush1.msra.mxu0 0.0
    %501 = vmatprep.subr.mxu0 0.0
    %502 = vmatpush1.msra.mxu0 0.0
    %503 = vmatprep.subr.mxu0 0.0
    %504 = vmatpush1.msra.mxu0 0.0
    %505 = vmatprep.subr.mxu0 0.0
    %506 = vmatpush1.msra.mxu0 0.0
    %507 = vmatprep.subr.mxu0 0.0
    %508 = vmatpush1.msra.mxu0 0.0
    %509 = vmatprep.subr.mxu0 0.0
    %510 = vmatpush1.msra.mxu0 0.0
    %511 = vmatprep.subr.mxu0 0.0
    %512 = vmatpush1.msra.mxu0 0.0
    %513 = vmatprep.subr.mxu0 0.0
    %514 = vmatpush1.msra.mxu0 0.0
    %515 = vmatprep.subr.mxu0 0.0
    %516 = vmatpush1.msra.mxu0 0.0
    %517 = vmatprep.subr.mxu0 0.0
    %518 = vmatpush1.msra.mxu0 0.0
    %519 = vmatprep.subr.mxu0 0.0
    %520 = vmatpush1.msra.mxu0 0.0
    %521 = vmatprep.subr.mxu0 0.0
    %522 = vmatpush1.msra.mxu0 0.0
    %523 = vmatprep.subr.mxu0 0.0
    %524 = vmatpush1.msra.mxu0 0.0
    %525 = vmatprep.subr.mxu0 0.0
    %526 = vmatpush1.msra.mxu0 0.0
    %527 = vmatprep.subr.mxu0 0.0
    %528 = vmatpush1.msra.mxu0 0.0
    %529 = vmatprep.subr.mxu0 0.0
    %530 = vmatpush1.msra.mxu0 0.0
    %531 = vmatprep.subr.mxu0 0.0
    %532 = vmatpush1.msra.mxu0 0.0
    %533 = vmatprep.subr.mxu0 0.0
    %534 = vmatpush1.msra.mxu0 0.0
    %535 = vmatprep.subr.mxu0 0.0
    %536 = vmatpush1.msra.mxu0 0.0
    %537 = vmatprep.subr.mxu0 0.0
    %538 = vmatpush1.msra.mxu0 0.0
    %539 = vmatprep.subr.mxu0 0.0
    %540 = vmatpush1.msra.mxu0 0.0
    %541 = vmatprep.subr.mxu0 0.0
    %542 = vmatpush1.msra.mxu0 0.0
    %543 = vmatprep.subr.mxu0 0.0
    %544 = vmatpush1.msra.mxu0 0.0
    %545 = vmatprep.subr.mxu0 0.0
    %546 = vmatpush1.msra.mxu0 0.0
    %547 = vmatprep.mubr.f32.mxu0 0.0
    %548 = vmatmul.mubr.f32.gmra.mrb[0].mxu0 %v481
    %v549 = vpop.f32.mrb[0].mxu0
    %v550 = vadd.f32 0.0, %v549
    %v551 = vpop.f32.mrb[0].mxu0
    %552 = vdwg.mxu0
    %v554 = vrot.slane %v550, 6
    %v555 = vrot.slane %v550, 7
    %v558 = vadd.f32 %v200, %v554
    %v559 = vadd.f32 %v205, %v555
    %v560 = vxor.u32 %v558, 2147483648
    %v561 = vxor.u32 %v559, 2147483648
    %v562 = vmul.f32 %v560, 1.442695
    %v563 = vpow.pop %v562
    %v564 = vmul.f32 %v561, 1.442695
    %v565 = vpow.pop %v564
    %v566 = vadd.f32 %v563, 1.0
    %v567 = vadd.f32 %v565, 1.0
    %v568 = vrcp.pop %v566
    %v569 = vmul.f32 1.0, %v568
    %v570 = vrcp.pop %v567
    %v571 = vmul.f32 1.0, %v570
    %v572 = vtanh.pop %v558
    %v573 = vtanh.pop %v559
    %v576 = vrot.slane %v461, 7
    %v577 = vrot.slane %v462, 7
    %v580 = vmul.f32 %v569, %v576
    %v581 = vmul.f32 %v571, %v577
    %584 = vrot.lane.b32.xlu0 %v572, 64
    %v585 = vpop.permute.xlu0 %584
    %586 = vrot.lane.b32.xlu0 %v573, 64
    %v587 = vpop.permute.xlu0 %586
    %v590 = vmul.f32 %v569, %v585
    %v591 = vmul.f32 %v571, %v587
    %594 = vrot.lane.b32.xlu0 %v590, 32
    %v595 = vpop.permute.xlu0 %594
    %596 = vrot.lane.b32.xlu0 %v591, 32
    %v597 = vpop.permute.xlu0 %596
    %v600 = vadd.f32 %v580, %v595
    %v601 = vadd.f32 %v581, %v597
    %v602 = vtanh.pop %v600
    %v603 = vtanh.pop %v601
    %606 = vrot.lane.b32.xlu0 %v602, 64
    %v607 = vpop.permute.xlu0 %606
    %608 = vrot.lane.b32.xlu0 %v603, 64
    %v609 = vpop.permute.xlu0 %608
    %v612 = vmul.f32 %v569, %v607
    %v613 = vmul.f32 %v571, %v609
    %v616 = vrot.slane %v612, 2
    %v617 = vrot.slane %v613, 1
    %v618 = vsel %vm339, %v617, %v616
    %619 = vrot.lane.b32.xlu0 %v618, 32
    %v620 = vpop.permute.xlu0 %619
    %v621 = vsel %vm208, %v620, 0
    %623 = vmatprep.subr.mxu0 0.0
    %624 = vmatpush1.msra.mxu0 %v113
    %625 = vmatprep.subr.mxu0 0.0
    %626 = vmatpush1.msra.mxu0 %v114
    %627 = vmatprep.subr.mxu0 0.0
    %628 = vmatpush1.msra.mxu0 %v115
    %629 = vmatprep.subr.mxu0 0.0
    %630 = vmatpush1.msra.mxu0 %v116
    %631 = vmatprep.subr.mxu0 0.0
    %632 = vmatpush1.msra.mxu0 0.0
    %633 = vmatprep.subr.mxu0 0.0
    %634 = vmatpush1.msra.mxu0 0.0
    %635 = vmatprep.subr.mxu0 0.0
    %636 = vmatpush1.msra.mxu0 0.0
    %637 = vmatprep.subr.mxu0 0.0
    %638 = vmatpush1.msra.mxu0 0.0
    %639 = vmatprep.subr.mxu0 0.0
    %640 = vmatpush1.msra.mxu0 0.0
    %641 = vmatprep.subr.mxu0 0.0
    %642 = vmatpush1.msra.mxu0 0.0
    %643 = vmatprep.subr.mxu0 0.0
    %644 = vmatpush1.msra.mxu0 0.0
    %645 = vmatprep.subr.mxu0 0.0
    %646 = vmatpush1.msra.mxu0 0.0
    %647 = vmatprep.subr.mxu0 0.0
    %648 = vmatpush1.msra.mxu0 0.0
    %649 = vmatprep.subr.mxu0 0.0
    %650 = vmatpush1.msra.mxu0 0.0
    %651 = vmatprep.subr.mxu0 0.0
    %652 = vmatpush1.msra.mxu0 0.0
    %653 = vmatprep.subr.mxu0 0.0
    %654 = vmatpush1.msra.mxu0 0.0
    %655 = vmatprep.subr.mxu0 0.0
    %656 = vmatpush1.msra.mxu0 0.0
    %657 = vmatprep.subr.mxu0 0.0
    %658 = vmatpush1.msra.mxu0 0.0
    %659 = vmatprep.subr.mxu0 0.0
    %660 = vmatpush1.msra.mxu0 0.0
    %661 = vmatprep.subr.mxu0 0.0
    %662 = vmatpush1.msra.mxu0 0.0
    %663 = vmatprep.subr.mxu0 0.0
    %664 = vmatpush1.msra.mxu0 0.0
    %665 = vmatprep.subr.mxu0 0.0
    %666 = vmatpush1.msra.mxu0 0.0
    %667 = vmatprep.subr.mxu0 0.0
    %668 = vmatpush1.msra.mxu0 0.0
    %669 = vmatprep.subr.mxu0 0.0
    %670 = vmatpush1.msra.mxu0 0.0
    %671 = vmatprep.subr.mxu0 0.0
    %672 = vmatpush1.msra.mxu0 0.0
    %673 = vmatprep.subr.mxu0 0.0
    %674 = vmatpush1.msra.mxu0 0.0
    %675 = vmatprep.subr.mxu0 0.0
    %676 = vmatpush1.msra.mxu0 0.0
    %677 = vmatprep.subr.mxu0 0.0
    %678 = vmatpush1.msra.mxu0 0.0
    %679 = vmatprep.subr.mxu0 0.0
    %680 = vmatpush1.msra.mxu0 0.0
    %681 = vmatprep.subr.mxu0 0.0
    %682 = vmatpush1.msra.mxu0 0.0
    %683 = vmatprep.subr.mxu0 0.0
    %684 = vmatpush1.msra.mxu0 0.0
    %685 = vmatprep.subr.mxu0 0.0
    %686 = vmatpush1.msra.mxu0 0.0
    %687 = vmatprep.mubr.f32.mxu0 0.0
    %688 = vmatmul.mubr.f32.gmra.mrb[0].mxu0 %v621
    %v689 = vpop.f32.mrb[0].mxu0
    %v690 = vadd.f32 0.0, %v689
    %v691 = vpop.f32.mrb[0].mxu0
    %692 = vdwg.mxu0
    %v694 = vrot.slane %v690, 5
    %v695 = vrot.slane %v690, 6
    %v698 = vadd.f32 %v200, %v694
    %v699 = vadd.f32 %v205, %v695
    %v700 = vxor.u32 %v698, 2147483648
    %v701 = vxor.u32 %v699, 2147483648
    %v702 = vmul.f32 %v700, 1.442695
    %v703 = vpow.pop %v702
    %v704 = vmul.f32 %v701, 1.442695
    %v705 = vpow.pop %v704
    %v706 = vadd.f32 %v703, 1.0
    %v707 = vadd.f32 %v705, 1.0
    %v708 = vrcp.pop %v706
    %v709 = vmul.f32 1.0, %v708
    %v710 = vrcp.pop %v707
    %v711 = vmul.f32 1.0, %v710
    %v712 = vtanh.pop %v698
    %v713 = vtanh.pop %v699
    %v716 = vrot.slane %v600, 7
    %v717 = vrot.slane %v601, 7
    %v720 = vmul.f32 %v709, %v716
    %v721 = vmul.f32 %v711, %v717
    %724 = vrot.lane.b32.xlu0 %v712, 64
    %v725 = vpop.permute.xlu0 %724
    %726 = vrot.lane.b32.xlu0 %v713, 64
    %v727 = vpop.permute.xlu0 %726
    %v730 = vmul.f32 %v709, %v725
    %v731 = vmul.f32 %v711, %v727
    %734 = vrot.lane.b32.xlu0 %v730, 32
    %v735 = vpop.permute.xlu0 %734
    %736 = vrot.lane.b32.xlu0 %v731, 32
    %v737 = vpop.permute.xlu0 %736
    %v740 = vadd.f32 %v720, %v735
    %v741 = vadd.f32 %v721, %v737
    %v742 = vtanh.pop %v740
    %v743 = vtanh.pop %v741
    %746 = vrot.lane.b32.xlu0 %v742, 64
    %v747 = vpop.permute.xlu0 %746
    %748 = vrot.lane.b32.xlu0 %v743, 64
    %v749 = vpop.permute.xlu0 %748
    %v752 = vmul.f32 %v709, %v747
    %v753 = vmul.f32 %v711, %v749
    %v756 = vrot.slane %v752, 3
    %v757 = vrot.slane %v753, 2
    %v758 = vsel %vm339, %v757, %v756
    %759 = vrot.lane.b32.xlu0 %v758, 32
    %v760 = vpop.permute.xlu0 %759
    %v761 = vsel %vm208, %v760, 0
    %763 = vmatprep.subr.mxu0 0.0
    %764 = vmatpush1.msra.mxu0 %v113
    %765 = vmatprep.subr.mxu0 0.0
    %766 = vmatpush1.msra.mxu0 %v114
    %767 = vmatprep.subr.mxu0 0.0
    %768 = vmatpush1.msra.mxu0 %v115
    %769 = vmatprep.subr.mxu0 0.0
    %770 = vmatpush1.msra.mxu0 %v116
    %771 = vmatprep.subr.mxu0 0.0
    %772 = vmatpush1.msra.mxu0 0.0
    %773 = vmatprep.subr.mxu0 0.0
    %774 = vmatpush1.msra.mxu0 0.0
    %775 = vmatprep.subr.mxu0 0.0
    %776 = vmatpush1.msra.mxu0 0.0
    %777 = vmatprep.subr.mxu0 0.0
    %778 = vmatpush1.msra.mxu0 0.0
    %779 = vmatprep.subr.mxu0 0.0
    %780 = vmatpush1.msra.mxu0 0.0
    %781 = vmatprep.subr.mxu0 0.0
    %782 = vmatpush1.msra.mxu0 0.0
    %783 = vmatprep.subr.mxu0 0.0
    %784 = vmatpush1.msra.mxu0 0.0
    %785 = vmatprep.subr.mxu0 0.0
    %786 = vmatpush1.msra.mxu0 0.0
    %787 = vmatprep.subr.mxu0 0.0
    %788 = vmatpush1.msra.mxu0 0.0
    %789 = vmatprep.subr.mxu0 0.0
    %790 = vmatpush1.msra.mxu0 0.0
    %791 = vmatprep.subr.mxu0 0.0
    %792 = vmatpush1.msra.mxu0 0.0
    %793 = vmatprep.subr.mxu0 0.0
    %794 = vmatpush1.msra.mxu0 0.0
    %795 = vmatprep.subr.mxu0 0.0
    %796 = vmatpush1.msra.mxu0 0.0
    %797 = vmatprep.subr.mxu0 0.0
    %798 = vmatpush1.msra.mxu0 0.0
    %799 = vmatprep.subr.mxu0 0.0
    %800 = vmatpush1.msra.mxu0 0.0
    %801 = vmatprep.subr.mxu0 0.0
    %802 = vmatpush1.msra.mxu0 0.0
    %803 = vmatprep.subr.mxu0 0.0
    %804 = vmatpush1.msra.mxu0 0.0
    %805 = vmatprep.subr.mxu0 0.0
    %806 = vmatpush1.msra.mxu0 0.0
    %807 = vmatprep.subr.mxu0 0.0
    %808 = vmatpush1.msra.mxu0 0.0
    %809 = vmatprep.subr.mxu0 0.0
    %810 = vmatpush1.msra.mxu0 0.0
    %811 = vmatprep.subr.mxu0 0.0
    %812 = vmatpush1.msra.mxu0 0.0
    %813 = vmatprep.subr.mxu0 0.0
    %814 = vmatpush1.msra.mxu0 0.0
    %815 = vmatprep.subr.mxu0 0.0
    %816 = vmatpush1.msra.mxu0 0.0
    %817 = vmatprep.subr.mxu0 0.0
    %818 = vmatpush1.msra.mxu0 0.0
    %819 = vmatprep.subr.mxu0 0.0
    %820 = vmatpush1.msra.mxu0 0.0
    %821 = vmatprep.subr.mxu0 0.0
    %822 = vmatpush1.msra.mxu0 0.0
    %823 = vmatprep.subr.mxu0 0.0
    %824 = vmatpush1.msra.mxu0 0.0
    %825 = vmatprep.subr.mxu0 0.0
    %826 = vmatpush1.msra.mxu0 0.0
    %827 = vmatprep.mubr.f32.mxu0 0.0
    %828 = vmatmul.mubr.f32.gmra.mrb[0].mxu0 %v761
    %v829 = vpop.f32.mrb[0].mxu0
    %v830 = vadd.f32 0.0, %v829
    %v831 = vpop.f32.mrb[0].mxu0
    %832 = vdwg.mxu0
    %v834 = vrot.slane %v830, 4
    %v835 = vrot.slane %v830, 5
    %v838 = vadd.f32 %v200, %v834
    %v839 = vadd.f32 %v205, %v835
    %v840 = vxor.u32 %v838, 2147483648
    %v841 = vxor.u32 %v839, 2147483648
    %v842 = vmul.f32 %v840, 1.442695
    %v843 = vpow.pop %v842
    %v844 = vmul.f32 %v841, 1.442695
    %v845 = vpow.pop %v844
    %v846 = vadd.f32 %v843, 1.0
    %v847 = vadd.f32 %v845, 1.0
    %v848 = vrcp.pop %v846
    %v849 = vmul.f32 1.0, %v848
    %v850 = vrcp.pop %v847
    %v851 = vmul.f32 1.0, %v850
    %v852 = vtanh.pop %v838
    %v853 = vtanh.pop %v839
    %v856 = vrot.slane %v740, 7
    %v857 = vrot.slane %v741, 7
    %v860 = vmul.f32 %v849, %v856
    %v861 = vmul.f32 %v851, %v857
    %864 = vrot.lane.b32.xlu0 %v852, 64
    %v865 = vpop.permute.xlu0 %864
    %866 = vrot.lane.b32.xlu0 %v853, 64
    %v867 = vpop.permute.xlu0 %866
    %v870 = vmul.f32 %v849, %v865
    %v871 = vmul.f32 %v851, %v867
    %874 = vrot.lane.b32.xlu0 %v870, 32
    %v875 = vpop.permute.xlu0 %874
    %876 = vrot.lane.b32.xlu0 %v871, 32
    %v877 = vpop.permute.xlu0 %876
    %v880 = vadd.f32 %v860, %v875
    %v881 = vadd.f32 %v861, %v877
    %v882 = vtanh.pop %v880
    %v883 = vtanh.pop %v881
    %886 = vrot.lane.b32.xlu0 %v882, 64
    %v887 = vpop.permute.xlu0 %886
    %888 = vrot.lane.b32.xlu0 %v883, 64
    %v889 = vpop.permute.xlu0 %888
    %v892 = vmul.f32 %v849, %v887
    %v893 = vmul.f32 %v851, %v889
    %v896 = vrot.slane %v892, 4
    %v897 = vrot.slane %v893, 3
    %v898 = vsel %vm339, %v897, %v896
    %899 = vrot.lane.b32.xlu0 %v898, 32
    %v900 = vpop.permute.xlu0 %899
    %v901 = vsel %vm208, %v900, 0
    %903 = vmatprep.subr.mxu0 0.0
    %904 = vmatpush1.msra.mxu0 %v113
    %905 = vmatprep.subr.mxu0 0.0
    %906 = vmatpush1.msra.mxu0 %v114
    %907 = vmatprep.subr.mxu0 0.0
    %908 = vmatpush1.msra.mxu0 %v115
    %909 = vmatprep.subr.mxu0 0.0
    %910 = vmatpush1.msra.mxu0 %v116
    %911 = vmatprep.subr.mxu0 0.0
    %912 = vmatpush1.msra.mxu0 0.0
    %913 = vmatprep.subr.mxu0 0.0
    %914 = vmatpush1.msra.mxu0 0.0
    %915 = vmatprep.subr.mxu0 0.0
    %916 = vmatpush1.msra.mxu0 0.0
    %917 = vmatprep.subr.mxu0 0.0
    %918 = vmatpush1.msra.mxu0 0.0
    %919 = vmatprep.subr.mxu0 0.0
    %920 = vmatpush1.msra.mxu0 0.0
    %921 = vmatprep.subr.mxu0 0.0
    %922 = vmatpush1.msra.mxu0 0.0
    %923 = vmatprep.subr.mxu0 0.0
    %924 = vmatpush1.msra.mxu0 0.0
    %925 = vmatprep.subr.mxu0 0.0
    %926 = vmatpush1.msra.mxu0 0.0
    %927 = vmatprep.subr.mxu0 0.0
    %928 = vmatpush1.msra.mxu0 0.0
    %929 = vmatprep.subr.mxu0 0.0
    %930 = vmatpush1.msra.mxu0 0.0
    %931 = vmatprep.subr.mxu0 0.0
    %932 = vmatpush1.msra.mxu0 0.0
    %933 = vmatprep.subr.mxu0 0.0
    %934 = vmatpush1.msra.mxu0 0.0
    %935 = vmatprep.subr.mxu0 0.0
    %936 = vmatpush1.msra.mxu0 0.0
    %937 = vmatprep.subr.mxu0 0.0
    %938 = vmatpush1.msra.mxu0 0.0
    %939 = vmatprep.subr.mxu0 0.0
    %940 = vmatpush1.msra.mxu0 0.0
    %941 = vmatprep.subr.mxu0 0.0
    %942 = vmatpush1.msra.mxu0 0.0
    %943 = vmatprep.subr.mxu0 0.0
    %944 = vmatpush1.msra.mxu0 0.0
    %945 = vmatprep.subr.mxu0 0.0
    %946 = vmatpush1.msra.mxu0 0.0
    %947 = vmatprep.subr.mxu0 0.0
    %948 = vmatpush1.msra.mxu0 0.0
    %949 = vmatprep.subr.mxu0 0.0
    %950 = vmatpush1.msra.mxu0 0.0
    %951 = vmatprep.subr.mxu0 0.0
    %952 = vmatpush1.msra.mxu0 0.0
    %953 = vmatprep.subr.mxu0 0.0
    %954 = vmatpush1.msra.mxu0 0.0
    %955 = vmatprep.subr.mxu0 0.0
    %956 = vmatpush1.msra.mxu0 0.0
    %957 = vmatprep.subr.mxu0 0.0
    %958 = vmatpush1.msra.mxu0 0.0
    %959 = vmatprep.subr.mxu0 0.0
    %960 = vmatpush1.msra.mxu0 0.0
    %961 = vmatprep.subr.mxu0 0.0
    %962 = vmatpush1.msra.mxu0 0.0
    %963 = vmatprep.subr.mxu0 0.0
    %964 = vmatpush1.msra.mxu0 0.0
    %965 = vmatprep.subr.mxu0 0.0
    %966 = vmatpush1.msra.mxu0 0.0
    %967 = vmatprep.mubr.f32.mxu0 0.0
    %968 = vmatmul.mubr.f32.gmra.mrb[0].mxu0 %v901
    %v969 = vpop.f32.mrb[0].mxu0
    %v970 = vadd.f32 0.0, %v969
    %v971 = vpop.f32.mrb[0].mxu0
    %972 = vdwg.mxu0
    %v974 = vrot.slane %v970, 3
    %v975 = vrot.slane %v970, 4
    %v978 = vadd.f32 %v200, %v974
    %v979 = vadd.f32 %v205, %v975
    %v980 = vxor.u32 %v978, 2147483648
    %v981 = vxor.u32 %v979, 2147483648
    %v982 = vmul.f32 %v980, 1.442695
    %v983 = vpow.pop %v982
    %v984 = vmul.f32 %v981, 1.442695
    %v985 = vpow.pop %v984
    %v986 = vadd.f32 %v983, 1.0
    %v987 = vadd.f32 %v985, 1.0
    %v988 = vrcp.pop %v986
    %v989 = vmul.f32 1.0, %v988
    %v990 = vrcp.pop %v987
    %v991 = vmul.f32 1.0, %v990
    %v992 = vtanh.pop %v978
    %v993 = vtanh.pop %v979
    %v996 = vrot.slane %v880, 7
    %v997 = vrot.slane %v881, 7
    %v1000 = vmul.f32 %v989, %v996
    %v1001 = vmul.f32 %v991, %v997
    %1004 = vrot.lane.b32.xlu0 %v992, 64
    %v1005 = vpop.permute.xlu0 %1004
    %1006 = vrot.lane.b32.xlu0 %v993, 64
    %v1007 = vpop.permute.xlu0 %1006
    %v1010 = vmul.f32 %v989, %v1005
    %v1011 = vmul.f32 %v991, %v1007
    %1014 = vrot.lane.b32.xlu0 %v1010, 32
    %v1015 = vpop.permute.xlu0 %1014
    %1016 = vrot.lane.b32.xlu0 %v1011, 32
    %v1017 = vpop.permute.xlu0 %1016
    %v1020 = vadd.f32 %v1000, %v1015
    %v1021 = vadd.f32 %v1001, %v1017
    %v1022 = vtanh.pop %v1020
    %v1023 = vtanh.pop %v1021
    %1026 = vrot.lane.b32.xlu0 %v1022, 64
    %v1027 = vpop.permute.xlu0 %1026
    %1028 = vrot.lane.b32.xlu0 %v1023, 64
    %v1029 = vpop.permute.xlu0 %1028
    %v1032 = vmul.f32 %v989, %v1027
    %v1033 = vmul.f32 %v991, %v1029
    %v1036 = vrot.slane %v1032, 5
    %v1037 = vrot.slane %v1033, 4
    %v1038 = vsel %vm339, %v1037, %v1036
    %1039 = vrot.lane.b32.xlu0 %v1038, 32
    %v1040 = vpop.permute.xlu0 %1039
    %v1041 = vsel %vm208, %v1040, 0
    %1043 = vmatprep.subr.mxu0 0.0
    %1044 = vmatpush1.msra.mxu0 %v113
    %1045 = vmatprep.subr.mxu0 0.0
    %1046 = vmatpush1.msra.mxu0 %v114
    %1047 = vmatprep.subr.mxu0 0.0
    %1048 = vmatpush1.msra.mxu0 %v115
    %1049 = vmatprep.subr.mxu0 0.0
    %1050 = vmatpush1.msra.mxu0 %v116
    %1051 = vmatprep.subr.mxu0 0.0
    %1052 = vmatpush1.msra.mxu0 0.0
    %1053 = vmatprep.subr.mxu0 0.0
    %1054 = vmatpush1.msra.mxu0 0.0
    %1055 = vmatprep.subr.mxu0 0.0
    %1056 = vmatpush1.msra.mxu0 0.0
    %1057 = vmatprep.subr.mxu0 0.0
    %1058 = vmatpush1.msra.mxu0 0.0
    %1059 = vmatprep.subr.mxu0 0.0
    %1060 = vmatpush1.msra.mxu0 0.0
    %1061 = vmatprep.subr.mxu0 0.0
    %1062 = vmatpush1.msra.mxu0 0.0
    %1063 = vmatprep.subr.mxu0 0.0
    %1064 = vmatpush1.msra.mxu0 0.0
    %1065 = vmatprep.subr.mxu0 0.0
    %1066 = vmatpush1.msra.mxu0 0.0
    %1067 = vmatprep.subr.mxu0 0.0
    %1068 = vmatpush1.msra.mxu0 0.0
    %1069 = vmatprep.subr.mxu0 0.0
    %1070 = vmatpush1.msra.mxu0 0.0
    %1071 = vmatprep.subr.mxu0 0.0
    %1072 = vmatpush1.msra.mxu0 0.0
    %1073 = vmatprep.subr.mxu0 0.0
    %1074 = vmatpush1.msra.mxu0 0.0
    %1075 = vmatprep.subr.mxu0 0.0
    %1076 = vmatpush1.msra.mxu0 0.0
    %1077 = vmatprep.subr.mxu0 0.0
    %1078 = vmatpush1.msra.mxu0 0.0
    %1079 = vmatprep.subr.mxu0 0.0
    %1080 = vmatpush1.msra.mxu0 0.0
    %1081 = vmatprep.subr.mxu0 0.0
    %1082 = vmatpush1.msra.mxu0 0.0
    %1083 = vmatprep.subr.mxu0 0.0
    %1084 = vmatpush1.msra.mxu0 0.0
    %1085 = vmatprep.subr.mxu0 0.0
    %1086 = vmatpush1.msra.mxu0 0.0
    %1087 = vmatprep.subr.mxu0 0.0
    %1088 = vmatpush1.msra.mxu0 0.0
    %1089 = vmatprep.subr.mxu0 0.0
    %1090 = vmatpush1.msra.mxu0 0.0
    %1091 = vmatprep.subr.mxu0 0.0
    %1092 = vmatpush1.msra.mxu0 0.0
    %1093 = vmatprep.subr.mxu0 0.0
    %1094 = vmatpush1.msra.mxu0 0.0
    %1095 = vmatprep.subr.mxu0 0.0
    %1096 = vmatpush1.msra.mxu0 0.0
    %1097 = vmatprep.subr.mxu0 0.0
    %1098 = vmatpush1.msra.mxu0 0.0
    %1099 = vmatprep.subr.mxu0 0.0
    %1100 = vmatpush1.msra.mxu0 0.0
    %1101 = vmatprep.subr.mxu0 0.0
    %1102 = vmatpush1.msra.mxu0 0.0
    %1103 = vmatprep.subr.mxu0 0.0
    %1104 = vmatpush1.msra.mxu0 0.0
    %1105 = vmatprep.subr.mxu0 0.0
    %1106 = vmatpush1.msra.mxu0 0.0
    %1107 = vmatprep.mubr.f32.mxu0 0.0
    %1108 = vmatmul.mubr.f32.gmra.mrb[0].mxu0 %v1041
    %v1109 = vpop.f32.mrb[0].mxu0
    %v1110 = vadd.f32 0.0, %v1109
    %v1111 = vpop.f32.mrb[0].mxu0
    %1112 = vdwg.mxu0
    %v1114 = vrot.slane %v1110, 2
    %v1115 = vrot.slane %v1110, 3
    %v1118 = vadd.f32 %v200, %v1114
    %v1119 = vadd.f32 %v205, %v1115
    %v1120 = vxor.u32 %v1118, 2147483648
    %v1121 = vxor.u32 %v1119, 2147483648
    %v1122 = vmul.f32 %v1120, 1.442695
    %v1123 = vpow.pop %v1122
    %v1124 = vmul.f32 %v1121, 1.442695
    %v1125 = vpow.pop %v1124
    %v1126 = vadd.f32 %v1123, 1.0
    %v1127 = vadd.f32 %v1125, 1.0
    %v1128 = vrcp.pop %v1126
    %v1129 = vmul.f32 1.0, %v1128
    %v1130 = vrcp.pop %v1127
    %v1131 = vmul.f32 1.0, %v1130
    %v1132 = vtanh.pop %v1118
    %v1133 = vtanh.pop %v1119
    %v1136 = vrot.slane %v1020, 7
    %v1137 = vrot.slane %v1021, 7
    %v1140 = vmul.f32 %v1129, %v1136
    %v1141 = vmul.f32 %v1131, %v1137
    %1144 = vrot.lane.b32.xlu0 %v1132, 64
    %v1145 = vpop.permute.xlu0 %1144
    %1146 = vrot.lane.b32.xlu0 %v1133, 64
    %v1147 = vpop.permute.xlu0 %1146
    %v1150 = vmul.f32 %v1129, %v1145
    %v1151 = vmul.f32 %v1131, %v1147
    %1154 = vrot.lane.b32.xlu0 %v1150, 32
    %v1155 = vpop.permute.xlu0 %1154
    %1156 = vrot.lane.b32.xlu0 %v1151, 32
    %v1157 = vpop.permute.xlu0 %1156
    %v1160 = vadd.f32 %v1140, %v1155
    %v1161 = vadd.f32 %v1141, %v1157
    %v1162 = vtanh.pop %v1160
    %v1163 = vtanh.pop %v1161
    %1166 = vrot.lane.b32.xlu0 %v1162, 64
    %v1167 = vpop.permute.xlu0 %1166
    %1168 = vrot.lane.b32.xlu0 %v1163, 64
    %v1169 = vpop.permute.xlu0 %1168
    %v1172 = vmul.f32 %v1129, %v1167
    %v1173 = vmul.f32 %v1131, %v1169
    %v1176 = vrot.slane %v1172, 6
    %v1177 = vrot.slane %v1173, 5
    %v1178 = vsel %vm339, %v1177, %v1176
    %1179 = vrot.lane.b32.xlu0 %v1178, 32
    %v1180 = vpop.permute.xlu0 %1179
    %v1181 = vsel %vm208, %v1180, 0
    %1183 = vmatprep.subr.mxu0 0.0
    %1184 = vmatpush1.msra.mxu0 %v113
    %1185 = vmatprep.subr.mxu0 0.0
    %1186 = vmatpush1.msra.mxu0 %v114
    %1187 = vmatprep.subr.mxu0 0.0
    %1188 = vmatpush1.msra.mxu0 %v115
    %1189 = vmatprep.subr.mxu0 0.0
    %1190 = vmatpush1.msra.mxu0 %v116
    %1191 = vmatprep.subr.mxu0 0.0
    %1192 = vmatpush1.msra.mxu0 0.0
    %1193 = vmatprep.subr.mxu0 0.0
    %1194 = vmatpush1.msra.mxu0 0.0
    %1195 = vmatprep.subr.mxu0 0.0
    %1196 = vmatpush1.msra.mxu0 0.0
    %1197 = vmatprep.subr.mxu0 0.0
    %1198 = vmatpush1.msra.mxu0 0.0
    %1199 = vmatprep.subr.mxu0 0.0
    %1200 = vmatpush1.msra.mxu0 0.0
    %1201 = vmatprep.subr.mxu0 0.0
    %1202 = vmatpush1.msra.mxu0 0.0
    %1203 = vmatprep.subr.mxu0 0.0
    %1204 = vmatpush1.msra.mxu0 0.0
    %1205 = vmatprep.subr.mxu0 0.0
    %1206 = vmatpush1.msra.mxu0 0.0
    %1207 = vmatprep.subr.mxu0 0.0
    %1208 = vmatpush1.msra.mxu0 0.0
    %1209 = vmatprep.subr.mxu0 0.0
    %1210 = vmatpush1.msra.mxu0 0.0
    %1211 = vmatprep.subr.mxu0 0.0
    %1212 = vmatpush1.msra.mxu0 0.0
    %1213 = vmatprep.subr.mxu0 0.0
    %1214 = vmatpush1.msra.mxu0 0.0
    %1215 = vmatprep.subr.mxu0 0.0
    %1216 = vmatpush1.msra.mxu0 0.0
    %1217 = vmatprep.subr.mxu0 0.0
    %1218 = vmatpush1.msra.mxu0 0.0
    %1219 = vmatprep.subr.mxu0 0.0
    %1220 = vmatpush1.msra.mxu0 0.0
    %1221 = vmatprep.subr.mxu0 0.0
    %1222 = vmatpush1.msra.mxu0 0.0
    %1223 = vmatprep.subr.mxu0 0.0
    %1224 = vmatpush1.msra.mxu0 0.0
    %1225 = vmatprep.subr.mxu0 0.0
    %1226 = vmatpush1.msra.mxu0 0.0
    %1227 = vmatprep.subr.mxu0 0.0
    %1228 = vmatpush1.msra.mxu0 0.0
    %1229 = vmatprep.subr.mxu0 0.0
    %1230 = vmatpush1.msra.mxu0 0.0
    %1231 = vmatprep.subr.mxu0 0.0
    %1232 = vmatpush1.msra.mxu0 0.0
    %1233 = vmatprep.subr.mxu0 0.0
    %1234 = vmatpush1.msra.mxu0 0.0
    %1235 = vmatprep.subr.mxu0 0.0
    %1236 = vmatpush1.msra.mxu0 0.0
    %1237 = vmatprep.subr.mxu0 0.0
    %1238 = vmatpush1.msra.mxu0 0.0
    %1239 = vmatprep.subr.mxu0 0.0
    %1240 = vmatpush1.msra.mxu0 0.0
    %1241 = vmatprep.subr.mxu0 0.0
    %1242 = vmatpush1.msra.mxu0 0.0
    %1243 = vmatprep.subr.mxu0 0.0
    %1244 = vmatpush1.msra.mxu0 0.0
    %1245 = vmatprep.subr.mxu0 0.0
    %1246 = vmatpush1.msra.mxu0 0.0
    %1247 = vmatprep.mubr.f32.mxu0 0.0
    %1248 = vmatmul.mubr.f32.gmra.mrb[0].mxu0 %v1181
    %v1249 = vpop.f32.mrb[0].mxu0
    %v1250 = vadd.f32 0.0, %v1249
    %v1251 = vpop.f32.mrb[0].mxu0
    %1252 = vdwg.mxu0
    %v1254 = vrot.slane %v1250, 1
    %v1255 = vrot.slane %v1250, 2
    %v1258 = vadd.f32 %v200, %v1254
    %v1259 = vadd.f32 %v205, %v1255
    %v1260 = vxor.u32 %v1258, 2147483648
    %v1261 = vxor.u32 %v1259, 2147483648
    %v1262 = vmul.f32 %v1260, 1.442695
    %v1263 = vpow.pop %v1262
    %v1264 = vmul.f32 %v1261, 1.442695
    %v1265 = vpow.pop %v1264
    %v1266 = vadd.f32 %v1263, 1.0
    %v1267 = vadd.f32 %v1265, 1.0
    %v1268 = vrcp.pop %v1266
    %v1269 = vmul.f32 1.0, %v1268
    %v1270 = vrcp.pop %v1267
    %v1271 = vmul.f32 1.0, %v1270
    %v1272 = vtanh.pop %v1258
    %v1273 = vtanh.pop %v1259
    %v1276 = vrot.slane %v1160, 7
    %v1277 = vrot.slane %v1161, 7
    %v1280 = vmul.f32 %v1269, %v1276
    %v1281 = vmul.f32 %v1271, %v1277
    %1284 = vrot.lane.b32.xlu0 %v1272, 64
    %v1285 = vpop.permute.xlu0 %1284
    %1286 = vrot.lane.b32.xlu0 %v1273, 64
    %v1287 = vpop.permute.xlu0 %1286
    %v1290 = vmul.f32 %v1269, %v1285
    %v1291 = vmul.f32 %v1271, %v1287
    %1294 = vrot.lane.b32.xlu0 %v1290, 32
    %v1295 = vpop.permute.xlu0 %1294
    %1296 = vrot.lane.b32.xlu0 %v1291, 32
    %v1297 = vpop.permute.xlu0 %1296
    %v1300 = vadd.f32 %v1280, %v1295
    %v1301 = vadd.f32 %v1281, %v1297
    %v1302 = vtanh.pop %v1300
    %v1303 = vtanh.pop %v1301
    %1306 = vrot.lane.b32.xlu0 %v1302, 64
    %v1307 = vpop.permute.xlu0 %1306
    %1308 = vrot.lane.b32.xlu0 %v1303, 64
    %v1309 = vpop.permute.xlu0 %1308
    %v1312 = vmul.f32 %v1269, %v1307
    %v1313 = vmul.f32 %v1271, %v1309
    %v1314 = vrot.slane %v474, 1
    %v1315 = vrot.slane %v613, 2
    %v1316 = vrot.slane %v753, 3
    %v1317 = vrot.slane %v893, 4
    %v1318 = vrot.slane %v1033, 5
    %v1319 = vrot.slane %v1173, 6
    %v1322 = vrot.slane %v1312, 7
    %v1323 = vrot.slane %v1313, 7
    %v1324 = vld [vmem:[#allocation7] sm:$0xff]
    %v1325 = vld [vmem:[#allocation7 + $0x8] sm:$0xff]
    %v1326 = vld [vmem:[#allocation7 + $0x10] sm:$0xff]
    %v1327 = vld [vmem:[#allocation7 + $0x18] sm:$0xff]
    %v1328 = vld [vmem:[#allocation8] sm:$0xff]
    %v1329 = vld [vmem:[#allocation8 + $0x8] sm:$0xff]
    %v1330 = vld [vmem:[#allocation8 + $0x10] sm:$0xff]
    %v1331 = vld [vmem:[#allocation8 + $0x18] sm:$0xff]
    %v1332 = vld [vmem:[%s6] sm:$0x1]
    %v1334 = vlaneseq
    %v1335 = vshrl.u32 %v1334, 7
    %v1336 = vsub.s32 0, %v1335
    %v1337 = vrot.slane %v1332, %v1336
    %v1339 = vrot.slane %v477, 6
    %vm1340 = vcmask 1042434
    %v1341 = vsel %vm1340, %v1339, %v340
    %v1342 = vrot.slane %v1314, 5
    %vm1343 = vcmask 1043459
    %v1344 = vsel %vm1343, %v1342, %v1341
    %v1345 = vrot.slane %v616, 4
    %vm1346 = vcmask 1044484
    %v1347 = vsel %vm1346, %v1345, %v1344
    %v1348 = vrot.slane %v1315, 3
    %vm1349 = vcmask 1045509
    %v1350 = vsel %vm1349, %v1348, %v1347
    %v1351 = vrot.slane %v756, 2
    %vm1352 = vcmask 1046534
    %v1353 = vsel %vm1352, %v1351, %v1350
    %v1354 = vrot.slane %v1316, 1
    %vm1355 = vcmask 1047559
    %v1356 = vsel %vm1355, %v1354, %v1353
    %v1357 = vrot.slane %v1317, 7
    %v1358 = vsel %vm339, %v1357, %v896
    %v1359 = vrot.slane %v1036, 6
    %v1360 = vsel %vm1340, %v1359, %v1358
    %v1361 = vrot.slane %v1318, 5
    %v1362 = vsel %vm1343, %v1361, %v1360
    %v1363 = vrot.slane %v1176, 4
    %v1364 = vsel %vm1346, %v1363, %v1362
    %v1365 = vrot.slane %v1319, 3
    %v1366 = vsel %vm1349, %v1365, %v1364
    %v1367 = vrot.slane %v1322, 2
    %v1368 = vsel %vm1352, %v1367, %v1366
    %v1369 = vrot.slane %v1323, 1
    %v1370 = vsel %vm1355, %v1369, %v1368
    %1371 = vrot.lane.b32.xlu0 %v1356, 32
    %v1372 = vpop.permute.xlu0 %1371
    %1373 = vrot.lane.b32.xlu0 %v1370, 32
    %v1374 = vpop.permute.xlu0 %1373
    %v1375 = vsel %vm208, %v1372, 0
    %v1377 = vsel %vm208, %v1374, 0
    %1379 = vmatprep.subr.mxu0 0.0
    %1380 = vmatpush1.msra.mxu0 %v1324
    %1381 = vmatprep.subr.mxu0 0.0
    %1382 = vmatpush1.msra.mxu0 %v1325
    %1383 = vmatprep.subr.mxu0 0.0
    %1384 = vmatpush1.msra.mxu0 %v1326
    %1385 = vmatprep.subr.mxu0 0.0
    %1386 = vmatpush1.msra.mxu0 %v1327
    %1387 = vmatprep.subr.mxu0 0.0
    %1388 = vmatpush1.msra.mxu0 0.0
    %1389 = vmatprep.subr.mxu0 0.0
    %1390 = vmatpush1.msra.mxu0 0.0
    %1391 = vmatprep.subr.mxu0 0.0
    %1392 = vmatpush1.msra.mxu0 0.0
    %1393 = vmatprep.subr.mxu0 0.0
    %1394 = vmatpush1.msra.mxu0 0.0
    %1395 = vmatprep.subr.mxu0 0.0
    %1396 = vmatpush1.msra.mxu0 0.0
    %1397 = vmatprep.subr.mxu0 0.0
    %1398 = vmatpush1.msra.mxu0 0.0
    %1399 = vmatprep.subr.mxu0 0.0
    %1400 = vmatpush1.msra.mxu0 0.0
    %1401 = vmatprep.subr.mxu0 0.0
    %1402 = vmatpush1.msra.mxu0 0.0
    %1403 = vmatprep.subr.mxu0 0.0
    %1404 = vmatpush1.msra.mxu0 0.0
    %1405 = vmatprep.subr.mxu0 0.0
    %1406 = vmatpush1.msra.mxu0 0.0
    %1407 = vmatprep.subr.mxu0 0.0
    %1408 = vmatpush1.msra.mxu0 0.0
    %1409 = vmatprep.subr.mxu0 0.0
    %1410 = vmatpush1.msra.mxu0 0.0
    %1411 = vmatprep.subr.mxu0 0.0
    %1412 = vmatpush1.msra.mxu0 0.0
    %1413 = vmatprep.subr.mxu0 0.0
    %1414 = vmatpush1.msra.mxu0 0.0
    %1415 = vmatprep.subr.mxu0 0.0
    %1416 = vmatpush1.msra.mxu0 0.0
    %1417 = vmatprep.subr.mxu0 0.0
    %1418 = vmatpush1.msra.mxu0 0.0
    %1419 = vmatprep.subr.mxu0 0.0
    %1420 = vmatpush1.msra.mxu0 0.0
    %1421 = vmatprep.subr.mxu0 0.0
    %1422 = vmatpush1.msra.mxu0 0.0
    %1423 = vmatprep.subr.mxu0 0.0
    %1424 = vmatpush1.msra.mxu0 0.0
    %1425 = vmatprep.subr.mxu0 0.0
    %1426 = vmatpush1.msra.mxu0 0.0
    %1427 = vmatprep.subr.mxu0 0.0
    %1428 = vmatpush1.msra.mxu0 0.0
    %1429 = vmatprep.subr.mxu0 0.0
    %1430 = vmatpush1.msra.mxu0 0.0
    %1431 = vmatprep.subr.mxu0 0.0
    %1432 = vmatpush1.msra.mxu0 0.0
    %1433 = vmatprep.subr.mxu0 0.0
    %1434 = vmatpush1.msra.mxu0 0.0
    %1435 = vmatprep.subr.mxu0 0.0
    %1436 = vmatpush1.msra.mxu0 0.0
    %1437 = vmatprep.subr.mxu0 0.0
    %1438 = vmatpush1.msra.mxu0 0.0
    %1439 = vmatprep.subr.mxu0 0.0
    %1440 = vmatpush1.msra.mxu0 0.0
    %1441 = vmatprep.subr.mxu0 0.0
    %1442 = vmatpush1.msra.mxu0 0.0
    %1443 = vmatprep.mubr.f32.mxu0 0.0
    %1444 = vmatmul.mubr.f32.gmra.mrb[0].mxu0 %v1375
    %v1445 = vpop.f32.mrb[0].mxu0
    %v1446 = vadd.f32 %v1337, %v1445
    %v1447 = vpop.f32.mrb[0].mxu0
    %1448 = vmatprep.mubr.f32.mxu0 0.0
    %1449 = vmatmul.mubr.f32.gmra.mrb[0].mxu0 %v1377
    %v1450 = vpop.f32.mrb[0].mxu0
    %v1451 = vadd.f32 %v1337, %v1450
    %v1452 = vpop.f32.mrb[0].mxu0
    %1453 = vdwg.mxu0
    %v1456 = vcombine.high %v1446, %v1446
    %v1458 = vunpack.c.l.s4 1983009808
    %v1459 = vunpack.c.0.s8 %v1458
    %v1460 = vlaneseq
    %v1461 = vshrl.u32 %v1460, 7
    %v1462 = vsub.s32 %v1459, %v1461
    %v1463 = vrot.slane %v1446, %v1462
    %v1465 = vunpack.c.l.s4 1983009808
    %v1466 = vunpack.c.0.s8 %v1465
    %v1467 = vlaneseq
    %v1468 = vshrl.u32 %v1467, 7
    %v1469 = vsub.s32 %v1466, %v1468
    %v1470 = vrot.slane %v1456, %v1469
    %v1471 = vcombine.high %v1463, %v1463
    %v1472 = vcombine.high %v1470, %v1470
    %v1473 = vcombine.high %v1451, %v1451
    %v1475 = vunpack.c.l.s4 1983009808
    %v1476 = vunpack.c.0.s8 %v1475
    %v1477 = vlaneseq
    %v1478 = vshrl.u32 %v1477, 7
    %v1479 = vsub.s32 %v1476, %v1478
    %v1480 = vrot.slane %v1451, %v1479
    %v1482 = vunpack.c.l.s4 1983009808
    %v1483 = vunpack.c.0.s8 %v1482
    %v1484 = vlaneseq
    %v1485 = vshrl.u32 %v1484, 7
    %v1486 = vsub.s32 %v1483, %v1485
    %v1487 = vrot.slane %v1473, %v1486
    %v1488 = vcombine.high %v1480, %v1480
    %v1489 = vcombine.high %v1487, %v1487
    %1498 = vmatprep.subr.mxu0 0.0
    %1499 = vmatpush1.msra.mxu0 %v1328
    %1500 = vmatprep.subr.mxu0 0.0
    %1501 = vmatpush1.msra.mxu0 %v1329
    %1502 = vmatprep.subr.mxu0 0.0
    %1503 = vmatpush1.msra.mxu0 %v1330
    %1504 = vmatprep.subr.mxu0 0.0
    %1505 = vmatpush1.msra.mxu0 %v1331
    %1506 = vmatprep.subr.mxu0 0.0
    %1507 = vmatpush1.msra.mxu0 0.0
    %1508 = vmatprep.subr.mxu0 0.0
    %1509 = vmatpush1.msra.mxu0 0.0
    %1510 = vmatprep.subr.mxu0 0.0
    %1511 = vmatpush1.msra.mxu0 0.0
    %1512 = vmatprep.subr.mxu0 0.0
    %1513 = vmatpush1.msra.mxu0 0.0
    %1514 = vmatprep.subr.mxu0 0.0
    %1515 = vmatpush1.msra.mxu0 0.0
    %1516 = vmatprep.subr.mxu0 0.0
    %1517 = vmatpush1.msra.mxu0 0.0
    %1518 = vmatprep.subr.mxu0 0.0
    %1519 = vmatpush1.msra.mxu0 0.0
    %1520 = vmatprep.subr.mxu0 0.0
    %1521 = vmatpush1.msra.mxu0 0.0
    %1522 = vmatprep.subr.mxu0 0.0
    %1523 = vmatpush1.msra.mxu0 0.0
    %1524 = vmatprep.subr.mxu0 0.0
    %1525 = vmatpush1.msra.mxu0 0.0
    %1526 = vmatprep.subr.mxu0 0.0
    %1527 = vmatpush1.msra.mxu0 0.0
    %1528 = vmatprep.subr.mxu0 0.0
    %1529 = vmatpush1.msra.mxu0 0.0
    %1530 = vmatprep.subr.mxu0 0.0
    %1531 = vmatpush1.msra.mxu0 0.0
    %1532 = vmatprep.subr.mxu0 0.0
    %1533 = vmatpush1.msra.mxu0 0.0
    %1534 = vmatprep.subr.mxu0 0.0
    %1535 = vmatpush1.msra.mxu0 0.0
    %1536 = vmatprep.subr.mxu0 0.0
    %1537 = vmatpush1.msra.mxu0 0.0
    %1538 = vmatprep.subr.mxu0 0.0
    %1539 = vmatpush1.msra.mxu0 0.0
    %1540 = vmatprep.subr.mxu0 0.0
    %1541 = vmatpush1.msra.mxu0 0.0
    %1542 = vmatprep.subr.mxu0 0.0
    %1543 = vmatpush1.msra.mxu0 0.0
    %1544 = vmatprep.subr.mxu0 0.0
    %1545 = vmatpush1.msra.mxu0 0.0
    %1546 = vmatprep.subr.mxu0 0.0
    %1547 = vmatpush1.msra.mxu0 0.0
    %1548 = vmatprep.subr.mxu0 0.0
    %1549 = vmatpush1.msra.mxu0 0.0
    %1550 = vmatprep.subr.mxu0 0.0
    %1551 = vmatpush1.msra.mxu0 0.0
    %1552 = vmatprep.subr.mxu0 0.0
    %1553 = vmatpush1.msra.mxu0 0.0
    %1554 = vmatprep.subr.mxu0 0.0
    %1555 = vmatpush1.msra.mxu0 0.0
    %1556 = vmatprep.subr.mxu0 0.0
    %1557 = vmatpush1.msra.mxu0 0.0
    %1558 = vmatprep.subr.mxu0 0.0
    %1559 = vmatpush1.msra.mxu0 0.0
    %1560 = vmatprep.subr.mxu0 0.0
    %1561 = vmatpush1.msra.mxu0 0.0
    %1562 = vmatprep.mubr.f32.mxu0 0.0
    %1563 = vmatmul.mubr.f32.gmra.mrb[0].mxu0 %v210
    %v1564 = vpop.f32.mrb[0].mxu0
    %v1565 = vadd.f32 0.0, %v1564
    %v1566 = vpop.f32.mrb[0].mxu0
    %1567 = vdwg.mxu0
    %v1568 = vadd.f32 %v1463, %v1565
    %v1569 = vtanh.pop %v1568
    %v1571 = vsel %vm208, %v1569, 0
    %1573 = vmatprep.subr.mxu0 0.0
    %1574 = vmatpush1.msra.mxu0 %v1328
    %1575 = vmatprep.subr.mxu0 0.0
    %1576 = vmatpush1.msra.mxu0 %v1329
    %1577 = vmatprep.subr.mxu0 0.0
    %1578 = vmatpush1.msra.mxu0 %v1330
    %1579 = vmatprep.subr.mxu0 0.0
    %1580 = vmatpush1.msra.mxu0 %v1331
    %1581 = vmatprep.subr.mxu0 0.0
    %1582 = vmatpush1.msra.mxu0 0.0
    %1583 = vmatprep.subr.mxu0 0.0
    %1584 = vmatpush1.msra.mxu0 0.0
    %1585 = vmatprep.subr.mxu0 0.0
    %1586 = vmatpush1.msra.mxu0 0.0
    %1587 = vmatprep.subr.mxu0 0.0
    %1588 = vmatpush1.msra.mxu0 0.0
    %1589 = vmatprep.subr.mxu0 0.0
    %1590 = vmatpush1.msra.mxu0 0.0
    %1591 = vmatprep.subr.mxu0 0.0
    %1592 = vmatpush1.msra.mxu0 0.0
    %1593 = vmatprep.subr.mxu0 0.0
    %1594 = vmatpush1.msra.mxu0 0.0
    %1595 = vmatprep.subr.mxu0 0.0
    %1596 = vmatpush1.msra.mxu0 0.0
    %1597 = vmatprep.subr.mxu0 0.0
    %1598 = vmatpush1.msra.mxu0 0.0
    %1599 = vmatprep.subr.mxu0 0.0
    %1600 = vmatpush1.msra.mxu0 0.0
    %1601 = vmatprep.subr.mxu0 0.0
    %1602 = vmatpush1.msra.mxu0 0.0
    %1603 = vmatprep.subr.mxu0 0.0
    %1604 = vmatpush1.msra.mxu0 0.0
    %1605 = vmatprep.subr.mxu0 0.0
    %1606 = vmatpush1.msra.mxu0 0.0
    %1607 = vmatprep.subr.mxu0 0.0
    %1608 = vmatpush1.msra.mxu0 0.0
    %1609 = vmatprep.subr.mxu0 0.0
    %1610 = vmatpush1.msra.mxu0 0.0
    %1611 = vmatprep.subr.mxu0 0.0
    %1612 = vmatpush1.msra.mxu0 0.0
    %1613 = vmatprep.subr.mxu0 0.0
    %1614 = vmatpush1.msra.mxu0 0.0
    %1615 = vmatprep.subr.mxu0 0.0
    %1616 = vmatpush1.msra.mxu0 0.0
    %1617 = vmatprep.subr.mxu0 0.0
    %1618 = vmatpush1.msra.mxu0 0.0
    %1619 = vmatprep.subr.mxu0 0.0
    %1620 = vmatpush1.msra.mxu0 0.0
    %1621 = vmatprep.subr.mxu0 0.0
    %1622 = vmatpush1.msra.mxu0 0.0
    %1623 = vmatprep.subr.mxu0 0.0
    %1624 = vmatpush1.msra.mxu0 0.0
    %1625 = vmatprep.subr.mxu0 0.0
    %1626 = vmatpush1.msra.mxu0 0.0
    %1627 = vmatprep.subr.mxu0 0.0
    %1628 = vmatpush1.msra.mxu0 0.0
    %1629 = vmatprep.subr.mxu0 0.0
    %1630 = vmatpush1.msra.mxu0 0.0
    %1631 = vmatprep.subr.mxu0 0.0
    %1632 = vmatpush1.msra.mxu0 0.0
    %1633 = vmatprep.subr.mxu0 0.0
    %1634 = vmatpush1.msra.mxu0 0.0
    %1635 = vmatprep.subr.mxu0 0.0
    %1636 = vmatpush1.msra.mxu0 0.0
    %1637 = vmatprep.mubr.f32.mxu0 0.0
    %1638 = vmatmul.mubr.f32.gmra.mrb[0].mxu0 %v1571
    %v1639 = vpop.f32.mrb[0].mxu0
    %v1640 = vadd.f32 0.0, %v1639
    %v1641 = vpop.f32.mrb[0].mxu0
    %1642 = vdwg.mxu0
    %v1643 = vadd.f32 %v1471, %v1640
    %v1644 = vtanh.pop %v1643
    %v1646 = vsel %vm208, %v1644, 0
    %1648 = vmatprep.subr.mxu0 0.0
    %1649 = vmatpush1.msra.mxu0 %v1328
    %1650 = vmatprep.subr.mxu0 0.0
    %1651 = vmatpush1.msra.mxu0 %v1329
    %1652 = vmatprep.subr.mxu0 0.0
    %1653 = vmatpush1.msra.mxu0 %v1330
    %1654 = vmatprep.subr.mxu0 0.0
    %1655 = vmatpush1.msra.mxu0 %v1331
    %1656 = vmatprep.subr.mxu0 0.0
    %1657 = vmatpush1.msra.mxu0 0.0
    %1658 = vmatprep.subr.mxu0 0.0
    %1659 = vmatpush1.msra.mxu0 0.0
    %1660 = vmatprep.subr.mxu0 0.0
    %1661 = vmatpush1.msra.mxu0 0.0
    %1662 = vmatprep.subr.mxu0 0.0
    %1663 = vmatpush1.msra.mxu0 0.0
    %1664 = vmatprep.subr.mxu0 0.0
    %1665 = vmatpush1.msra.mxu0 0.0
    %1666 = vmatprep.subr.mxu0 0.0
    %1667 = vmatpush1.msra.mxu0 0.0
    %1668 = vmatprep.subr.mxu0 0.0
    %1669 = vmatpush1.msra.mxu0 0.0
    %1670 = vmatprep.subr.mxu0 0.0
    %1671 = vmatpush1.msra.mxu0 0.0
    %1672 = vmatprep.subr.mxu0 0.0
    %1673 = vmatpush1.msra.mxu0 0.0
    %1674 = vmatprep.subr.mxu0 0.0
    %1675 = vmatpush1.msra.mxu0 0.0
    %1676 = vmatprep.subr.mxu0 0.0
    %1677 = vmatpush1.msra.mxu0 0.0
    %1678 = vmatprep.subr.mxu0 0.0
    %1679 = vmatpush1.msra.mxu0 0.0
    %1680 = vmatprep.subr.mxu0 0.0
    %1681 = vmatpush1.msra.mxu0 0.0
    %1682 = vmatprep.subr.mxu0 0.0
    %1683 = vmatpush1.msra.mxu0 0.0
    %1684 = vmatprep.subr.mxu0 0.0
    %1685 = vmatpush1.msra.mxu0 0.0
    %1686 = vmatprep.subr.mxu0 0.0
    %1687 = vmatpush1.msra.mxu0 0.0
    %1688 = vmatprep.subr.mxu0 0.0
    %1689 = vmatpush1.msra.mxu0 0.0
    %1690 = vmatprep.subr.mxu0 0.0
    %1691 = vmatpush1.msra.mxu0 0.0
    %1692 = vmatprep.subr.mxu0 0.0
    %1693 = vmatpush1.msra.mxu0 0.0
    %1694 = vmatprep.subr.mxu0 0.0
    %1695 = vmatpush1.msra.mxu0 0.0
    %1696 = vmatprep.subr.mxu0 0.0
    %1697 = vmatpush1.msra.mxu0 0.0
    %1698 = vmatprep.subr.mxu0 0.0
    %1699 = vmatpush1.msra.mxu0 0.0
    %1700 = vmatprep.subr.mxu0 0.0
    %1701 = vmatpush1.msra.mxu0 0.0
    %1702 = vmatprep.subr.mxu0 0.0
    %1703 = vmatpush1.msra.mxu0 0.0
    %1704 = vmatprep.subr.mxu0 0.0
    %1705 = vmatpush1.msra.mxu0 0.0
    %1706 = vmatprep.subr.mxu0 0.0
    %1707 = vmatpush1.msra.mxu0 0.0
    %1708 = vmatprep.subr.mxu0 0.0
    %1709 = vmatpush1.msra.mxu0 0.0
    %1710 = vmatprep.subr.mxu0 0.0
    %1711 = vmatpush1.msra.mxu0 0.0
    %1712 = vmatprep.mubr.f32.mxu0 0.0
    %1713 = vmatmul.mubr.f32.gmra.mrb[0].mxu0 %v1646
    %v1714 = vpop.f32.mrb[0].mxu0
    %v1715 = vadd.f32 0.0, %v1714
    %v1716 = vpop.f32.mrb[0].mxu0
    %1717 = vdwg.mxu0
    %v1718 = vadd.f32 %v1470, %v1715
    %v1719 = vtanh.pop %v1718
    %v1721 = vsel %vm208, %v1719, 0
    %1723 = vmatprep.subr.mxu0 0.0
    %1724 = vmatpush1.msra.mxu0 %v1328
    %1725 = vmatprep.subr.mxu0 0.0
    %1726 = vmatpush1.msra.mxu0 %v1329
    %1727 = vmatprep.subr.mxu0 0.0
    %1728 = vmatpush1.msra.mxu0 %v1330
    %1729 = vmatprep.subr.mxu0 0.0
    %1730 = vmatpush1.msra.mxu0 %v1331
    %1731 = vmatprep.subr.mxu0 0.0
    %1732 = vmatpush1.msra.mxu0 0.0
    %1733 = vmatprep.subr.mxu0 0.0
    %1734 = vmatpush1.msra.mxu0 0.0
    %1735 = vmatprep.subr.mxu0 0.0
    %1736 = vmatpush1.msra.mxu0 0.0
    %1737 = vmatprep.subr.mxu0 0.0
    %1738 = vmatpush1.msra.mxu0 0.0
    %1739 = vmatprep.subr.mxu0 0.0
    %1740 = vmatpush1.msra.mxu0 0.0
    %1741 = vmatprep.subr.mxu0 0.0
    %1742 = vmatpush1.msra.mxu0 0.0
    %1743 = vmatprep.subr.mxu0 0.0
    %1744 = vmatpush1.msra.mxu0 0.0
    %1745 = vmatprep.subr.mxu0 0.0
    %1746 = vmatpush1.msra.mxu0 0.0
    %1747 = vmatprep.subr.mxu0 0.0
    %1748 = vmatpush1.msra.mxu0 0.0
    %1749 = vmatprep.subr.mxu0 0.0
    %1750 = vmatpush1.msra.mxu0 0.0
    %1751 = vmatprep.subr.mxu0 0.0
    %1752 = vmatpush1.msra.mxu0 0.0
    %1753 = vmatprep.subr.mxu0 0.0
    %1754 = vmatpush1.msra.mxu0 0.0
    %1755 = vmatprep.subr.mxu0 0.0
    %1756 = vmatpush1.msra.mxu0 0.0
    %1757 = vmatprep.subr.mxu0 0.0
    %1758 = vmatpush1.msra.mxu0 0.0
    %1759 = vmatprep.subr.mxu0 0.0
    %1760 = vmatpush1.msra.mxu0 0.0
    %1761 = vmatprep.subr.mxu0 0.0
    %1762 = vmatpush1.msra.mxu0 0.0
    %1763 = vmatprep.subr.mxu0 0.0
    %1764 = vmatpush1.msra.mxu0 0.0
    %1765 = vmatprep.subr.mxu0 0.0
    %1766 = vmatpush1.msra.mxu0 0.0
    %1767 = vmatprep.subr.mxu0 0.0
    %1768 = vmatpush1.msra.mxu0 0.0
    %1769 = vmatprep.subr.mxu0 0.0
    %1770 = vmatpush1.msra.mxu0 0.0
    %1771 = vmatprep.subr.mxu0 0.0
    %1772 = vmatpush1.msra.mxu0 0.0
    %1773 = vmatprep.subr.mxu0 0.0
    %1774 = vmatpush1.msra.mxu0 0.0
    %1775 = vmatprep.subr.mxu0 0.0
    %1776 = vmatpush1.msra.mxu0 0.0
    %1777 = vmatprep.subr.mxu0 0.0
    %1778 = vmatpush1.msra.mxu0 0.0
    %1779 = vmatprep.subr.mxu0 0.0
    %1780 = vmatpush1.msra.mxu0 0.0
    %1781 = vmatprep.subr.mxu0 0.0
    %1782 = vmatpush1.msra.mxu0 0.0
    %1783 = vmatprep.subr.mxu0 0.0
    %1784 = vmatpush1.msra.mxu0 0.0
    %1785 = vmatprep.subr.mxu0 0.0
    %1786 = vmatpush1.msra.mxu0 0.0
    %1787 = vmatprep.mubr.f32.mxu0 0.0
    %1788 = vmatmul.mubr.f32.gmra.mrb[0].mxu0 %v1721
    %v1789 = vpop.f32.mrb[0].mxu0
    %v1790 = vadd.f32 0.0, %v1789
    %v1791 = vpop.f32.mrb[0].mxu0
    %1792 = vdwg.mxu0
    %v1793 = vadd.f32 %v1472, %v1790
    %v1794 = vtanh.pop %v1793
    %v1796 = vsel %vm208, %v1794, 0
    %1798 = vmatprep.subr.mxu0 0.0
    %1799 = vmatpush1.msra.mxu0 %v1328
    %1800 = vmatprep.subr.mxu0 0.0
    %1801 = vmatpush1.msra.mxu0 %v1329
    %1802 = vmatprep.subr.mxu0 0.0
    %1803 = vmatpush1.msra.mxu0 %v1330
    %1804 = vmatprep.subr.mxu0 0.0
    %1805 = vmatpush1.msra.mxu0 %v1331
    %1806 = vmatprep.subr.mxu0 0.0
    %1807 = vmatpush1.msra.mxu0 0.0
    %1808 = vmatprep.subr.mxu0 0.0
    %1809 = vmatpush1.msra.mxu0 0.0
    %1810 = vmatprep.subr.mxu0 0.0
    %1811 = vmatpush1.msra.mxu0 0.0
    %1812 = vmatprep.subr.mxu0 0.0
    %1813 = vmatpush1.msra.mxu0 0.0
    %1814 = vmatprep.subr.mxu0 0.0
    %1815 = vmatpush1.msra.mxu0 0.0
    %1816 = vmatprep.subr.mxu0 0.0
    %1817 = vmatpush1.msra.mxu0 0.0
    %1818 = vmatprep.subr.mxu0 0.0
    %1819 = vmatpush1.msra.mxu0 0.0
    %1820 = vmatprep.subr.mxu0 0.0
    %1821 = vmatpush1.msra.mxu0 0.0
    %1822 = vmatprep.subr.mxu0 0.0
    %1823 = vmatpush1.msra.mxu0 0.0
    %1824 = vmatprep.subr.mxu0 0.0
    %1825 = vmatpush1.msra.mxu0 0.0
    %1826 = vmatprep.subr.mxu0 0.0
    %1827 = vmatpush1.msra.mxu0 0.0
    %1828 = vmatprep.subr.mxu0 0.0
    %1829 = vmatpush1.msra.mxu0 0.0
    %1830 = vmatprep.subr.mxu0 0.0
    %1831 = vmatpush1.msra.mxu0 0.0
    %1832 = vmatprep.subr.mxu0 0.0
    %1833 = vmatpush1.msra.mxu0 0.0
    %1834 = vmatprep.subr.mxu0 0.0
    %1835 = vmatpush1.msra.mxu0 0.0
    %1836 = vmatprep.subr.mxu0 0.0
    %1837 = vmatpush1.msra.mxu0 0.0
    %1838 = vmatprep.subr.mxu0 0.0
    %1839 = vmatpush1.msra.mxu0 0.0
    %1840 = vmatprep.subr.mxu0 0.0
    %1841 = vmatpush1.msra.mxu0 0.0
    %1842 = vmatprep.subr.mxu0 0.0
    %1843 = vmatpush1.msra.mxu0 0.0
    %1844 = vmatprep.subr.mxu0 0.0
    %1845 = vmatpush1.msra.mxu0 0.0
    %1846 = vmatprep.subr.mxu0 0.0
    %1847 = vmatpush1.msra.mxu0 0.0
    %1848 = vmatprep.subr.mxu0 0.0
    %1849 = vmatpush1.msra.mxu0 0.0
    %1850 = vmatprep.subr.mxu0 0.0
    %1851 = vmatpush1.msra.mxu0 0.0
    %1852 = vmatprep.subr.mxu0 0.0
    %1853 = vmatpush1.msra.mxu0 0.0
    %1854 = vmatprep.subr.mxu0 0.0
    %1855 = vmatpush1.msra.mxu0 0.0
    %1856 = vmatprep.subr.mxu0 0.0
    %1857 = vmatpush1.msra.mxu0 0.0
    %1858 = vmatprep.subr.mxu0 0.0
    %1859 = vmatpush1.msra.mxu0 0.0
    %1860 = vmatprep.subr.mxu0 0.0
    %1861 = vmatpush1.msra.mxu0 0.0
    %1862 = vmatprep.mubr.f32.mxu0 0.0
    %1863 = vmatmul.mubr.f32.gmra.mrb[0].mxu0 %v1796
    %v1864 = vpop.f32.mrb[0].mxu0
    %v1865 = vadd.f32 0.0, %v1864
    %v1866 = vpop.f32.mrb[0].mxu0
    %1867 = vdwg.mxu0
    %v1868 = vadd.f32 %v1480, %v1865
    %v1869 = vtanh.pop %v1868
    %v1871 = vsel %vm208, %v1869, 0
    %1873 = vmatprep.subr.mxu0 0.0
    %1874 = vmatpush1.msra.mxu0 %v1328
    %1875 = vmatprep.subr.mxu0 0.0
    %1876 = vmatpush1.msra.mxu0 %v1329
    %1877 = vmatprep.subr.mxu0 0.0
    %1878 = vmatpush1.msra.mxu0 %v1330
    %1879 = vmatprep.subr.mxu0 0.0
    %1880 = vmatpush1.msra.mxu0 %v1331
    %1881 = vmatprep.subr.mxu0 0.0
    %1882 = vmatpush1.msra.mxu0 0.0
    %1883 = vmatprep.subr.mxu0 0.0
    %1884 = vmatpush1.msra.mxu0 0.0
    %1885 = vmatprep.subr.mxu0 0.0
    %1886 = vmatpush1.msra.mxu0 0.0
    %1887 = vmatprep.subr.mxu0 0.0
    %1888 = vmatpush1.msra.mxu0 0.0
    %1889 = vmatprep.subr.mxu0 0.0
    %1890 = vmatpush1.msra.mxu0 0.0
    %1891 = vmatprep.subr.mxu0 0.0
    %1892 = vmatpush1.msra.mxu0 0.0
    %1893 = vmatprep.subr.mxu0 0.0
    %1894 = vmatpush1.msra.mxu0 0.0
    %1895 = vmatprep.subr.mxu0 0.0
    %1896 = vmatpush1.msra.mxu0 0.0
    %1897 = vmatprep.subr.mxu0 0.0
    %1898 = vmatpush1.msra.mxu0 0.0
    %1899 = vmatprep.subr.mxu0 0.0
    %1900 = vmatpush1.msra.mxu0 0.0
    %1901 = vmatprep.subr.mxu0 0.0
    %1902 = vmatpush1.msra.mxu0 0.0
    %1903 = vmatprep.subr.mxu0 0.0
    %1904 = vmatpush1.msra.mxu0 0.0
    %1905 = vmatprep.subr.mxu0 0.0
    %1906 = vmatpush1.msra.mxu0 0.0
    %1907 = vmatprep.subr.mxu0 0.0
    %1908 = vmatpush1.msra.mxu0 0.0
    %1909 = vmatprep.subr.mxu0 0.0
    %1910 = vmatpush1.msra.mxu0 0.0
    %1911 = vmatprep.subr.mxu0 0.0
    %1912 = vmatpush1.msra.mxu0 0.0
    %1913 = vmatprep.subr.mxu0 0.0
    %1914 = vmatpush1.msra.mxu0 0.0
    %1915 = vmatprep.subr.mxu0 0.0
    %1916 = vmatpush1.msra.mxu0 0.0
    %1917 = vmatprep.subr.mxu0 0.0
    %1918 = vmatpush1.msra.mxu0 0.0
    %1919 = vmatprep.subr.mxu0 0.0
    %1920 = vmatpush1.msra.mxu0 0.0
    %1921 = vmatprep.subr.mxu0 0.0
    %1922 = vmatpush1.msra.mxu0 0.0
    %1923 = vmatprep.subr.mxu0 0.0
    %1924 = vmatpush1.msra.mxu0 0.0
    %1925 = vmatprep.subr.mxu0 0.0
    %1926 = vmatpush1.msra.mxu0 0.0
    %1927 = vmatprep.subr.mxu0 0.0
    %1928 = vmatpush1.msra.mxu0 0.0
    %1929 = vmatprep.subr.mxu0 0.0
    %1930 = vmatpush1.msra.mxu0 0.0
    %1931 = vmatprep.subr.mxu0 0.0
    %1932 = vmatpush1.msra.mxu0 0.0
    %1933 = vmatprep.subr.mxu0 0.0
    %1934 = vmatpush1.msra.mxu0 0.0
    %1935 = vmatprep.subr.mxu0 0.0
    %1936 = vmatpush1.msra.mxu0 0.0
    %1937 = vmatprep.mubr.f32.mxu0 0.0
    %1938 = vmatmul.mubr.f32.gmra.mrb[0].mxu0 %v1871
    %v1939 = vpop.f32.mrb[0].mxu0
    %v1940 = vadd.f32 0.0, %v1939
    %v1941 = vpop.f32.mrb[0].mxu0
    %1942 = vdwg.mxu0
    %v1943 = vadd.f32 %v1488, %v1940
    %v1944 = vtanh.pop %v1943
    %v1946 = vsel %vm208, %v1944, 0
    %1948 = vmatprep.subr.mxu0 0.0
    %1949 = vmatpush1.msra.mxu0 %v1328
    %1950 = vmatprep.subr.mxu0 0.0
    %1951 = vmatpush1.msra.mxu0 %v1329
    %1952 = vmatprep.subr.mxu0 0.0
    %1953 = vmatpush1.msra.mxu0 %v1330
    %1954 = vmatprep.subr.mxu0 0.0
    %1955 = vmatpush1.msra.mxu0 %v1331
    %1956 = vmatprep.subr.mxu0 0.0
    %1957 = vmatpush1.msra.mxu0 0.0
    %1958 = vmatprep.subr.mxu0 0.0
    %1959 = vmatpush1.msra.mxu0 0.0
    %1960 = vmatprep.subr.mxu0 0.0
    %1961 = vmatpush1.msra.mxu0 0.0
    %1962 = vmatprep.subr.mxu0 0.0
    %1963 = vmatpush1.msra.mxu0 0.0
    %1964 = vmatprep.subr.mxu0 0.0
    %1965 = vmatpush1.msra.mxu0 0.0
    %1966 = vmatprep.subr.mxu0 0.0
    %1967 = vmatpush1.msra.mxu0 0.0
    %1968 = vmatprep.subr.mxu0 0.0
    %1969 = vmatpush1.msra.mxu0 0.0
    %1970 = vmatprep.subr.mxu0 0.0
    %1971 = vmatpush1.msra.mxu0 0.0
    %1972 = vmatprep.subr.mxu0 0.0
    %1973 = vmatpush1.msra.mxu0 0.0
    %1974 = vmatprep.subr.mxu0 0.0
    %1975 = vmatpush1.msra.mxu0 0.0
    %1976 = vmatprep.subr.mxu0 0.0
    %1977 = vmatpush1.msra.mxu0 0.0
    %1978 = vmatprep.subr.mxu0 0.0
    %1979 = vmatpush1.msra.mxu0 0.0
    %1980 = vmatprep.subr.mxu0 0.0
    %1981 = vmatpush1.msra.mxu0 0.0
    %1982 = vmatprep.subr.mxu0 0.0
    %1983 = vmatpush1.msra.mxu0 0.0
    %1984 = vmatprep.subr.mxu0 0.0
    %1985 = vmatpush1.msra.mxu0 0.0
    %1986 = vmatprep.subr.mxu0 0.0
    %1987 = vmatpush1.msra.mxu0 0.0
    %1988 = vmatprep.subr.mxu0 0.0
    %1989 = vmatpush1.msra.mxu0 0.0
    %1990 = vmatprep.subr.mxu0 0.0
    %1991 = vmatpush1.msra.mxu0 0.0
    %1992 = vmatprep.subr.mxu0 0.0
    %1993 = vmatpush1.msra.mxu0 0.0
    %1994 = vmatprep.subr.mxu0 0.0
    %1995 = vmatpush1.msra.mxu0 0.0
    %1996 = vmatprep.subr.mxu0 0.0
    %1997 = vmatpush1.msra.mxu0 0.0
    %1998 = vmatprep.subr.mxu0 0.0
    %1999 = vmatpush1.msra.mxu0 0.0
    %2000 = vmatprep.subr.mxu0 0.0
    %2001 = vmatpush1.msra.mxu0 0.0
    %2002 = vmatprep.subr.mxu0 0.0
    %2003 = vmatpush1.msra.mxu0 0.0
    %2004 = vmatprep.subr.mxu0 0.0
    %2005 = vmatpush1.msra.mxu0 0.0
    %2006 = vmatprep.subr.mxu0 0.0
    %2007 = vmatpush1.msra.mxu0 0.0
    %2008 = vmatprep.subr.mxu0 0.0
    %2009 = vmatpush1.msra.mxu0 0.0
    %2010 = vmatprep.subr.mxu0 0.0
    %2011 = vmatpush1.msra.mxu0 0.0
    %2012 = vmatprep.mubr.f32.mxu0 0.0
    %2013 = vmatmul.mubr.f32.gmra.mrb[0].mxu0 %v1946
    %v2014 = vpop.f32.mrb[0].mxu0
    %v2015 = vadd.f32 0.0, %v2014
    %v2016 = vpop.f32.mrb[0].mxu0
    %2017 = vdwg.mxu0
    %v2018 = vadd.f32 %v1487, %v2015
    %v2019 = vtanh.pop %v2018
    %v2021 = vsel %vm208, %v2019, 0
    %2023 = vmatprep.subr.mxu0 0.0
    %2024 = vmatpush1.msra.mxu0 %v1328
    %2025 = vmatprep.subr.mxu0 0.0
    %2026 = vmatpush1.msra.mxu0 %v1329
    %2027 = vmatprep.subr.mxu0 0.0
    %2028 = vmatpush1.msra.mxu0 %v1330
    %2029 = vmatprep.subr.mxu0 0.0
    %2030 = vmatpush1.msra.mxu0 %v1331
    %2031 = vmatprep.subr.mxu0 0.0
    %2032 = vmatpush1.msra.mxu0 0.0
    %2033 = vmatprep.subr.mxu0 0.0
    %2034 = vmatpush1.msra.mxu0 0.0
    %2035 = vmatprep.subr.mxu0 0.0
    %2036 = vmatpush1.msra.mxu0 0.0
    %2037 = vmatprep.subr.mxu0 0.0
    %2038 = vmatpush1.msra.mxu0 0.0
    %2039 = vmatprep.subr.mxu0 0.0
    %2040 = vmatpush1.msra.mxu0 0.0
    %2041 = vmatprep.subr.mxu0 0.0
    %2042 = vmatpush1.msra.mxu0 0.0
    %2043 = vmatprep.subr.mxu0 0.0
    %2044 = vmatpush1.msra.mxu0 0.0
    %2045 = vmatprep.subr.mxu0 0.0
    %2046 = vmatpush1.msra.mxu0 0.0
    %2047 = vmatprep.subr.mxu0 0.0
    %2048 = vmatpush1.msra.mxu0 0.0
    %2049 = vmatprep.subr.mxu0 0.0
    %2050 = vmatpush1.msra.mxu0 0.0
    %2051 = vmatprep.subr.mxu0 0.0
    %2052 = vmatpush1.msra.mxu0 0.0
    %2053 = vmatprep.subr.mxu0 0.0
    %2054 = vmatpush1.msra.mxu0 0.0
    %2055 = vmatprep.subr.mxu0 0.0
    %2056 = vmatpush1.msra.mxu0 0.0
    %2057 = vmatprep.subr.mxu0 0.0
    %2058 = vmatpush1.msra.mxu0 0.0
    %2059 = vmatprep.subr.mxu0 0.0
    %2060 = vmatpush1.msra.mxu0 0.0
    %2061 = vmatprep.subr.mxu0 0.0
    %2062 = vmatpush1.msra.mxu0 0.0
    %2063 = vmatprep.subr.mxu0 0.0
    %2064 = vmatpush1.msra.mxu0 0.0
    %2065 = vmatprep.subr.mxu0 0.0
    %2066 = vmatpush1.msra.mxu0 0.0
    %2067 = vmatprep.subr.mxu0 0.0
    %2068 = vmatpush1.msra.mxu0 0.0
    %2069 = vmatprep.subr.mxu0 0.0
    %2070 = vmatpush1.msra.mxu0 0.0
    %2071 = vmatprep.subr.mxu0 0.0
    %2072 = vmatpush1.msra.mxu0 0.0
    %2073 = vmatprep.subr.mxu0 0.0
    %2074 = vmatpush1.msra.mxu0 0.0
    %2075 = vmatprep.subr.mxu0 0.0
    %2076 = vmatpush1.msra.mxu0 0.0
    %2077 = vmatprep.subr.mxu0 0.0
    %2078 = vmatpush1.msra.mxu0 0.0
    %2079 = vmatprep.subr.mxu0 0.0
    %2080 = vmatpush1.msra.mxu0 0.0
    %2081 = vmatprep.subr.mxu0 0.0
    %2082 = vmatpush1.msra.mxu0 0.0
    %2083 = vmatprep.subr.mxu0 0.0
    %2084 = vmatpush1.msra.mxu0 0.0
    %2085 = vmatprep.subr.mxu0 0.0
    %2086 = vmatpush1.msra.mxu0 0.0
    %2087 = vmatprep.mubr.f32.mxu0 0.0
    %2088 = vmatmul.mubr.f32.gmra.mrb[0].mxu0 %v2021
    %v2089 = vpop.f32.mrb[0].mxu0
    %v2090 = vadd.f32 0.0, %v2089
    %v2091 = vpop.f32.mrb[0].mxu0
    %2092 = vdwg.mxu0
    %v2093 = vadd.f32 %v1489, %v2090
    %v2094 = vtanh.pop %v2093
    %v2095 = vld [vmem:[%s7] sm:$0xff]
    %v2096 = vld [vmem:[%s7 + $0x8] sm:$0xff]
    %v2097 = vld [vmem:[%s7 + $0x10] sm:$0xff]
    %v2098 = vld [vmem:[%s7 + $0x18] sm:$0xff]
    %v2099 = vld [vmem:[#allocation10] sm:$0xff]
    %v2100 = vld [vmem:[#allocation10 + $0x8] sm:$0xff]
    %v2101 = vld [vmem:[#allocation10 + $0x10] sm:$0xff]
    %v2102 = vld [vmem:[#allocation10 + $0x18] sm:$0xff]
    %v2103 = vld [vmem:[%s9] sm:$0x1]
    %v2105 = vlaneseq
    %v2106 = vshrl.u32 %v2105, 7
    %v2107 = vsub.s32 0, %v2106
    %v2108 = vrot.slane %v2103, %v2107
    %v2111 = vcombine.low %v1569, %v1644
    %v2112 = vcombine.low %v1719, %v1794
    %v2114 = vunpack.c.l.s4 1983009808
    %v2115 = vunpack.c.0.s8 %v2114
    %v2116 = vlaneseq
    %v2117 = vshrl.u32 %v2116, 7
    %v2118 = vsub.s32 %v2115, %v2117
    %v2119 = vrot.slane %v2111, %v2118
    %v2121 = vunpack.c.l.s4 1983009808
    %v2122 = vunpack.c.0.s8 %v2121
    %v2123 = vlaneseq
    %v2124 = vshrl.u32 %v2123, 7
    %v2125 = vsub.s32 %v2122, %v2124
    %v2126 = vrot.slane %v2112, %v2125
    %v2127 = vcombine.low %v2119, %v2126
    %v2128 = vcombine.low %v1869, %v1944
    %v2129 = vcombine.low %v2019, %v2094
    %v2131 = vunpack.c.l.s4 1983009808
    %v2132 = vunpack.c.0.s8 %v2131
    %v2133 = vlaneseq
    %v2134 = vshrl.u32 %v2133, 7
    %v2135 = vsub.s32 %v2132, %v2134
    %v2136 = vrot.slane %v2128, %v2135
    %v2138 = vunpack.c.l.s4 1983009808
    %v2139 = vunpack.c.0.s8 %v2138
    %v2140 = vlaneseq
    %v2141 = vshrl.u32 %v2140, 7
    %v2142 = vsub.s32 %v2139, %v2141
    %v2143 = vrot.slane %v2129, %v2142
    %v2144 = vcombine.low %v2136, %v2143
    %v2145 = vsel %vm208, %v2127, 0
    %v2147 = vsel %vm208, %v2144, 0
    %2149 = vmatprep.subr.mxu0 0.0
    %2150 = vmatpush1.msra.mxu0 %v2095
    %2151 = vmatprep.subr.mxu0 0.0
    %2152 = vmatpush1.msra.mxu0 %v2096
    %2153 = vmatprep.subr.mxu0 0.0
    %2154 = vmatpush1.msra.mxu0 %v2097
    %2155 = vmatprep.subr.mxu0 0.0
    %2156 = vmatpush1.msra.mxu0 %v2098
    %2157 = vmatprep.subr.mxu0 0.0
    %2158 = vmatpush1.msra.mxu0 0.0
    %2159 = vmatprep.subr.mxu0 0.0
    %2160 = vmatpush1.msra.mxu0 0.0
    %2161 = vmatprep.subr.mxu0 0.0
    %2162 = vmatpush1.msra.mxu0 0.0
    %2163 = vmatprep.subr.mxu0 0.0
    %2164 = vmatpush1.msra.mxu0 0.0
    %2165 = vmatprep.subr.mxu0 0.0
    %2166 = vmatpush1.msra.mxu0 0.0
    %2167 = vmatprep.subr.mxu0 0.0
    %2168 = vmatpush1.msra.mxu0 0.0
    %2169 = vmatprep.subr.mxu0 0.0
    %2170 = vmatpush1.msra.mxu0 0.0
    %2171 = vmatprep.subr.mxu0 0.0
    %2172 = vmatpush1.msra.mxu0 0.0
    %2173 = vmatprep.subr.mxu0 0.0
    %2174 = vmatpush1.msra.mxu0 0.0
    %2175 = vmatprep.subr.mxu0 0.0
    %2176 = vmatpush1.msra.mxu0 0.0
    %2177 = vmatprep.subr.mxu0 0.0
    %2178 = vmatpush1.msra.mxu0 0.0
    %2179 = vmatprep.subr.mxu0 0.0
    %2180 = vmatpush1.msra.mxu0 0.0
    %2181 = vmatprep.subr.mxu0 0.0
    %2182 = vmatpush1.msra.mxu0 0.0
    %2183 = vmatprep.subr.mxu0 0.0
    %2184 = vmatpush1.msra.mxu0 0.0
    %2185 = vmatprep.subr.mxu0 0.0
    %2186 = vmatpush1.msra.mxu0 0.0
    %2187 = vmatprep.subr.mxu0 0.0
    %2188 = vmatpush1.msra.mxu0 0.0
    %2189 = vmatprep.subr.mxu0 0.0
    %2190 = vmatpush1.msra.mxu0 0.0
    %2191 = vmatprep.subr.mxu0 0.0
    %2192 = vmatpush1.msra.mxu0 0.0
    %2193 = vmatprep.subr.mxu0 0.0
    %2194 = vmatpush1.msra.mxu0 0.0
    %2195 = vmatprep.subr.mxu0 0.0
    %2196 = vmatpush1.msra.mxu0 0.0
    %2197 = vmatprep.subr.mxu0 0.0
    %2198 = vmatpush1.msra.mxu0 0.0
    %2199 = vmatprep.subr.mxu0 0.0
    %2200 = vmatpush1.msra.mxu0 0.0
    %2201 = vmatprep.subr.mxu0 0.0
    %2202 = vmatpush1.msra.mxu0 0.0
    %2203 = vmatprep.subr.mxu0 0.0
    %2204 = vmatpush1.msra.mxu0 0.0
    %2205 = vmatprep.subr.mxu0 0.0
    %2206 = vmatpush1.msra.mxu0 0.0
    %2207 = vmatprep.subr.mxu0 0.0
    %2208 = vmatpush1.msra.mxu0 0.0
    %2209 = vmatprep.subr.mxu0 0.0
    %2210 = vmatpush1.msra.mxu0 0.0
    %2211 = vmatprep.subr.mxu0 0.0
    %2212 = vmatpush1.msra.mxu0 0.0
    %2213 = vmatprep.mubr.f32.mxu0 0.0
    %2214 = vmatmul.mubr.f32.gmra.mrb[0].mxu0 %v2145
    %v2215 = vpop.f32.mrb[0].mxu0
    %v2216 = vadd.f32 %v2108, %v2215
    %v2217 = vpop.f32.mrb[0].mxu0
    %2218 = vmatprep.mubr.f32.mxu0 0.0
    %2219 = vmatmul.mubr.f32.gmra.mrb[0].mxu0 %v2147
    %v2220 = vpop.f32.mrb[0].mxu0
    %v2221 = vadd.f32 %v2108, %v2220
    %v2222 = vpop.f32.mrb[0].mxu0
    %2223 = vdwg.mxu0
    %v2226 = vcombine.high %v2216, %v2216
    %v2228 = vunpack.c.l.s4 1983009808
    %v2229 = vunpack.c.0.s8 %v2228
    %v2230 = vlaneseq
    %v2231 = vshrl.u32 %v2230, 7
    %v2232 = vsub.s32 %v2229, %v2231
    %v2233 = vrot.slane %v2216, %v2232
    %v2235 = vunpack.c.l.s4 1983009808
    %v2236 = vunpack.c.0.s8 %v2235
    %v2237 = vlaneseq
    %v2238 = vshrl.u32 %v2237, 7
    %v2239 = vsub.s32 %v2236, %v2238
    %v2240 = vrot.slane %v2226, %v2239
    %v2241 = vcombine.high %v2233, %v2233
    %v2242 = vcombine.high %v2240, %v2240
    %v2243 = vcombine.high %v2221, %v2221
    %v2245 = vunpack.c.l.s4 1983009808
    %v2246 = vunpack.c.0.s8 %v2245
    %v2247 = vlaneseq
    %v2248 = vshrl.u32 %v2247, 7
    %v2249 = vsub.s32 %v2246, %v2248
    %v2250 = vrot.slane %v2221, %v2249
    %v2252 = vunpack.c.l.s4 1983009808
    %v2253 = vunpack.c.0.s8 %v2252
    %v2254 = vlaneseq
    %v2255 = vshrl.u32 %v2254, 7
    %v2256 = vsub.s32 %v2253, %v2255
    %v2257 = vrot.slane %v2243, %v2256
    %v2258 = vcombine.high %v2250, %v2250
    %v2259 = vcombine.high %v2257, %v2257
    %2268 = vmatprep.subr.mxu0 0.0
    %2269 = vmatpush1.msra.mxu0 %v2099
    %2270 = vmatprep.subr.mxu0 0.0
    %2271 = vmatpush1.msra.mxu0 %v2100
    %2272 = vmatprep.subr.mxu0 0.0
    %2273 = vmatpush1.msra.mxu0 %v2101
    %2274 = vmatprep.subr.mxu0 0.0
    %2275 = vmatpush1.msra.mxu0 %v2102
    %2276 = vmatprep.subr.mxu0 0.0
    %2277 = vmatpush1.msra.mxu0 0.0
    %2278 = vmatprep.subr.mxu0 0.0
    %2279 = vmatpush1.msra.mxu0 0.0
    %2280 = vmatprep.subr.mxu0 0.0
    %2281 = vmatpush1.msra.mxu0 0.0
    %2282 = vmatprep.subr.mxu0 0.0
    %2283 = vmatpush1.msra.mxu0 0.0
    %2284 = vmatprep.subr.mxu0 0.0
    %2285 = vmatpush1.msra.mxu0 0.0
    %2286 = vmatprep.subr.mxu0 0.0
    %2287 = vmatpush1.msra.mxu0 0.0
    %2288 = vmatprep.subr.mxu0 0.0
    %2289 = vmatpush1.msra.mxu0 0.0
    %2290 = vmatprep.subr.mxu0 0.0
    %2291 = vmatpush1.msra.mxu0 0.0
    %2292 = vmatprep.subr.mxu0 0.0
    %2293 = vmatpush1.msra.mxu0 0.0
    %2294 = vmatprep.subr.mxu0 0.0
    %2295 = vmatpush1.msra.mxu0 0.0
    %2296 = vmatprep.subr.mxu0 0.0
    %2297 = vmatpush1.msra.mxu0 0.0
    %2298 = vmatprep.subr.mxu0 0.0
    %2299 = vmatpush1.msra.mxu0 0.0
    %2300 = vmatprep.subr.mxu0 0.0
    %2301 = vmatpush1.msra.mxu0 0.0
    %2302 = vmatprep.subr.mxu0 0.0
    %2303 = vmatpush1.msra.mxu0 0.0
    %2304 = vmatprep.subr.mxu0 0.0
    %2305 = vmatpush1.msra.mxu0 0.0
    %2306 = vmatprep.subr.mxu0 0.0
    %2307 = vmatpush1.msra.mxu0 0.0
    %2308 = vmatprep.subr.mxu0 0.0
    %2309 = vmatpush1.msra.mxu0 0.0
    %2310 = vmatprep.subr.mxu0 0.0
    %2311 = vmatpush1.msra.mxu0 0.0
    %2312 = vmatprep.subr.mxu0 0.0
    %2313 = vmatpush1.msra.mxu0 0.0
    %2314 = vmatprep.subr.mxu0 0.0
    %2315 = vmatpush1.msra.mxu0 0.0
    %2316 = vmatprep.subr.mxu0 0.0
    %2317 = vmatpush1.msra.mxu0 0.0
    %2318 = vmatprep.subr.mxu0 0.0
    %2319 = vmatpush1.msra.mxu0 0.0
    %2320 = vmatprep.subr.mxu0 0.0
    %2321 = vmatpush1.msra.mxu0 0.0
    %2322 = vmatprep.subr.mxu0 0.0
    %2323 = vmatpush1.msra.mxu0 0.0
    %2324 = vmatprep.subr.mxu0 0.0
    %2325 = vmatpush1.msra.mxu0 0.0
    %2326 = vmatprep.subr.mxu0 0.0
    %2327 = vmatpush1.msra.mxu0 0.0
    %2328 = vmatprep.subr.mxu0 0.0
    %2329 = vmatpush1.msra.mxu0 0.0
    %2330 = vmatprep.subr.mxu0 0.0
    %2331 = vmatpush1.msra.mxu0 0.0
    %2332 = vmatprep.mubr.f32.mxu0 0.0
    %2333 = vmatmul.mubr.f32.gmra.mrb[0].mxu0 %v210
    %v2334 = vpop.f32.mrb[0].mxu0
    %v2335 = vadd.f32 0.0, %v2334
    %v2336 = vpop.f32.mrb[0].mxu0
    %2337 = vdwg.mxu0
    %v2338 = vadd.f32 %v2233, %v2335
    %v2339 = vtanh.pop %v2338
    %v2341 = vsel %vm208, %v2339, 0
    %2343 = vmatprep.subr.mxu0 0.0
    %2344 = vmatpush1.msra.mxu0 %v2099
    %2345 = vmatprep.subr.mxu0 0.0
    %2346 = vmatpush1.msra.mxu0 %v2100
    %2347 = vmatprep.subr.mxu0 0.0
    %2348 = vmatpush1.msra.mxu0 %v2101
    %2349 = vmatprep.subr.mxu0 0.0
    %2350 = vmatpush1.msra.mxu0 %v2102
    %2351 = vmatprep.subr.mxu0 0.0
    %2352 = vmatpush1.msra.mxu0 0.0
    %2353 = vmatprep.subr.mxu0 0.0
    %2354 = vmatpush1.msra.mxu0 0.0
    %2355 = vmatprep.subr.mxu0 0.0
    %2356 = vmatpush1.msra.mxu0 0.0
    %2357 = vmatprep.subr.mxu0 0.0
    %2358 = vmatpush1.msra.mxu0 0.0
    %2359 = vmatprep.subr.mxu0 0.0
    %2360 = vmatpush1.msra.mxu0 0.0
    %2361 = vmatprep.subr.mxu0 0.0
    %2362 = vmatpush1.msra.mxu0 0.0
    %2363 = vmatprep.subr.mxu0 0.0
    %2364 = vmatpush1.msra.mxu0 0.0
    %2365 = vmatprep.subr.mxu0 0.0
    %2366 = vmatpush1.msra.mxu0 0.0
    %2367 = vmatprep.subr.mxu0 0.0
    %2368 = vmatpush1.msra.mxu0 0.0
    %2369 = vmatprep.subr.mxu0 0.0
    %2370 = vmatpush1.msra.mxu0 0.0
    %2371 = vmatprep.subr.mxu0 0.0
    %2372 = vmatpush1.msra.mxu0 0.0
    %2373 = vmatprep.subr.mxu0 0.0
    %2374 = vmatpush1.msra.mxu0 0.0
    %2375 = vmatprep.subr.mxu0 0.0
    %2376 = vmatpush1.msra.mxu0 0.0
    %2377 = vmatprep.subr.mxu0 0.0
    %2378 = vmatpush1.msra.mxu0 0.0
    %2379 = vmatprep.subr.mxu0 0.0
    %2380 = vmatpush1.msra.mxu0 0.0
    %2381 = vmatprep.subr.mxu0 0.0
    %2382 = vmatpush1.msra.mxu0 0.0
    %2383 = vmatprep.subr.mxu0 0.0
    %2384 = vmatpush1.msra.mxu0 0.0
    %2385 = vmatprep.subr.mxu0 0.0
    %2386 = vmatpush1.msra.mxu0 0.0
    %2387 = vmatprep.subr.mxu0 0.0
    %2388 = vmatpush1.msra.mxu0 0.0
    %2389 = vmatprep.subr.mxu0 0.0
    %2390 = vmatpush1.msra.mxu0 0.0
    %2391 = vmatprep.subr.mxu0 0.0
    %2392 = vmatpush1.msra.mxu0 0.0
    %2393 = vmatprep.subr.mxu0 0.0
    %2394 = vmatpush1.msra.mxu0 0.0
    %2395 = vmatprep.subr.mxu0 0.0
    %2396 = vmatpush1.msra.mxu0 0.0
    %2397 = vmatprep.subr.mxu0 0.0
    %2398 = vmatpush1.msra.mxu0 0.0
    %2399 = vmatprep.subr.mxu0 0.0
    %2400 = vmatpush1.msra.mxu0 0.0
    %2401 = vmatprep.subr.mxu0 0.0
    %2402 = vmatpush1.msra.mxu0 0.0
    %2403 = vmatprep.subr.mxu0 0.0
    %2404 = vmatpush1.msra.mxu0 0.0
    %2405 = vmatprep.subr.mxu0 0.0
    %2406 = vmatpush1.msra.mxu0 0.0
    %2407 = vmatprep.mubr.f32.mxu0 0.0
    %2408 = vmatmul.mubr.f32.gmra.mrb[0].mxu0 %v2341
    %v2409 = vpop.f32.mrb[0].mxu0
    %v2410 = vadd.f32 0.0, %v2409
    %v2411 = vpop.f32.mrb[0].mxu0
    %2412 = vdwg.mxu0
    %v2413 = vadd.f32 %v2241, %v2410
    %v2414 = vtanh.pop %v2413
    %v2416 = vsel %vm208, %v2414, 0
    %2418 = vmatprep.subr.mxu0 0.0
    %2419 = vmatpush1.msra.mxu0 %v2099
    %2420 = vmatprep.subr.mxu0 0.0
    %2421 = vmatpush1.msra.mxu0 %v2100
    %2422 = vmatprep.subr.mxu0 0.0
    %2423 = vmatpush1.msra.mxu0 %v2101
    %2424 = vmatprep.subr.mxu0 0.0
    %2425 = vmatpush1.msra.mxu0 %v2102
    %2426 = vmatprep.subr.mxu0 0.0
    %2427 = vmatpush1.msra.mxu0 0.0
    %2428 = vmatprep.subr.mxu0 0.0
    %2429 = vmatpush1.msra.mxu0 0.0
    %2430 = vmatprep.subr.mxu0 0.0
    %2431 = vmatpush1.msra.mxu0 0.0
    %2432 = vmatprep.subr.mxu0 0.0
    %2433 = vmatpush1.msra.mxu0 0.0
    %2434 = vmatprep.subr.mxu0 0.0
    %2435 = vmatpush1.msra.mxu0 0.0
    %2436 = vmatprep.subr.mxu0 0.0
    %2437 = vmatpush1.msra.mxu0 0.0
    %2438 = vmatprep.subr.mxu0 0.0
    %2439 = vmatpush1.msra.mxu0 0.0
    %2440 = vmatprep.subr.mxu0 0.0
    %2441 = vmatpush1.msra.mxu0 0.0
    %2442 = vmatprep.subr.mxu0 0.0
    %2443 = vmatpush1.msra.mxu0 0.0
    %2444 = vmatprep.subr.mxu0 0.0
    %2445 = vmatpush1.msra.mxu0 0.0
    %2446 = vmatprep.subr.mxu0 0.0
    %2447 = vmatpush1.msra.mxu0 0.0
    %2448 = vmatprep.subr.mxu0 0.0
    %2449 = vmatpush1.msra.mxu0 0.0
    %2450 = vmatprep.subr.mxu0 0.0
    %2451 = vmatpush1.msra.mxu0 0.0
    %2452 = vmatprep.subr.mxu0 0.0
    %2453 = vmatpush1.msra.mxu0 0.0
    %2454 = vmatprep.subr.mxu0 0.0
    %2455 = vmatpush1.msra.mxu0 0.0
    %2456 = vmatprep.subr.mxu0 0.0
    %2457 = vmatpush1.msra.mxu0 0.0
    %2458 = vmatprep.subr.mxu0 0.0
    %2459 = vmatpush1.msra.mxu0 0.0
    %2460 = vmatprep.subr.mxu0 0.0
    %2461 = vmatpush1.msra.mxu0 0.0
    %2462 = vmatprep.subr.mxu0 0.0
    %2463 = vmatpush1.msra.mxu0 0.0
    %2464 = vmatprep.subr.mxu0 0.0
    %2465 = vmatpush1.msra.mxu0 0.0
    %2466 = vmatprep.subr.mxu0 0.0
    %2467 = vmatpush1.msra.mxu0 0.0
    %2468 = vmatprep.subr.mxu0 0.0
    %2469 = vmatpush1.msra.mxu0 0.0
    %2470 = vmatprep.subr.mxu0 0.0
    %2471 = vmatpush1.msra.mxu0 0.0
    %2472 = vmatprep.subr.mxu0 0.0
    %2473 = vmatpush1.msra.mxu0 0.0
    %2474 = vmatprep.subr.mxu0 0.0
    %2475 = vmatpush1.msra.mxu0 0.0
    %2476 = vmatprep.subr.mxu0 0.0
    %2477 = vmatpush1.msra.mxu0 0.0
    %2478 = vmatprep.subr.mxu0 0.0
    %2479 = vmatpush1.msra.mxu0 0.0
    %2480 = vmatprep.subr.mxu0 0.0
    %2481 = vmatpush1.msra.mxu0 0.0
    %2482 = vmatprep.mubr.f32.mxu0 0.0
    %2483 = vmatmul.mubr.f32.gmra.mrb[0].mxu0 %v2416
    %v2484 = vpop.f32.mrb[0].mxu0
    %v2485 = vadd.f32 0.0, %v2484
    %v2486 = vpop.f32.mrb[0].mxu0
    %2487 = vdwg.mxu0
    %v2488 = vadd.f32 %v2240, %v2485
    %v2489 = vtanh.pop %v2488
    %v2491 = vsel %vm208, %v2489, 0
    %2493 = vmatprep.subr.mxu0 0.0
    %2494 = vmatpush1.msra.mxu0 %v2099
    %2495 = vmatprep.subr.mxu0 0.0
    %2496 = vmatpush1.msra.mxu0 %v2100
    %2497 = vmatprep.subr.mxu0 0.0
    %2498 = vmatpush1.msra.mxu0 %v2101
    %2499 = vmatprep.subr.mxu0 0.0
    %2500 = vmatpush1.msra.mxu0 %v2102
    %2501 = vmatprep.subr.mxu0 0.0
    %2502 = vmatpush1.msra.mxu0 0.0
    %2503 = vmatprep.subr.mxu0 0.0
    %2504 = vmatpush1.msra.mxu0 0.0
    %2505 = vmatprep.subr.mxu0 0.0
    %2506 = vmatpush1.msra.mxu0 0.0
    %2507 = vmatprep.subr.mxu0 0.0
    %2508 = vmatpush1.msra.mxu0 0.0
    %2509 = vmatprep.subr.mxu0 0.0
    %2510 = vmatpush1.msra.mxu0 0.0
    %2511 = vmatprep.subr.mxu0 0.0
    %2512 = vmatpush1.msra.mxu0 0.0
    %2513 = vmatprep.subr.mxu0 0.0
    %2514 = vmatpush1.msra.mxu0 0.0
    %2515 = vmatprep.subr.mxu0 0.0
    %2516 = vmatpush1.msra.mxu0 0.0
    %2517 = vmatprep.subr.mxu0 0.0
    %2518 = vmatpush1.msra.mxu0 0.0
    %2519 = vmatprep.subr.mxu0 0.0
    %2520 = vmatpush1.msra.mxu0 0.0
    %2521 = vmatprep.subr.mxu0 0.0
    %2522 = vmatpush1.msra.mxu0 0.0
    %2523 = vmatprep.subr.mxu0 0.0
    %2524 = vmatpush1.msra.mxu0 0.0
    %2525 = vmatprep.subr.mxu0 0.0
    %2526 = vmatpush1.msra.mxu0 0.0
    %2527 = vmatprep.subr.mxu0 0.0
    %2528 = vmatpush1.msra.mxu0 0.0
    %2529 = vmatprep.subr.mxu0 0.0
    %2530 = vmatpush1.msra.mxu0 0.0
    %2531 = vmatprep.subr.mxu0 0.0
    %2532 = vmatpush1.msra.mxu0 0.0
    %2533 = vmatprep.subr.mxu0 0.0
    %2534 = vmatpush1.msra.mxu0 0.0
    %2535 = vmatprep.subr.mxu0 0.0
    %2536 = vmatpush1.msra.mxu0 0.0
    %2537 = vmatprep.subr.mxu0 0.0
    %2538 = vmatpush1.msra.mxu0 0.0
    %2539 = vmatprep.subr.mxu0 0.0
    %2540 = vmatpush1.msra.mxu0 0.0
    %2541 = vmatprep.subr.mxu0 0.0
    %2542 = vmatpush1.msra.mxu0 0.0
    %2543 = vmatprep.subr.mxu0 0.0
    %2544 = vmatpush1.msra.mxu0 0.0
    %2545 = vmatprep.subr.mxu0 0.0
    %2546 = vmatpush1.msra.mxu0 0.0
    %2547 = vmatprep.subr.mxu0 0.0
    %2548 = vmatpush1.msra.mxu0 0.0
    %2549 = vmatprep.subr.mxu0 0.0
    %2550 = vmatpush1.msra.mxu0 0.0
    %2551 = vmatprep.subr.mxu0 0.0
    %2552 = vmatpush1.msra.mxu0 0.0
    %2553 = vmatprep.subr.mxu0 0.0
    %2554 = vmatpush1.msra.mxu0 0.0
    %2555 = vmatprep.subr.mxu0 0.0
    %2556 = vmatpush1.msra.mxu0 0.0
    %2557 = vmatprep.mubr.f32.mxu0 0.0
    %2558 = vmatmul.mubr.f32.gmra.mrb[0].mxu0 %v2491
    %v2559 = vpop.f32.mrb[0].mxu0
    %v2560 = vadd.f32 0.0, %v2559
    %v2561 = vpop.f32.mrb[0].mxu0
    %2562 = vdwg.mxu0
    %v2563 = vadd.f32 %v2242, %v2560
    %v2564 = vtanh.pop %v2563
    %v2566 = vsel %vm208, %v2564, 0
    %2568 = vmatprep.subr.mxu0 0.0
    %2569 = vmatpush1.msra.mxu0 %v2099
    %2570 = vmatprep.subr.mxu0 0.0
    %2571 = vmatpush1.msra.mxu0 %v2100
    %2572 = vmatprep.subr.mxu0 0.0
    %2573 = vmatpush1.msra.mxu0 %v2101
    %2574 = vmatprep.subr.mxu0 0.0
    %2575 = vmatpush1.msra.mxu0 %v2102
    %2576 = vmatprep.subr.mxu0 0.0
    %2577 = vmatpush1.msra.mxu0 0.0
    %2578 = vmatprep.subr.mxu0 0.0
    %2579 = vmatpush1.msra.mxu0 0.0
    %2580 = vmatprep.subr.mxu0 0.0
    %2581 = vmatpush1.msra.mxu0 0.0
    %2582 = vmatprep.subr.mxu0 0.0
    %2583 = vmatpush1.msra.mxu0 0.0
    %2584 = vmatprep.subr.mxu0 0.0
    %2585 = vmatpush1.msra.mxu0 0.0
    %2586 = vmatprep.subr.mxu0 0.0
    %2587 = vmatpush1.msra.mxu0 0.0
    %2588 = vmatprep.subr.mxu0 0.0
    %2589 = vmatpush1.msra.mxu0 0.0
    %2590 = vmatprep.subr.mxu0 0.0
    %2591 = vmatpush1.msra.mxu0 0.0
    %2592 = vmatprep.subr.mxu0 0.0
    %2593 = vmatpush1.msra.mxu0 0.0
    %2594 = vmatprep.subr.mxu0 0.0
    %2595 = vmatpush1.msra.mxu0 0.0
    %2596 = vmatprep.subr.mxu0 0.0
    %2597 = vmatpush1.msra.mxu0 0.0
    %2598 = vmatprep.subr.mxu0 0.0
    %2599 = vmatpush1.msra.mxu0 0.0
    %2600 = vmatprep.subr.mxu0 0.0
    %2601 = vmatpush1.msra.mxu0 0.0
    %2602 = vmatprep.subr.mxu0 0.0
    %2603 = vmatpush1.msra.mxu0 0.0
    %2604 = vmatprep.subr.mxu0 0.0
    %2605 = vmatpush1.msra.mxu0 0.0
    %2606 = vmatprep.subr.mxu0 0.0
    %2607 = vmatpush1.msra.mxu0 0.0
    %2608 = vmatprep.subr.mxu0 0.0
    %2609 = vmatpush1.msra.mxu0 0.0
    %2610 = vmatprep.subr.mxu0 0.0
    %2611 = vmatpush1.msra.mxu0 0.0
    %2612 = vmatprep.subr.mxu0 0.0
    %2613 = vmatpush1.msra.mxu0 0.0
    %2614 = vmatprep.subr.mxu0 0.0
    %2615 = vmatpush1.msra.mxu0 0.0
    %2616 = vmatprep.subr.mxu0 0.0
    %2617 = vmatpush1.msra.mxu0 0.0
    %2618 = vmatprep.subr.mxu0 0.0
    %2619 = vmatpush1.msra.mxu0 0.0
    %2620 = vmatprep.subr.mxu0 0.0
    %2621 = vmatpush1.msra.mxu0 0.0
    %2622 = vmatprep.subr.mxu0 0.0
    %2623 = vmatpush1.msra.mxu0 0.0
    %2624 = vmatprep.subr.mxu0 0.0
    %2625 = vmatpush1.msra.mxu0 0.0
    %2626 = vmatprep.subr.mxu0 0.0
    %2627 = vmatpush1.msra.mxu0 0.0
    %2628 = vmatprep.subr.mxu0 0.0
    %2629 = vmatpush1.msra.mxu0 0.0
    %2630 = vmatprep.subr.mxu0 0.0
    %2631 = vmatpush1.msra.mxu0 0.0
    %2632 = vmatprep.mubr.f32.mxu0 0.0
    %2633 = vmatmul.mubr.f32.gmra.mrb[0].mxu0 %v2566
    %v2634 = vpop.f32.mrb[0].mxu0
    %v2635 = vadd.f32 0.0, %v2634
    %v2636 = vpop.f32.mrb[0].mxu0
    %2637 = vdwg.mxu0
    %v2638 = vadd.f32 %v2250, %v2635
    %v2639 = vtanh.pop %v2638
    %v2641 = vsel %vm208, %v2639, 0
    %2643 = vmatprep.subr.mxu0 0.0
    %2644 = vmatpush1.msra.mxu0 %v2099
    %2645 = vmatprep.subr.mxu0 0.0
    %2646 = vmatpush1.msra.mxu0 %v2100
    %2647 = vmatprep.subr.mxu0 0.0
    %2648 = vmatpush1.msra.mxu0 %v2101
    %2649 = vmatprep.subr.mxu0 0.0
    %2650 = vmatpush1.msra.mxu0 %v2102
    %2651 = vmatprep.subr.mxu0 0.0
    %2652 = vmatpush1.msra.mxu0 0.0
    %2653 = vmatprep.subr.mxu0 0.0
    %2654 = vmatpush1.msra.mxu0 0.0
    %2655 = vmatprep.subr.mxu0 0.0
    %2656 = vmatpush1.msra.mxu0 0.0
    %2657 = vmatprep.subr.mxu0 0.0
    %2658 = vmatpush1.msra.mxu0 0.0
    %2659 = vmatprep.subr.mxu0 0.0
    %2660 = vmatpush1.msra.mxu0 0.0
    %2661 = vmatprep.subr.mxu0 0.0
    %2662 = vmatpush1.msra.mxu0 0.0
    %2663 = vmatprep.subr.mxu0 0.0
    %2664 = vmatpush1.msra.mxu0 0.0
    %2665 = vmatprep.subr.mxu0 0.0
    %2666 = vmatpush1.msra.mxu0 0.0
    %2667 = vmatprep.subr.mxu0 0.0
    %2668 = vmatpush1.msra.mxu0 0.0
    %2669 = vmatprep.subr.mxu0 0.0
    %2670 = vmatpush1.msra.mxu0 0.0
    %2671 = vmatprep.subr.mxu0 0.0
    %2672 = vmatpush1.msra.mxu0 0.0
    %2673 = vmatprep.subr.mxu0 0.0
    %2674 = vmatpush1.msra.mxu0 0.0
    %2675 = vmatprep.subr.mxu0 0.0
    %2676 = vmatpush1.msra.mxu0 0.0
    %2677 = vmatprep.subr.mxu0 0.0
    %2678 = vmatpush1.msra.mxu0 0.0
    %2679 = vmatprep.subr.mxu0 0.0
    %2680 = vmatpush1.msra.mxu0 0.0
    %2681 = vmatprep.subr.mxu0 0.0
    %2682 = vmatpush1.msra.mxu0 0.0
    %2683 = vmatprep.subr.mxu0 0.0
    %2684 = vmatpush1.msra.mxu0 0.0
    %2685 = vmatprep.subr.mxu0 0.0
    %2686 = vmatpush1.msra.mxu0 0.0
    %2687 = vmatprep.subr.mxu0 0.0
    %2688 = vmatpush1.msra.mxu0 0.0
    %2689 = vmatprep.subr.mxu0 0.0
    %2690 = vmatpush1.msra.mxu0 0.0
    %2691 = vmatprep.subr.mxu0 0.0
    %2692 = vmatpush1.msra.mxu0 0.0
    %2693 = vmatprep.subr.mxu0 0.0
    %2694 = vmatpush1.msra.mxu0 0.0
    %2695 = vmatprep.subr.mxu0 0.0
    %2696 = vmatpush1.msra.mxu0 0.0
    %2697 = vmatprep.subr.mxu0 0.0
    %2698 = vmatpush1.msra.mxu0 0.0
    %2699 = vmatprep.subr.mxu0 0.0
    %2700 = vmatpush1.msra.mxu0 0.0
    %2701 = vmatprep.subr.mxu0 0.0
    %2702 = vmatpush1.msra.mxu0 0.0
    %2703 = vmatprep.subr.mxu0 0.0
    %2704 = vmatpush1.msra.mxu0 0.0
    %2705 = vmatprep.subr.mxu0 0.0
    %2706 = vmatpush1.msra.mxu0 0.0
    %2707 = vmatprep.mubr.f32.mxu0 0.0
    %2708 = vmatmul.mubr.f32.gmra.mrb[0].mxu0 %v2641
    %v2709 = vpop.f32.mrb[0].mxu0
    %v2710 = vadd.f32 0.0, %v2709
    %v2711 = vpop.f32.mrb[0].mxu0
    %2712 = vdwg.mxu0
    %v2713 = vadd.f32 %v2258, %v2710
    %v2714 = vtanh.pop %v2713
    %v2716 = vsel %vm208, %v2714, 0
    %2718 = vmatprep.subr.mxu0 0.0
    %2719 = vmatpush1.msra.mxu0 %v2099
    %2720 = vmatprep.subr.mxu0 0.0
    %2721 = vmatpush1.msra.mxu0 %v2100
    %2722 = vmatprep.subr.mxu0 0.0
    %2723 = vmatpush1.msra.mxu0 %v2101
    %2724 = vmatprep.subr.mxu0 0.0
    %2725 = vmatpush1.msra.mxu0 %v2102
    %2726 = vmatprep.subr.mxu0 0.0
    %2727 = vmatpush1.msra.mxu0 0.0
    %2728 = vmatprep.subr.mxu0 0.0
    %2729 = vmatpush1.msra.mxu0 0.0
    %2730 = vmatprep.subr.mxu0 0.0
    %2731 = vmatpush1.msra.mxu0 0.0
    %2732 = vmatprep.subr.mxu0 0.0
    %2733 = vmatpush1.msra.mxu0 0.0
    %2734 = vmatprep.subr.mxu0 0.0
    %2735 = vmatpush1.msra.mxu0 0.0
    %2736 = vmatprep.subr.mxu0 0.0
    %2737 = vmatpush1.msra.mxu0 0.0
    %2738 = vmatprep.subr.mxu0 0.0
    %2739 = vmatpush1.msra.mxu0 0.0
    %2740 = vmatprep.subr.mxu0 0.0
    %2741 = vmatpush1.msra.mxu0 0.0
    %2742 = vmatprep.subr.mxu0 0.0
    %2743 = vmatpush1.msra.mxu0 0.0
    %2744 = vmatprep.subr.mxu0 0.0
    %2745 = vmatpush1.msra.mxu0 0.0
    %2746 = vmatprep.subr.mxu0 0.0
    %2747 = vmatpush1.msra.mxu0 0.0
    %2748 = vmatprep.subr.mxu0 0.0
    %2749 = vmatpush1.msra.mxu0 0.0
    %2750 = vmatprep.subr.mxu0 0.0
    %2751 = vmatpush1.msra.mxu0 0.0
    %2752 = vmatprep.subr.mxu0 0.0
    %2753 = vmatpush1.msra.mxu0 0.0
    %2754 = vmatprep.subr.mxu0 0.0
    %2755 = vmatpush1.msra.mxu0 0.0
    %2756 = vmatprep.subr.mxu0 0.0
    %2757 = vmatpush1.msra.mxu0 0.0
    %2758 = vmatprep.subr.mxu0 0.0
    %2759 = vmatpush1.msra.mxu0 0.0
    %2760 = vmatprep.subr.mxu0 0.0
    %2761 = vmatpush1.msra.mxu0 0.0
    %2762 = vmatprep.subr.mxu0 0.0
    %2763 = vmatpush1.msra.mxu0 0.0
    %2764 = vmatprep.subr.mxu0 0.0
    %2765 = vmatpush1.msra.mxu0 0.0
    %2766 = vmatprep.subr.mxu0 0.0
    %2767 = vmatpush1.msra.mxu0 0.0
    %2768 = vmatprep.subr.mxu0 0.0
    %2769 = vmatpush1.msra.mxu0 0.0
    %2770 = vmatprep.subr.mxu0 0.0
    %2771 = vmatpush1.msra.mxu0 0.0
    %2772 = vmatprep.subr.mxu0 0.0
    %2773 = vmatpush1.msra.mxu0 0.0
    %2774 = vmatprep.subr.mxu0 0.0
    %2775 = vmatpush1.msra.mxu0 0.0
    %2776 = vmatprep.subr.mxu0 0.0
    %2777 = vmatpush1.msra.mxu0 0.0
    %2778 = vmatprep.subr.mxu0 0.0
    %2779 = vmatpush1.msra.mxu0 0.0
    %2780 = vmatprep.subr.mxu0 0.0
    %2781 = vmatpush1.msra.mxu0 0.0
    %2782 = vmatprep.mubr.f32.mxu0 0.0
    %2783 = vmatmul.mubr.f32.gmra.mrb[0].mxu0 %v2716
    %v2784 = vpop.f32.mrb[0].mxu0
    %v2785 = vadd.f32 0.0, %v2784
    %v2786 = vpop.f32.mrb[0].mxu0
    %2787 = vdwg.mxu0
    %v2788 = vadd.f32 %v2257, %v2785
    %v2789 = vtanh.pop %v2788
    %v2791 = vsel %vm208, %v2789, 0
    %2793 = vmatprep.subr.mxu0 0.0
    %2794 = vmatpush1.msra.mxu0 %v2099
    %2795 = vmatprep.subr.mxu0 0.0
    %2796 = vmatpush1.msra.mxu0 %v2100
    %2797 = vmatprep.subr.mxu0 0.0
    %2798 = vmatpush1.msra.mxu0 %v2101
    %2799 = vmatprep.subr.mxu0 0.0
    %2800 = vmatpush1.msra.mxu0 %v2102
    %2801 = vmatprep.subr.mxu0 0.0
    %2802 = vmatpush1.msra.mxu0 0.0
    %2803 = vmatprep.subr.mxu0 0.0
    %2804 = vmatpush1.msra.mxu0 0.0
    %2805 = vmatprep.subr.mxu0 0.0
    %2806 = vmatpush1.msra.mxu0 0.0
    %2807 = vmatprep.subr.mxu0 0.0
    %2808 = vmatpush1.msra.mxu0 0.0
    %2809 = vmatprep.subr.mxu0 0.0
    %2810 = vmatpush1.msra.mxu0 0.0
    %2811 = vmatprep.subr.mxu0 0.0
    %2812 = vmatpush1.msra.mxu0 0.0
    %2813 = vmatprep.subr.mxu0 0.0
    %2814 = vmatpush1.msra.mxu0 0.0
    %2815 = vmatprep.subr.mxu0 0.0
    %2816 = vmatpush1.msra.mxu0 0.0
    %2817 = vmatprep.subr.mxu0 0.0
    %2818 = vmatpush1.msra.mxu0 0.0
    %2819 = vmatprep.subr.mxu0 0.0
    %2820 = vmatpush1.msra.mxu0 0.0
    %2821 = vmatprep.subr.mxu0 0.0
    %2822 = vmatpush1.msra.mxu0 0.0
    %2823 = vmatprep.subr.mxu0 0.0
    %2824 = vmatpush1.msra.mxu0 0.0
    %2825 = vmatprep.subr.mxu0 0.0
    %2826 = vmatpush1.msra.mxu0 0.0
    %2827 = vmatprep.subr.mxu0 0.0
    %2828 = vmatpush1.msra.mxu0 0.0
    %2829 = vmatprep.subr.mxu0 0.0
    %2830 = vmatpush1.msra.mxu0 0.0
    %2831 = vmatprep.subr.mxu0 0.0
    %2832 = vmatpush1.msra.mxu0 0.0
    %2833 = vmatprep.subr.mxu0 0.0
    %2834 = vmatpush1.msra.mxu0 0.0
    %2835 = vmatprep.subr.mxu0 0.0
    %2836 = vmatpush1.msra.mxu0 0.0
    %2837 = vmatprep.subr.mxu0 0.0
    %2838 = vmatpush1.msra.mxu0 0.0
    %2839 = vmatprep.subr.mxu0 0.0
    %2840 = vmatpush1.msra.mxu0 0.0
    %2841 = vmatprep.subr.mxu0 0.0
    %2842 = vmatpush1.msra.mxu0 0.0
    %2843 = vmatprep.subr.mxu0 0.0
    %2844 = vmatpush1.msra.mxu0 0.0
    %2845 = vmatprep.subr.mxu0 0.0
    %2846 = vmatpush1.msra.mxu0 0.0
    %2847 = vmatprep.subr.mxu0 0.0
    %2848 = vmatpush1.msra.mxu0 0.0
    %2849 = vmatprep.subr.mxu0 0.0
    %2850 = vmatpush1.msra.mxu0 0.0
    %2851 = vmatprep.subr.mxu0 0.0
    %2852 = vmatpush1.msra.mxu0 0.0
    %2853 = vmatprep.subr.mxu0 0.0
    %2854 = vmatpush1.msra.mxu0 0.0
    %2855 = vmatprep.subr.mxu0 0.0
    %2856 = vmatpush1.msra.mxu0 0.0
    %2857 = vmatprep.mubr.f32.mxu0 0.0
    %2858 = vmatmul.mubr.f32.gmra.mrb[0].mxu0 %v2791
    %v2859 = vpop.f32.mrb[0].mxu0
    %v2860 = vadd.f32 0.0, %v2859
    %v2861 = vpop.f32.mrb[0].mxu0
    %2862 = vdwg.mxu0
    %v2863 = vadd.f32 %v2259, %v2860
    %v2864 = vtanh.pop %v2863
    %v2865 = vld [vmem:[%s10] sm:$0xff]
    %v2866 = vld [vmem:[%s10 + $0x8] sm:$0xff]
    %v2867 = vld [vmem:[%s10 + $0x10] sm:$0xff]
    %v2868 = vld [vmem:[%s10 + $0x18] sm:$0xff]
    %v2869 = vld [vmem:[#allocation2] sm:$0x1]
    %v2871 = vlaneseq
    %v2872 = vshrl.u32 %v2871, 7
    %v2873 = vsub.s32 0, %v2872
    %v2874 = vrot.slane %v2869, %v2873
    %v2877 = vsel %vm208, %v2864, 0
    %2879 = vmatprep.subr.mxu0 0.0
    %2880 = vmatpush1.msra.mxu0 %v2865
    %2881 = vmatprep.subr.mxu0 0.0
    %2882 = vmatpush1.msra.mxu0 %v2866
    %2883 = vmatprep.subr.mxu0 0.0
    %2884 = vmatpush1.msra.mxu0 %v2867
    %2885 = vmatprep.subr.mxu0 0.0
    %2886 = vmatpush1.msra.mxu0 %v2868
    %2887 = vmatprep.subr.mxu0 0.0
    %2888 = vmatpush1.msra.mxu0 0.0
    %2889 = vmatprep.subr.mxu0 0.0
    %2890 = vmatpush1.msra.mxu0 0.0
    %2891 = vmatprep.subr.mxu0 0.0
    %2892 = vmatpush1.msra.mxu0 0.0
    %2893 = vmatprep.subr.mxu0 0.0
    %2894 = vmatpush1.msra.mxu0 0.0
    %2895 = vmatprep.subr.mxu0 0.0
    %2896 = vmatpush1.msra.mxu0 0.0
    %2897 = vmatprep.subr.mxu0 0.0
    %2898 = vmatpush1.msra.mxu0 0.0
    %2899 = vmatprep.subr.mxu0 0.0
    %2900 = vmatpush1.msra.mxu0 0.0
    %2901 = vmatprep.subr.mxu0 0.0
    %2902 = vmatpush1.msra.mxu0 0.0
    %2903 = vmatprep.subr.mxu0 0.0
    %2904 = vmatpush1.msra.mxu0 0.0
    %2905 = vmatprep.subr.mxu0 0.0
    %2906 = vmatpush1.msra.mxu0 0.0
    %2907 = vmatprep.subr.mxu0 0.0
    %2908 = vmatpush1.msra.mxu0 0.0
    %2909 = vmatprep.subr.mxu0 0.0
    %2910 = vmatpush1.msra.mxu0 0.0
    %2911 = vmatprep.subr.mxu0 0.0
    %2912 = vmatpush1.msra.mxu0 0.0
    %2913 = vmatprep.subr.mxu0 0.0
    %2914 = vmatpush1.msra.mxu0 0.0
    %2915 = vmatprep.subr.mxu0 0.0
    %2916 = vmatpush1.msra.mxu0 0.0
    %2917 = vmatprep.subr.mxu0 0.0
    %2918 = vmatpush1.msra.mxu0 0.0
    %2919 = vmatprep.subr.mxu0 0.0
    %2920 = vmatpush1.msra.mxu0 0.0
    %2921 = vmatprep.subr.mxu0 0.0
    %2922 = vmatpush1.msra.mxu0 0.0
    %2923 = vmatprep.subr.mxu0 0.0
    %2924 = vmatpush1.msra.mxu0 0.0
    %2925 = vmatprep.subr.mxu0 0.0
    %2926 = vmatpush1.msra.mxu0 0.0
    %2927 = vmatprep.subr.mxu0 0.0
    %2928 = vmatpush1.msra.mxu0 0.0
    %2929 = vmatprep.subr.mxu0 0.0
    %2930 = vmatpush1.msra.mxu0 0.0
    %2931 = vmatprep.subr.mxu0 0.0
    %2932 = vmatpush1.msra.mxu0 0.0
    %2933 = vmatprep.subr.mxu0 0.0
    %2934 = vmatpush1.msra.mxu0 0.0
    %2935 = vmatprep.subr.mxu0 0.0
    %2936 = vmatpush1.msra.mxu0 0.0
    %2937 = vmatprep.subr.mxu0 0.0
    %2938 = vmatpush1.msra.mxu0 0.0
    %2939 = vmatprep.subr.mxu0 0.0
    %2940 = vmatpush1.msra.mxu0 0.0
    %2941 = vmatprep.subr.mxu0 0.0
    %2942 = vmatpush1.msra.mxu0 0.0
    %2943 = vmatprep.mubr.f32.mxu0 0.0
    %2944 = vmatmul.mubr.f32.gmra.mrb[0].mxu0 %v2877
    %v2945 = vpop.f32.mrb[0].mxu0
    %v2946 = vadd.f32 %v2874, %v2945
    %v2947 = vpop.f32.mrb[0].mxu0
    %2948 = vdwg.mxu0
    %vm2949 = vcmask 1024
    %2950 = vst.msk [vmem:[%s12] sm:$0x3] %vm2949, %v2946
    // Predicated region
    $region70: #{lstm_multirnn_forward.1} parent=1 // pred_check
      _
    $region71: #{lstm_multirnn_forward.1} parent=1 // pred_check_branch
      %2952 = sbr.rel (0) target = $region73
    $region72: #{lstm_multirnn_forward.1} parent=1 // pred_region
      _
    $region73: #{lstm_multirnn_forward.1} parent=1 // pred_fallthru
      _
    // Predicated region
    $region74: #{lstm_multirnn_forward.1} parent=1 // pred_check
      _
    $region75: #{lstm_multirnn_forward.1} parent=1 // pred_check_branch
      %2954 = sbr.rel (0) target = $region77
    $region76: #{lstm_multirnn_forward.1} parent=1 // pred_region
      _
    $region77: #{lstm_multirnn_forward.1} parent=1 // pred_fallthru
      _
    %2955 = vsyncpa [#allocation4], 1
    %2956 = vsyncpa [#allocation6], 1
    %2957 = vsyncpa [#allocation9], 1

</llo_original>
